<compile_context>
chip_gen: v6e
topology: v6e:2x2x1
jax: 0.10.0
libtpu: 0.0.40
codegen_flags: <defaults>
</compile_context>

<pallas_src>
import functools

import jax
import jax.numpy as jnp
import numpy as np
from jax.experimental import pallas as pl
from jax.experimental.pallas import tpu as pltpu


def _round_up(x, m):
    return ((x + m - 1) // m) * m


def _prescale_gates(m, H):
    """Fold the sigmoid<->tanh identity into the weights: scale the i, f, o
    gate columns by 0.5 (PyTorch gate order i, f, g, o along the last axis);
    the g (cell-candidate) columns stay unscaled so tanh(gates) is exact."""
    m = m.at[:, 0:2 * H].multiply(0.5)
    m = m.at[:, 3 * H:4 * H].multiply(0.5)
    return m


# ----------------------------------------------------------------------------
# Single fused kernel: wavefront LSTM (all layers) + ReLU + Linear epilogue.
# Args: x2d, wih0_wide, bias_all, w_big, w_fc, b_fc | out2d | hkeep, gx scratch
# ----------------------------------------------------------------------------
def _fused_lstm_fc_kernel(x_ref, wih0_ref, bias_ref, wbig_ref, wfc_ref, bfc_ref,
                          out_ref, hkeep_scr, gx_scr,
                          *, L, S, Bp, H, keep_from):
    G = 4 * H        # gate width per layer
    GW = L * G       # gate width across all layers

    # Hoisted layer-0 input projection (+ every layer's bias, broadcast along
    # time) for ALL timesteps: one big MXU matmul, off the serial path.
    gx_scr[...] = (
        jnp.dot(x_ref[...], wih0_ref[...], preferred_element_type=jnp.float32)
        + bias_ref[...])

    # Lane mask selecting the g-gate columns of every layer (hoisted once;
    # JAX does not CSE broadcasts inside loops).
    lane = jax.lax.broadcasted_iota(jnp.int32, (Bp, GW), 1)
    col = lane % G
    g_lane = (col >= 2 * H) & (col < 3 * H)

    wbig = wbig_ref[...]       # (L*H, L*4H) block weight, kept resident

    h = [jnp.zeros((Bp, H), jnp.float32) for _ in range(L)]
    c = [jnp.zeros((Bp, H), jnp.float32) for _ in range(L)]

    # Wavefront recurrence: at step w, layer l processes timestep t = w - l.
    # One block matmul + two tanh pushes per wavefront step; states carried
    # in vregs.  S and L are small & static -> full unroll.
    for w in range(S + L - 1):
        active = [l for l in range(L) if 0 <= w - l < S]
        lhs = h[0] if L == 1 else jnp.concatenate(h, axis=-1)   # (Bp, L*H)
        t0 = min(w, S - 1)     # clamped; layer-0 block is discarded if inactive
        gates = (jnp.dot(lhs, wbig, preferred_element_type=jnp.float32)
                 + gx_scr[pl.ds(t0 * Bp, Bp), :])               # (Bp, L*4H)

        tg = jnp.tanh(gates)                     # single EUP push, all gates
        act = jnp.where(g_lane, tg, 0.5 * (tg + 1.0))   # sigmoid via identity

        c_new = []
        for l in range(L):
            i_g = act[:, l * G + 0 * H: l * G + 1 * H]
            f_g = act[:, l * G + 1 * H: l * G + 2 * H]
            g_g = act[:, l * G + 2 * H: l * G + 3 * H]
            c_new.append(f_g * c[l] + i_g * g_g)
        c_cat = c_new[0] if L == 1 else jnp.concatenate(c_new, axis=-1)
        tc = jnp.tanh(c_cat)                     # single EUP push, all cells

        for l in active:                         # commit active layers only
            o_g = act[:, l * G + 3 * H: l * G + 4 * H]
            c[l] = c_new[l]
            h[l] = o_g * tc[:, l * H:(l + 1) * H]

        # Only the last layer's h for timesteps >= keep_from feeds the FC.
        tl = w - (L - 1)
        if (L - 1) in active and tl >= keep_from:
            hkeep_scr[pl.ds((tl - keep_from) * Bp, Bp), :] = h[L - 1]

    # Fused epilogue: ReLU + Linear; output padded to 128 lanes -> dense vst.
    hs = jnp.maximum(hkeep_scr[...], 0.0)
    out_ref[...] = (
        jnp.dot(hs, wfc_ref[...], preferred_element_type=jnp.float32)
        + bfc_ref[...])


# ----------------------------------------------------------------------------
# One-time weight packing (inference constants) — OFF the per-call path.
# ----------------------------------------------------------------------------
def pack_params(params):
    lstm = params["lstm"]
    L = len(lstm)
    H = lstm[0][1].shape[1]
    Din = lstm[0][0].shape[1]
    O = params["fc_w"].shape[0]
    assert H % 8 == 0, "hidden_dim must be a multiple of 8 for this kernel"

    Dp = _round_up(Din, 8)      # layer-0 contraction dim padded to sublanes
    Op = _round_up(O, 128)      # FC output padded to a full lane width
    G = 4 * H
    GW = L * G

    # Layer-0 input weights, widened so the hoisted projection also carries
    # every layer's (time-invariant) bias in its own gate-column block.
    wih0_t = _prescale_gates(jnp.transpose(lstm[0][0]).astype(jnp.float32), H)
    wih0_wide = jnp.zeros((Dp, GW), jnp.float32).at[:Din, :G].set(wih0_t)

    bias_all = jnp.zeros((1, GW), jnp.float32)
    w_big = jnp.zeros((L * H, GW), jnp.float32)
    for l, (w_ih, w_hh, b_ih, b_hh) in enumerate(lstm):
        b = _prescale_gates((b_ih + b_hh).astype(jnp.float32).reshape(1, G), H)
        bias_all = bias_all.at[:, l * G:(l + 1) * G].set(b)
        whh_t = _prescale_gates(jnp.transpose(w_hh).astype(jnp.float32), H)
        w_big = w_big.at[l * H:(l + 1) * H, l * G:(l + 1) * G].set(whh_t)
        if l >= 1:
            wih_t = _prescale_gates(jnp.transpose(w_ih).astype(jnp.float32), H)
            w_big = w_big.at[(l - 1) * H:l * H, l * G:(l + 1) * G].set(wih_t)

    w_fc_t = jnp.zeros((H, Op), jnp.float32).at[:, :O].set(
        jnp.transpose(params["fc_w"]).astype(jnp.float32))
    b_fc = jnp.zeros((1, Op), jnp.float32).at[:, :O].set(
        params["fc_b"].astype(jnp.float32).reshape(1, O))

    return {"L": L, "H": H, "Din": Din, "Dp": Dp, "O": O, "Op": Op,
            "wih0_wide": wih0_wide, "bias_all": bias_all, "w_big": w_big,
            "w_fc": w_fc_t, "b_fc": b_fc}


# ----------------------------------------------------------------------------
# Per-call wrapper: pad/flatten x, launch the single fused pallas_call.
# ----------------------------------------------------------------------------
def lstm_model_forward(x, packed, *, keep_from=12):
    """x: (S, B, in_dim) float32.  Returns (S-keep_from, B, out_dim)."""
    S, B, Din = x.shape
    L, H = packed["L"], packed["H"]
    Dp, O, Op = packed["Dp"], packed["O"], packed["Op"]
    assert Din == packed["Din"]
    assert S > keep_from, "sequence must be longer than 12 (out[12:] slice)"

    Bp = _round_up(B, 8)        # pad batch to f32 sublane count
    GW = L * 4 * H

    x_p = jnp.zeros((S, Bp, Dp), jnp.float32).at[:, :B, :Din].set(x)
    x2d = x_p.reshape(S * Bp, Dp)

    n_out_rows = (S - keep_from) * Bp
    kernel = functools.partial(_fused_lstm_fc_kernel,
                               L=L, S=S, Bp=Bp, H=H, keep_from=keep_from)

    out2d = pl.pallas_call(
        kernel,
        out_shape=jax.ShapeDtypeStruct((n_out_rows, Op), jnp.float32),
        grid_spec=pltpu.PrefetchScalarGridSpec(
            num_scalar_prefetch=0,
            grid=(1,),
            in_specs=[
                pl.BlockSpec((S * Bp, Dp), lambda i: (0, 0)),   # x2d
                pl.BlockSpec((Dp, GW), lambda i: (0, 0)),       # wih0_wide
                pl.BlockSpec((1, GW), lambda i: (0, 0)),        # bias_all
                pl.BlockSpec((L * H, GW), lambda i: (0, 0)),    # w_big
                pl.BlockSpec((H, Op), lambda i: (0, 0)),        # w_fc
                pl.BlockSpec((1, Op), lambda i: (0, 0)),        # b_fc
            ],
            out_specs=pl.BlockSpec((n_out_rows, Op), lambda i: (0, 0)),
            scratch_shapes=[
                pltpu.VMEM((n_out_rows, H), jnp.float32),   # last-layer h, t>=12
                pltpu.VMEM((S * Bp, GW), jnp.float32),      # hoisted x-proj+bias
            ],
        ),
        compiler_params=pltpu.CompilerParams(
            dimension_semantics=("arbitrary",)),
    )(x2d, packed["wih0_wide"], packed["bias_all"], packed["w_big"],
      packed["w_fc"], packed["b_fc"])

    # Strip lane / sublane padding.
    return out2d[:, :O].reshape(S - keep_from, Bp, O)[:, :B, :]


# ----------------------------------------------------------------------------
# Deterministic parameter init (PyTorch-style uniform(-1/sqrt(H), 1/sqrt(H)))
# ----------------------------------------------------------------------------
def init_params(key, in_dim, hidden_dim, out_dim, layer_num):
    k = 1.0 / np.sqrt(hidden_dim)
    layers = []
    for l in range(layer_num):
        d_in = in_dim if l == 0 else hidden_dim
        key, k1, k2, k3, k4 = jax.random.split(key, 5)
        w_ih = jax.random.uniform(k1, (4 * hidden_dim, d_in), jnp.float32, -k, k)
        w_hh = jax.random.uniform(k2, (4 * hidden_dim, hidden_dim), jnp.float32, -k, k)
        b_ih = jax.random.uniform(k3, (4 * hidden_dim,), jnp.float32, -k, k)
        b_hh = jax.random.uniform(k4, (4 * hidden_dim,), jnp.float32, -k, k)
        layers.append((w_ih, w_hh, b_ih, b_hh))
    key, k5, k6 = jax.random.split(key, 3)
    fc_w = jax.random.uniform(k5, (out_dim, hidden_dim), jnp.float32, -k, k)
    fc_b = jax.random.uniform(k6, (out_dim,), jnp.float32, -k, k)
    return {"lstm": layers, "fc_w": fc_w, "fc_b": fc_b}


# ----------------------------------------------------------------------------
# Pure-JAX reference (for correctness check)
# ----------------------------------------------------------------------------
def reference_forward(x, params):
    out = x
    for (w_ih, w_hh, b_ih, b_hh) in params["lstm"]:
        S, B, _ = out.shape
        H = w_hh.shape[1]

        def step(carry, x_t):
            h, c = carry
            g = x_t @ w_ih.T + h @ w_hh.T + b_ih + b_hh
            i = jax.nn.sigmoid(g[:, 0 * H:1 * H])
            f = jax.nn.sigmoid(g[:, 1 * H:2 * H])
            gg = jnp.tanh(g[:, 2 * H:3 * H])
            o = jax.nn.sigmoid(g[:, 3 * H:4 * H])
            c = f * c + i * gg
            h = o * jnp.tanh(c)
            return (h, c), h

        init = (jnp.zeros((B, H), jnp.float32), jnp.zeros((B, H), jnp.float32))
        _, hs = jax.lax.scan(step, init, out)
        out = hs
    out = jnp.maximum(out, 0.0)
    out = out[12:]
    return out @ params["fc_w"].T + params["fc_b"]


if __name__ == "__main__":
    in_dim, hidden_dim, out_dim, layer_num = 1, 32, 1, 2
    seq, batch = 16, 1   # seq > 12 required by the `out[12:]` slice

    key = jax.random.PRNGKey(0)
    key, pkey, xkey = jax.random.split(key, 3)
    params = init_params(pkey, in_dim, hidden_dim, out_dim, layer_num)
    x = jax.random.normal(xkey, (seq, batch, in_dim), jnp.float32)

    # One-time weight packing (off the per-call path), then the jitted forward.
    packed = jax.tree_util.tree_map(
        lambda a: a, pack_params(params))   # materialize packed constants once
    fwd = jax.jit(functools.partial(lstm_model_forward, packed=packed))

    y = jax.block_until_ready(fwd(x))
    y_ref = jax.block_until_ready(reference_forward(x, params))

    assert y.shape == (seq - 12, batch, out_dim), y.shape
    assert np.allclose(np.asarray(y), np.asarray(y_ref), rtol=1e-4, atol=1e-4)

    print("KERNEL_OK")
</pallas_src>

<mosaic_0001>
module attributes {stable_mosaic.version = 11 : i64} {
  func.func @_fused_lstm_fc_kernel(%arg0: i32, %arg1: memref<128x8xf32, #tpu.memory_space<vmem>>, %arg2: memref<8x256xf32, #tpu.memory_space<vmem>>, %arg3: memref<1x256xf32, #tpu.memory_space<vmem>>, %arg4: memref<64x256xf32, #tpu.memory_space<vmem>>, %arg5: memref<32x128xf32, #tpu.memory_space<vmem>>, %arg6: memref<1x128xf32, #tpu.memory_space<vmem>>, %arg7: memref<32x128xf32, #tpu.memory_space<vmem>>, %arg8: memref<32x32xf32, #tpu.memory_space<vmem>>, %arg9: memref<128x256xf32, #tpu.memory_space<vmem>>) attributes {dimension_semantics = [#tpu.dimension_semantics<arbitrary>], iteration_bounds = array<i64: 1>, scalar_prefetch = 0 : i64, scratch_operands = 2 : i64, tpu.core_type = #tpu.core_type<tc>, window_params = [{pipeline_mode = #tpu.pipeline_mode<synchronous>, transform_indices = @transform_0, window_bounds = array<i64: 128, 8>}, {pipeline_mode = #tpu.pipeline_mode<synchronous>, transform_indices = @transform_1, window_bounds = array<i64: 8, 256>}, {pipeline_mode = #tpu.pipeline_mode<synchronous>, transform_indices = @transform_2, window_bounds = array<i64: 1, 256>}, {pipeline_mode = #tpu.pipeline_mode<synchronous>, transform_indices = @transform_3, window_bounds = array<i64: 64, 256>}, {pipeline_mode = #tpu.pipeline_mode<synchronous>, transform_indices = @transform_4, window_bounds = array<i64: 32, 128>}, {pipeline_mode = #tpu.pipeline_mode<synchronous>, transform_indices = @transform_5, window_bounds = array<i64: 1, 128>}, {pipeline_mode = #tpu.pipeline_mode<synchronous>, transform_indices = @transform_6, window_bounds = array<i64: 32, 128>}]} {
    %c0 = arith.constant 0 : index
    %c0_0 = arith.constant 0 : index
    %0 = vector.load %arg1[%c0, %c0_0] : memref<128x8xf32, #tpu.memory_space<vmem>>, vector<128x8xf32>
    %c0_1 = arith.constant 0 : index
    %c0_2 = arith.constant 0 : index
    %1 = vector.load %arg2[%c0_1, %c0_2] : memref<8x256xf32, #tpu.memory_space<vmem>>, vector<8x256xf32>
    %cst = arith.constant dense<0.000000e+00> : vector<128x256xf32>
    %2 = tpu.matmul %0, %1, %cst {dimension_numbers = #tpu.dot_dimension_numbers<[1], [0], [0], [1], [0, 0, 1, 1], [], []>} : vector<128x8xf32>, vector<8x256xf32>, vector<128x256xf32> -> vector<128x256xf32>
    %c0_3 = arith.constant 0 : index
    %c0_4 = arith.constant 0 : index
    %3 = vector.load %arg3[%c0_3, %c0_4] : memref<1x256xf32, #tpu.memory_space<vmem>>, vector<1x256xf32>
    %4 = vector.broadcast %3 : vector<1x256xf32> to vector<128x256xf32>
    %5 = arith.addf %2, %4 : vector<128x256xf32>
    %c0_5 = arith.constant 0 : index
    %c0_6 = arith.constant 0 : index
    %6 = vector.load %arg9[%c0_5, %c0_6] : memref<128x256xf32, #tpu.memory_space<vmem>>, vector<128x256xf32>
    tpu.vector_store %arg9[%c0_5, %c0_6], %5 {strides = array<i32>} : memref<128x256xf32, #tpu.memory_space<vmem>>, vector<128x256xf32>,
    %7 = tpu.iota {dimensions = array<i32: 1>} : vector<8x256xi32>
    %c128_i32 = arith.constant 128 : i32
    %c0_i32 = arith.constant 0 : i32
    %8 = arith.cmpi eq, %c128_i32, %c0_i32 : i32
    %c1_i32 = arith.constant 1 : i32
    %9 = arith.select %8, %c1_i32, %c128_i32 : i32
    %10 = vector.broadcast %9 : i32 to vector<8x256xi32>
    %11 = arith.remsi %7, %10 : vector<8x256xi32>
    %c0_i32_7 = arith.constant 0 : i32
    %12 = vector.broadcast %c0_i32_7 : i32 to vector<8x256xi32>
    %13 = arith.cmpi ne, %11, %12 : vector<8x256xi32>
    %c0_i32_8 = arith.constant 0 : i32
    %14 = vector.broadcast %c0_i32_8 : i32 to vector<8x256xi32>
    %15 = arith.cmpi slt, %11, %14 : vector<8x256xi32>
    %c0_i32_9 = arith.constant 0 : i32
    %16 = arith.cmpi slt, %9, %c0_i32_9 : i32
    %17 = vector.broadcast %16 : i1 to vector<8x256xi1>
    %18 = vector.broadcast %17 : vector<8x256xi1> to vector<8x256xi1>
    %19 = arith.xori %15, %18 : vector<8x256xi1>
    %20 = arith.andi %19, %13 : vector<8x256xi1>
    %21 = vector.broadcast %9 : i32 to vector<8x256xi32>
    %22 = arith.addi %11, %21 : vector<8x256xi32>
    %23 = arith.select %20, %22, %11 : vector<8x256xi1>, vector<8x256xi32>
    %c64_i32 = arith.constant 64 : i32
    %24 = vector.broadcast %c64_i32 : i32 to vector<8x256xi32>
    %25 = arith.cmpi sge, %23, %24 : vector<8x256xi32>
    %c96_i32 = arith.constant 96 : i32
    %26 = vector.broadcast %c96_i32 : i32 to vector<8x256xi32>
    %27 = arith.cmpi slt, %23, %26 : vector<8x256xi32>
    %28 = arith.andi %25, %27 : vector<8x256xi1>
    %c0_10 = arith.constant 0 : index
    %c0_11 = arith.constant 0 : index
    %29 = vector.load %arg4[%c0_10, %c0_11] : memref<64x256xf32, #tpu.memory_space<vmem>>, vector<64x256xf32>
    %cst_12 = arith.constant 0.000000e+00 : f32
    %30 = vector.broadcast %cst_12 : f32 to vector<8x32xf32>
    %cst_13 = arith.constant 0.000000e+00 : f32
    %31 = vector.broadcast %cst_13 : f32 to vector<8x32xf32>
    %cst_14 = arith.constant 0.000000e+00 : f32
    %32 = vector.broadcast %cst_14 : f32 to vector<8x32xf32>
    %cst_15 = arith.constant 0.000000e+00 : f32
    %33 = vector.broadcast %cst_15 : f32 to vector<8x32xf32>
    %34 = tpu.concatenate %30, %31 in 1 : vector<8x32xf32>, vector<8x32xf32> -> vector<8x64xf32>
    %cst_16 = arith.constant dense<0.000000e+00> : vector<8x256xf32>
    %35 = tpu.matmul %34, %29, %cst_16 {dimension_numbers = #tpu.dot_dimension_numbers<[1], [0], [0], [1], [0, 0, 1, 1], [], []>} : vector<8x64xf32>, vector<64x256xf32>, vector<8x256xf32> -> vector<8x256xf32>
    %c0_17 = arith.constant 0 : index
    %c0_18 = arith.constant 0 : index
    %36 = vector.load %arg9[%c0_17, %c0_18] : memref<128x256xf32, #tpu.memory_space<vmem>>, vector<8x256xf32>
    %37 = arith.addf %35, %36 : vector<8x256xf32>
    %38 = math.tanh %37 : vector<8x256xf32>
    %cst_19 = arith.constant 1.000000e+00 : f32
    %39 = vector.broadcast %cst_19 : f32 to vector<8x256xf32>
    %40 = arith.addf %38, %39 : vector<8x256xf32>
    %cst_20 = arith.constant 5.000000e-01 : f32
    %41 = vector.broadcast %cst_20 : f32 to vector<8x256xf32>
    %42 = arith.mulf %41, %40 : vector<8x256xf32>
    %43 = arith.select %28, %38, %42 : vector<8x256xi1>, vector<8x256xf32>
    %44 = vector.extract_strided_slice %43 {offsets = [0, 0], sizes = [8, 32], strides = [1, 1]} : vector<8x256xf32> to vector<8x32xf32>
    %45 = vector.extract_strided_slice %43 {offsets = [0, 32], sizes = [8, 32], strides = [1, 1]} : vector<8x256xf32> to vector<8x32xf32>
    %46 = vector.extract_strided_slice %43 {offsets = [0, 64], sizes = [8, 32], strides = [1, 1]} : vector<8x256xf32> to vector<8x32xf32>
    %47 = arith.mulf %45, %32 : vector<8x32xf32>
    %48 = arith.mulf %44, %46 : vector<8x32xf32>
    %49 = arith.addf %47, %48 : vector<8x32xf32>
    %50 = vector.extract_strided_slice %43 {offsets = [0, 128], sizes = [8, 32], strides = [1, 1]} : vector<8x256xf32> to vector<8x32xf32>
    %51 = vector.extract_strided_slice %43 {offsets = [0, 160], sizes = [8, 32], strides = [1, 1]} : vector<8x256xf32> to vector<8x32xf32>
    %52 = vector.extract_strided_slice %43 {offsets = [0, 192], sizes = [8, 32], strides = [1, 1]} : vector<8x256xf32> to vector<8x32xf32>
    %53 = arith.mulf %51, %33 : vector<8x32xf32>
    %54 = arith.mulf %50, %52 : vector<8x32xf32>
    %55 = arith.addf %53, %54 : vector<8x32xf32>
    %56 = tpu.concatenate %49, %55 in 1 : vector<8x32xf32>, vector<8x32xf32> -> vector<8x64xf32>
    %57 = math.tanh %56 : vector<8x64xf32>
    %58 = vector.extract_strided_slice %43 {offsets = [0, 96], sizes = [8, 32], strides = [1, 1]} : vector<8x256xf32> to vector<8x32xf32>
    %59 = vector.extract_strided_slice %57 {offsets = [0, 0], sizes = [8, 32], strides = [1, 1]} : vector<8x64xf32> to vector<8x32xf32>
    %60 = arith.mulf %58, %59 : vector<8x32xf32>
    %61 = tpu.concatenate %60, %31 in 1 : vector<8x32xf32>, vector<8x32xf32> -> vector<8x64xf32>
    %cst_21 = arith.constant dense<0.000000e+00> : vector<8x256xf32>
    %62 = tpu.matmul %61, %29, %cst_21 {dimension_numbers = #tpu.dot_dimension_numbers<[1], [0], [0], [1], [0, 0, 1, 1], [], []>} : vector<8x64xf32>, vector<64x256xf32>, vector<8x256xf32> -> vector<8x256xf32>
    %c8 = arith.constant 8 : index
    %c0_22 = arith.constant 0 : index
    %63 = vector.load %arg9[%c8, %c0_22] : memref<128x256xf32, #tpu.memory_space<vmem>>, vector<8x256xf32>
    %64 = arith.addf %62, %63 : vector<8x256xf32>
    %65 = math.tanh %64 : vector<8x256xf32>
    %cst_23 = arith.constant 1.000000e+00 : f32
    %66 = vector.broadcast %cst_23 : f32 to vector<8x256xf32>
    %67 = arith.addf %65, %66 : vector<8x256xf32>
    %cst_24 = arith.constant 5.000000e-01 : f32
    %68 = vector.broadcast %cst_24 : f32 to vector<8x256xf32>
    %69 = arith.mulf %68, %67 : vector<8x256xf32>
    %70 = arith.select %28, %65, %69 : vector<8x256xi1>, vector<8x256xf32>
    %71 = vector.extract_strided_slice %70 {offsets = [0, 0], sizes = [8, 32], strides = [1, 1]} : vector<8x256xf32> to vector<8x32xf32>
    %72 = vector.extract_strided_slice %70 {offsets = [0, 32], sizes = [8, 32], strides = [1, 1]} : vector<8x256xf32> to vector<8x32xf32>
    %73 = vector.extract_strided_slice %70 {offsets = [0, 64], sizes = [8, 32], strides = [1, 1]} : vector<8x256xf32> to vector<8x32xf32>
    %74 = arith.mulf %72, %49 : vector<8x32xf32>
    %75 = arith.mulf %71, %73 : vector<8x32xf32>
    %76 = arith.addf %74, %75 : vector<8x32xf32>
    %77 = vector.extract_strided_slice %70 {offsets = [0, 128], sizes = [8, 32], strides = [1, 1]} : vector<8x256xf32> to vector<8x32xf32>
    %78 = vector.extract_strided_slice %70 {offsets = [0, 160], sizes = [8, 32], strides = [1, 1]} : vector<8x256xf32> to vector<8x32xf32>
    %79 = vector.extract_strided_slice %70 {offsets = [0, 192], sizes = [8, 32], strides = [1, 1]} : vector<8x256xf32> to vector<8x32xf32>
    %80 = arith.mulf %78, %33 : vector<8x32xf32>
    %81 = arith.mulf %77, %79 : vector<8x32xf32>
    %82 = arith.addf %80, %81 : vector<8x32xf32>
    %83 = tpu.concatenate %76, %82 in 1 : vector<8x32xf32>, vector<8x32xf32> -> vector<8x64xf32>
    %84 = math.tanh %83 : vector<8x64xf32>
    %85 = vector.extract_strided_slice %70 {offsets = [0, 96], sizes = [8, 32], strides = [1, 1]} : vector<8x256xf32> to vector<8x32xf32>
    %86 = vector.extract_strided_slice %84 {offsets = [0, 0], sizes = [8, 32], strides = [1, 1]} : vector<8x64xf32> to vector<8x32xf32>
    %87 = arith.mulf %85, %86 : vector<8x32xf32>
    %88 = vector.extract_strided_slice %70 {offsets = [0, 224], sizes = [8, 32], strides = [1, 1]} : vector<8x256xf32> to vector<8x32xf32>
    %89 = vector.extract_strided_slice %84 {offsets = [0, 32], sizes = [8, 32], strides = [1, 1]} : vector<8x64xf32> to vector<8x32xf32>
    %90 = arith.mulf %88, %89 : vector<8x32xf32>
    %91 = tpu.concatenate %87, %90 in 1 : vector<8x32xf32>, vector<8x32xf32> -> vector<8x64xf32>
    %cst_25 = arith.constant dense<0.000000e+00> : vector<8x256xf32>
    %92 = tpu.matmul %91, %29, %cst_25 {dimension_numbers = #tpu.dot_dimension_numbers<[1], [0], [0], [1], [0, 0, 1, 1], [], []>} : vector<8x64xf32>, vector<64x256xf32>, vector<8x256xf32> -> vector<8x256xf32>
    %c16 = arith.constant 16 : index
    %c0_26 = arith.constant 0 : index
    %93 = vector.load %arg9[%c16, %c0_26] : memref<128x256xf32, #tpu.memory_space<vmem>>, vector<8x256xf32>
    %94 = arith.addf %92, %93 : vector<8x256xf32>
    %95 = math.tanh %94 : vector<8x256xf32>
    %cst_27 = arith.constant 1.000000e+00 : f32
    %96 = vector.broadcast %cst_27 : f32 to vector<8x256xf32>
    %97 = arith.addf %95, %96 : vector<8x256xf32>
    %cst_28 = arith.constant 5.000000e-01 : f32
    %98 = vector.broadcast %cst_28 : f32 to vector<8x256xf32>
    %99 = arith.mulf %98, %97 : vector<8x256xf32>
    %100 = arith.select %28, %95, %99 : vector<8x256xi1>, vector<8x256xf32>
    %101 = vector.extract_strided_slice %100 {offsets = [0, 0], sizes = [8, 32], strides = [1, 1]} : vector<8x256xf32> to vector<8x32xf32>
    %102 = vector.extract_strided_slice %100 {offsets = [0, 32], sizes = [8, 32], strides = [1, 1]} : vector<8x256xf32> to vector<8x32xf32>
    %103 = vector.extract_strided_slice %100 {offsets = [0, 64], sizes = [8, 32], strides = [1, 1]} : vector<8x256xf32> to vector<8x32xf32>
    %104 = arith.mulf %102, %76 : vector<8x32xf32>
    %105 = arith.mulf %101, %103 : vector<8x32xf32>
    %106 = arith.addf %104, %105 : vector<8x32xf32>
    %107 = vector.extract_strided_slice %100 {offsets = [0, 128], sizes = [8, 32], strides = [1, 1]} : vector<8x256xf32> to vector<8x32xf32>
    %108 = vector.extract_strided_slice %100 {offsets = [0, 160], sizes = [8, 32], strides = [1, 1]} : vector<8x256xf32> to vector<8x32xf32>
    %109 = vector.extract_strided_slice %100 {offsets = [0, 192], sizes = [8, 32], strides = [1, 1]} : vector<8x256xf32> to vector<8x32xf32>
    %110 = arith.mulf %108, %82 : vector<8x32xf32>
    %111 = arith.mulf %107, %109 : vector<8x32xf32>
    %112 = arith.addf %110, %111 : vector<8x32xf32>
    %113 = tpu.concatenate %106, %112 in 1 : vector<8x32xf32>, vector<8x32xf32> -> vector<8x64xf32>
    %114 = math.tanh %113 : vector<8x64xf32>
    %115 = vector.extract_strided_slice %100 {offsets = [0, 96], sizes = [8, 32], strides = [1, 1]} : vector<8x256xf32> to vector<8x32xf32>
    %116 = vector.extract_strided_slice %114 {offsets = [0, 0], sizes = [8, 32], strides = [1, 1]} : vector<8x64xf32> to vector<8x32xf32>
    %117 = arith.mulf %115, %116 : vector<8x32xf32>
    %118 = vector.extract_strided_slice %100 {offsets = [0, 224], sizes = [8, 32], strides = [1, 1]} : vector<8x256xf32> to vector<8x32xf32>
    %119 = vector.extract_strided_slice %114 {offsets = [0, 32], sizes = [8, 32], strides = [1, 1]} : vector<8x64xf32> to vector<8x32xf32>
    %120 = arith.mulf %118, %119 : vector<8x32xf32>
    %121 = tpu.concatenate %117, %120 in 1 : vector<8x32xf32>, vector<8x32xf32> -> vector<8x64xf32>
    %cst_29 = arith.constant dense<0.000000e+00> : vector<8x256xf32>
    %122 = tpu.matmul %121, %29, %cst_29 {dimension_numbers = #tpu.dot_dimension_numbers<[1], [0], [0], [1], [0, 0, 1, 1], [], []>} : vector<8x64xf32>, vector<64x256xf32>, vector<8x256xf32> -> vector<8x256xf32>
    %c24 = arith.constant 24 : index
    %c0_30 = arith.constant 0 : index
    %123 = vector.load %arg9[%c24, %c0_30] : memref<128x256xf32, #tpu.memory_space<vmem>>, vector<8x256xf32>
    %124 = arith.addf %122, %123 : vector<8x256xf32>
    %125 = math.tanh %124 : vector<8x256xf32>
    %cst_31 = arith.constant 1.000000e+00 : f32
    %126 = vector.broadcast %cst_31 : f32 to vector<8x256xf32>
    %127 = arith.addf %125, %126 : vector<8x256xf32>
    %cst_32 = arith.constant 5.000000e-01 : f32
    %128 = vector.broadcast %cst_32 : f32 to vector<8x256xf32>
    %129 = arith.mulf %128, %127 : vector<8x256xf32>
    %130 = arith.select %28, %125, %129 : vector<8x256xi1>, vector<8x256xf32>
    %131 = vector.extract_strided_slice %130 {offsets = [0, 0], sizes = [8, 32], strides = [1, 1]} : vector<8x256xf32> to vector<8x32xf32>
    %132 = vector.extract_strided_slice %130 {offsets = [0, 32], sizes = [8, 32], strides = [1, 1]} : vector<8x256xf32> to vector<8x32xf32>
    %133 = vector.extract_strided_slice %130 {offsets = [0, 64], sizes = [8, 32], strides = [1, 1]} : vector<8x256xf32> to vector<8x32xf32>
    %134 = arith.mulf %132, %106 : vector<8x32xf32>
    %135 = arith.mulf %131, %133 : vector<8x32xf32>
    %136 = arith.addf %134, %135 : vector<8x32xf32>
    %137 = vector.extract_strided_slice %130 {offsets = [0, 128], sizes = [8, 32], strides = [1, 1]} : vector<8x256xf32> to vector<8x32xf32>
    %138 = vector.extract_strided_slice %130 {offsets = [0, 160], sizes = [8, 32], strides = [1, 1]} : vector<8x256xf32> to vector<8x32xf32>
    %139 = vector.extract_strided_slice %130 {offsets = [0, 192], sizes = [8, 32], strides = [1, 1]} : vector<8x256xf32> to vector<8x32xf32>
    %140 = arith.mulf %138, %112 : vector<8x32xf32>
    %141 = arith.mulf %137, %139 : vector<8x32xf32>
    %142 = arith.addf %140, %141 : vector<8x32xf32>
    %143 = tpu.concatenate %136, %142 in 1 : vector<8x32xf32>, vector<8x32xf32> -> vector<8x64xf32>
    %144 = math.tanh %143 : vector<8x64xf32>
    %145 = vector.extract_strided_slice %130 {offsets = [0, 96], sizes = [8, 32], strides = [1, 1]} : vector<8x256xf32> to vector<8x32xf32>
    %146 = vector.extract_strided_slice %144 {offsets = [0, 0], sizes = [8, 32], strides = [1, 1]} : vector<8x64xf32> to vector<8x32xf32>
    %147 = arith.mulf %145, %146 : vector<8x32xf32>
    %148 = vector.extract_strided_slice %130 {offsets = [0, 224], sizes = [8, 32], strides = [1, 1]} : vector<8x256xf32> to vector<8x32xf32>
    %149 = vector.extract_strided_slice %144 {offsets = [0, 32], sizes = [8, 32], strides = [1, 1]} : vector<8x64xf32> to vector<8x32xf32>
    %150 = arith.mulf %148, %149 : vector<8x32xf32>
    %151 = tpu.concatenate %147, %150 in 1 : vector<8x32xf32>, vector<8x32xf32> -> vector<8x64xf32>
    %cst_33 = arith.constant dense<0.000000e+00> : vector<8x256xf32>
    %152 = tpu.matmul %151, %29, %cst_33 {dimension_numbers = #tpu.dot_dimension_numbers<[1], [0], [0], [1], [0, 0, 1, 1], [], []>} : vector<8x64xf32>, vector<64x256xf32>, vector<8x256xf32> -> vector<8x256xf32>
    %c32 = arith.constant 32 : index
    %c0_34 = arith.constant 0 : index
    %153 = vector.load %arg9[%c32, %c0_34] : memref<128x256xf32, #tpu.memory_space<vmem>>, vector<8x256xf32>
    %154 = arith.addf %152, %153 : vector<8x256xf32>
    %155 = math.tanh %154 : vector<8x256xf32>
    %cst_35 = arith.constant 1.000000e+00 : f32
    %156 = vector.broadcast %cst_35 : f32 to vector<8x256xf32>
    %157 = arith.addf %155, %156 : vector<8x256xf32>
    %cst_36 = arith.constant 5.000000e-01 : f32
    %158 = vector.broadcast %cst_36 : f32 to vector<8x256xf32>
    %159 = arith.mulf %158, %157 : vector<8x256xf32>
    %160 = arith.select %28, %155, %159 : vector<8x256xi1>, vector<8x256xf32>
    %161 = vector.extract_strided_slice %160 {offsets = [0, 0], sizes = [8, 32], strides = [1, 1]} : vector<8x256xf32> to vector<8x32xf32>
    %162 = vector.extract_strided_slice %160 {offsets = [0, 32], sizes = [8, 32], strides = [1, 1]} : vector<8x256xf32> to vector<8x32xf32>
    %163 = vector.extract_strided_slice %160 {offsets = [0, 64], sizes = [8, 32], strides = [1, 1]} : vector<8x256xf32> to vector<8x32xf32>
    %164 = arith.mulf %162, %136 : vector<8x32xf32>
    %165 = arith.mulf %161, %163 : vector<8x32xf32>
    %166 = arith.addf %164, %165 : vector<8x32xf32>
    %167 = vector.extract_strided_slice %160 {offsets = [0, 128], sizes = [8, 32], strides = [1, 1]} : vector<8x256xf32> to vector<8x32xf32>
    %168 = vector.extract_strided_slice %160 {offsets = [0, 160], sizes = [8, 32], strides = [1, 1]} : vector<8x256xf32> to vector<8x32xf32>
    %169 = vector.extract_strided_slice %160 {offsets = [0, 192], sizes = [8, 32], strides = [1, 1]} : vector<8x256xf32> to vector<8x32xf32>
    %170 = arith.mulf %168, %142 : vector<8x32xf32>
    %171 = arith.mulf %167, %169 : vector<8x32xf32>
    %172 = arith.addf %170, %171 : vector<8x32xf32>
    %173 = tpu.concatenate %166, %172 in 1 : vector<8x32xf32>, vector<8x32xf32> -> vector<8x64xf32>
    %174 = math.tanh %173 : vector<8x64xf32>
    %175 = vector.extract_strided_slice %160 {offsets = [0, 96], sizes = [8, 32], strides = [1, 1]} : vector<8x256xf32> to vector<8x32xf32>
    %176 = vector.extract_strided_slice %174 {offsets = [0, 0], sizes = [8, 32], strides = [1, 1]} : vector<8x64xf32> to vector<8x32xf32>
    %177 = arith.mulf %175, %176 : vector<8x32xf32>
    %178 = vector.extract_strided_slice %160 {offsets = [0, 224], sizes = [8, 32], strides = [1, 1]} : vector<8x256xf32> to vector<8x32xf32>
    %179 = vector.extract_strided_slice %174 {offsets = [0, 32], sizes = [8, 32], strides = [1, 1]} : vector<8x64xf32> to vector<8x32xf32>
    %180 = arith.mulf %178, %179 : vector<8x32xf32>
    %181 = tpu.concatenate %177, %180 in 1 : vector<8x32xf32>, vector<8x32xf32> -> vector<8x64xf32>
    %cst_37 = arith.constant dense<0.000000e+00> : vector<8x256xf32>
    %182 = tpu.matmul %181, %29, %cst_37 {dimension_numbers = #tpu.dot_dimension_numbers<[1], [0], [0], [1], [0, 0, 1, 1], [], []>} : vector<8x64xf32>, vector<64x256xf32>, vector<8x256xf32> -> vector<8x256xf32>
    %c40 = arith.constant 40 : index
    %c0_38 = arith.constant 0 : index
    %183 = vector.load %arg9[%c40, %c0_38] : memref<128x256xf32, #tpu.memory_space<vmem>>, vector<8x256xf32>
    %184 = arith.addf %182, %183 : vector<8x256xf32>
    %185 = math.tanh %184 : vector<8x256xf32>
    %cst_39 = arith.constant 1.000000e+00 : f32
    %186 = vector.broadcast %cst_39 : f32 to vector<8x256xf32>
    %187 = arith.addf %185, %186 : vector<8x256xf32>
    %cst_40 = arith.constant 5.000000e-01 : f32
    %188 = vector.broadcast %cst_40 : f32 to vector<8x256xf32>
    %189 = arith.mulf %188, %187 : vector<8x256xf32>
    %190 = arith.select %28, %185, %189 : vector<8x256xi1>, vector<8x256xf32>
    %191 = vector.extract_strided_slice %190 {offsets = [0, 0], sizes = [8, 32], strides = [1, 1]} : vector<8x256xf32> to vector<8x32xf32>
    %192 = vector.extract_strided_slice %190 {offsets = [0, 32], sizes = [8, 32], strides = [1, 1]} : vector<8x256xf32> to vector<8x32xf32>
    %193 = vector.extract_strided_slice %190 {offsets = [0, 64], sizes = [8, 32], strides = [1, 1]} : vector<8x256xf32> to vector<8x32xf32>
    %194 = arith.mulf %192, %166 : vector<8x32xf32>
    %195 = arith.mulf %191, %193 : vector<8x32xf32>
    %196 = arith.addf %194, %195 : vector<8x32xf32>
    %197 = vector.extract_strided_slice %190 {offsets = [0, 128], sizes = [8, 32], strides = [1, 1]} : vector<8x256xf32> to vector<8x32xf32>
    %198 = vector.extract_strided_slice %190 {offsets = [0, 160], sizes = [8, 32], strides = [1, 1]} : vector<8x256xf32> to vector<8x32xf32>
    %199 = vector.extract_strided_slice %190 {offsets = [0, 192], sizes = [8, 32], strides = [1, 1]} : vector<8x256xf32> to vector<8x32xf32>
    %200 = arith.mulf %198, %172 : vector<8x32xf32>
    %201 = arith.mulf %197, %199 : vector<8x32xf32>
    %202 = arith.addf %200, %201 : vector<8x32xf32>
    %203 = tpu.concatenate %196, %202 in 1 : vector<8x32xf32>, vector<8x32xf32> -> vector<8x64xf32>
    %204 = math.tanh %203 : vector<8x64xf32>
    %205 = vector.extract_strided_slice %190 {offsets = [0, 96], sizes = [8, 32], strides = [1, 1]} : vector<8x256xf32> to vector<8x32xf32>
    %206 = vector.extract_strided_slice %204 {offsets = [0, 0], sizes = [8, 32], strides = [1, 1]} : vector<8x64xf32> to vector<8x32xf32>
    %207 = arith.mulf %205, %206 : vector<8x32xf32>
    %208 = vector.extract_strided_slice %190 {offsets = [0, 224], sizes = [8, 32], strides = [1, 1]} : vector<8x256xf32> to vector<8x32xf32>
    %209 = vector.extract_strided_slice %204 {offsets = [0, 32], sizes = [8, 32], strides = [1, 1]} : vector<8x64xf32> to vector<8x32xf32>
    %210 = arith.mulf %208, %209 : vector<8x32xf32>
    %211 = tpu.concatenate %207, %210 in 1 : vector<8x32xf32>, vector<8x32xf32> -> vector<8x64xf32>
    %cst_41 = arith.constant dense<0.000000e+00> : vector<8x256xf32>
    %212 = tpu.matmul %211, %29, %cst_41 {dimension_numbers = #tpu.dot_dimension_numbers<[1], [0], [0], [1], [0, 0, 1, 1], [], []>} : vector<8x64xf32>, vector<64x256xf32>, vector<8x256xf32> -> vector<8x256xf32>
    %c48 = arith.constant 48 : index
    %c0_42 = arith.constant 0 : index
    %213 = vector.load %arg9[%c48, %c0_42] : memref<128x256xf32, #tpu.memory_space<vmem>>, vector<8x256xf32>
    %214 = arith.addf %212, %213 : vector<8x256xf32>
    %215 = math.tanh %214 : vector<8x256xf32>
    %cst_43 = arith.constant 1.000000e+00 : f32
    %216 = vector.broadcast %cst_43 : f32 to vector<8x256xf32>
    %217 = arith.addf %215, %216 : vector<8x256xf32>
    %cst_44 = arith.constant 5.000000e-01 : f32
    %218 = vector.broadcast %cst_44 : f32 to vector<8x256xf32>
    %219 = arith.mulf %218, %217 : vector<8x256xf32>
    %220 = arith.select %28, %215, %219 : vector<8x256xi1>, vector<8x256xf32>
    %221 = vector.extract_strided_slice %220 {offsets = [0, 0], sizes = [8, 32], strides = [1, 1]} : vector<8x256xf32> to vector<8x32xf32>
    %222 = vector.extract_strided_slice %220 {offsets = [0, 32], sizes = [8, 32], strides = [1, 1]} : vector<8x256xf32> to vector<8x32xf32>
    %223 = vector.extract_strided_slice %220 {offsets = [0, 64], sizes = [8, 32], strides = [1, 1]} : vector<8x256xf32> to vector<8x32xf32>
    %224 = arith.mulf %222, %196 : vector<8x32xf32>
    %225 = arith.mulf %221, %223 : vector<8x32xf32>
    %226 = arith.addf %224, %225 : vector<8x32xf32>
    %227 = vector.extract_strided_slice %220 {offsets = [0, 128], sizes = [8, 32], strides = [1, 1]} : vector<8x256xf32> to vector<8x32xf32>
    %228 = vector.extract_strided_slice %220 {offsets = [0, 160], sizes = [8, 32], strides = [1, 1]} : vector<8x256xf32> to vector<8x32xf32>
    %229 = vector.extract_strided_slice %220 {offsets = [0, 192], sizes = [8, 32], strides = [1, 1]} : vector<8x256xf32> to vector<8x32xf32>
    %230 = arith.mulf %228, %202 : vector<8x32xf32>
    %231 = arith.mulf %227, %229 : vector<8x32xf32>
    %232 = arith.addf %230, %231 : vector<8x32xf32>
    %233 = tpu.concatenate %226, %232 in 1 : vector<8x32xf32>, vector<8x32xf32> -> vector<8x64xf32>
    %234 = math.tanh %233 : vector<8x64xf32>
    %235 = vector.extract_strided_slice %220 {offsets = [0, 96], sizes = [8, 32], strides = [1, 1]} : vector<8x256xf32> to vector<8x32xf32>
    %236 = vector.extract_strided_slice %234 {offsets = [0, 0], sizes = [8, 32], strides = [1, 1]} : vector<8x64xf32> to vector<8x32xf32>
    %237 = arith.mulf %235, %236 : vector<8x32xf32>
    %238 = vector.extract_strided_slice %220 {offsets = [0, 224], sizes = [8, 32], strides = [1, 1]} : vector<8x256xf32> to vector<8x32xf32>
    %239 = vector.extract_strided_slice %234 {offsets = [0, 32], sizes = [8, 32], strides = [1, 1]} : vector<8x64xf32> to vector<8x32xf32>
    %240 = arith.mulf %238, %239 : vector<8x32xf32>
    %241 = tpu.concatenate %237, %240 in 1 : vector<8x32xf32>, vector<8x32xf32> -> vector<8x64xf32>
    %cst_45 = arith.constant dense<0.000000e+00> : vector<8x256xf32>
    %242 = tpu.matmul %241, %29, %cst_45 {dimension_numbers = #tpu.dot_dimension_numbers<[1], [0], [0], [1], [0, 0, 1, 1], [], []>} : vector<8x64xf32>, vector<64x256xf32>, vector<8x256xf32> -> vector<8x256xf32>
    %c56 = arith.constant 56 : index
    %c0_46 = arith.constant 0 : index
    %243 = vector.load %arg9[%c56, %c0_46] : memref<128x256xf32, #tpu.memory_space<vmem>>, vector<8x256xf32>
    %244 = arith.addf %242, %243 : vector<8x256xf32>
    %245 = math.tanh %244 : vector<8x256xf32>
    %cst_47 = arith.constant 1.000000e+00 : f32
    %246 = vector.broadcast %cst_47 : f32 to vector<8x256xf32>
    %247 = arith.addf %245, %246 : vector<8x256xf32>
    %cst_48 = arith.constant 5.000000e-01 : f32
    %248 = vector.broadcast %cst_48 : f32 to vector<8x256xf32>
    %249 = arith.mulf %248, %247 : vector<8x256xf32>
    %250 = arith.select %28, %245, %249 : vector<8x256xi1>, vector<8x256xf32>
    %251 = vector.extract_strided_slice %250 {offsets = [0, 0], sizes = [8, 32], strides = [1, 1]} : vector<8x256xf32> to vector<8x32xf32>
    %252 = vector.extract_strided_slice %250 {offsets = [0, 32], sizes = [8, 32], strides = [1, 1]} : vector<8x256xf32> to vector<8x32xf32>
    %253 = vector.extract_strided_slice %250 {offsets = [0, 64], sizes = [8, 32], strides = [1, 1]} : vector<8x256xf32> to vector<8x32xf32>
    %254 = arith.mulf %252, %226 : vector<8x32xf32>
    %255 = arith.mulf %251, %253 : vector<8x32xf32>
    %256 = arith.addf %254, %255 : vector<8x32xf32>
    %257 = vector.extract_strided_slice %250 {offsets = [0, 128], sizes = [8, 32], strides = [1, 1]} : vector<8x256xf32> to vector<8x32xf32>
    %258 = vector.extract_strided_slice %250 {offsets = [0, 160], sizes = [8, 32], strides = [1, 1]} : vector<8x256xf32> to vector<8x32xf32>
    %259 = vector.extract_strided_slice %250 {offsets = [0, 192], sizes = [8, 32], strides = [1, 1]} : vector<8x256xf32> to vector<8x32xf32>
    %260 = arith.mulf %258, %232 : vector<8x32xf32>
    %261 = arith.mulf %257, %259 : vector<8x32xf32>
    %262 = arith.addf %260, %261 : vector<8x32xf32>
    %263 = tpu.concatenate %256, %262 in 1 : vector<8x32xf32>, vector<8x32xf32> -> vector<8x64xf32>
    %264 = math.tanh %263 : vector<8x64xf32>
    %265 = vector.extract_strided_slice %250 {offsets = [0, 96], sizes = [8, 32], strides = [1, 1]} : vector<8x256xf32> to vector<8x32xf32>
    %266 = vector.extract_strided_slice %264 {offsets = [0, 0], sizes = [8, 32], strides = [1, 1]} : vector<8x64xf32> to vector<8x32xf32>
    %267 = arith.mulf %265, %266 : vector<8x32xf32>
    %268 = vector.extract_strided_slice %250 {offsets = [0, 224], sizes = [8, 32], strides = [1, 1]} : vector<8x256xf32> to vector<8x32xf32>
    %269 = vector.extract_strided_slice %264 {offsets = [0, 32], sizes = [8, 32], strides = [1, 1]} : vector<8x64xf32> to vector<8x32xf32>
    %270 = arith.mulf %268, %269 : vector<8x32xf32>
    %271 = tpu.concatenate %267, %270 in 1 : vector<8x32xf32>, vector<8x32xf32> -> vector<8x64xf32>
    %cst_49 = arith.constant dense<0.000000e+00> : vector<8x256xf32>
    %272 = tpu.matmul %271, %29, %cst_49 {dimension_numbers = #tpu.dot_dimension_numbers<[1], [0], [0], [1], [0, 0, 1, 1], [], []>} : vector<8x64xf32>, vector<64x256xf32>, vector<8x256xf32> -> vector<8x256xf32>
    %c64 = arith.constant 64 : index
    %c0_50 = arith.constant 0 : index
    %273 = vector.load %arg9[%c64, %c0_50] : memref<128x256xf32, #tpu.memory_space<vmem>>, vector<8x256xf32>
    %274 = arith.addf %272, %273 : vector<8x256xf32>
    %275 = math.tanh %274 : vector<8x256xf32>
    %cst_51 = arith.constant 1.000000e+00 : f32
    %276 = vector.broadcast %cst_51 : f32 to vector<8x256xf32>
    %277 = arith.addf %275, %276 : vector<8x256xf32>
    %cst_52 = arith.constant 5.000000e-01 : f32
    %278 = vector.broadcast %cst_52 : f32 to vector<8x256xf32>
    %279 = arith.mulf %278, %277 : vector<8x256xf32>
    %280 = arith.select %28, %275, %279 : vector<8x256xi1>, vector<8x256xf32>
    %281 = vector.extract_strided_slice %280 {offsets = [0, 0], sizes = [8, 32], strides = [1, 1]} : vector<8x256xf32> to vector<8x32xf32>
    %282 = vector.extract_strided_slice %280 {offsets = [0, 32], sizes = [8, 32], strides = [1, 1]} : vector<8x256xf32> to vector<8x32xf32>
    %283 = vector.extract_strided_slice %280 {offsets = [0, 64], sizes = [8, 32], strides = [1, 1]} : vector<8x256xf32> to vector<8x32xf32>
    %284 = arith.mulf %282, %256 : vector<8x32xf32>
    %285 = arith.mulf %281, %283 : vector<8x32xf32>
    %286 = arith.addf %284, %285 : vector<8x32xf32>
    %287 = vector.extract_strided_slice %280 {offsets = [0, 128], sizes = [8, 32], strides = [1, 1]} : vector<8x256xf32> to vector<8x32xf32>
    %288 = vector.extract_strided_slice %280 {offsets = [0, 160], sizes = [8, 32], strides = [1, 1]} : vector<8x256xf32> to vector<8x32xf32>
    %289 = vector.extract_strided_slice %280 {offsets = [0, 192], sizes = [8, 32], strides = [1, 1]} : vector<8x256xf32> to vector<8x32xf32>
    %290 = arith.mulf %288, %262 : vector<8x32xf32>
    %291 = arith.mulf %287, %289 : vector<8x32xf32>
    %292 = arith.addf %290, %291 : vector<8x32xf32>
    %293 = tpu.concatenate %286, %292 in 1 : vector<8x32xf32>, vector<8x32xf32> -> vector<8x64xf32>
    %294 = math.tanh %293 : vector<8x64xf32>
    %295 = vector.extract_strided_slice %280 {offsets = [0, 96], sizes = [8, 32], strides = [1, 1]} : vector<8x256xf32> to vector<8x32xf32>
    %296 = vector.extract_strided_slice %294 {offsets = [0, 0], sizes = [8, 32], strides = [1, 1]} : vector<8x64xf32> to vector<8x32xf32>
    %297 = arith.mulf %295, %296 : vector<8x32xf32>
    %298 = vector.extract_strided_slice %280 {offsets = [0, 224], sizes = [8, 32], strides = [1, 1]} : vector<8x256xf32> to vector<8x32xf32>
    %299 = vector.extract_strided_slice %294 {offsets = [0, 32], sizes = [8, 32], strides = [1, 1]} : vector<8x64xf32> to vector<8x32xf32>
    %300 = arith.mulf %298, %299 : vector<8x32xf32>
    %301 = tpu.concatenate %297, %300 in 1 : vector<8x32xf32>, vector<8x32xf32> -> vector<8x64xf32>
    %cst_53 = arith.constant dense<0.000000e+00> : vector<8x256xf32>
    %302 = tpu.matmul %301, %29, %cst_53 {dimension_numbers = #tpu.dot_dimension_numbers<[1], [0], [0], [1], [0, 0, 1, 1], [], []>} : vector<8x64xf32>, vector<64x256xf32>, vector<8x256xf32> -> vector<8x256xf32>
    %c72 = arith.constant 72 : index
    %c0_54 = arith.constant 0 : index
    %303 = vector.load %arg9[%c72, %c0_54] : memref<128x256xf32, #tpu.memory_space<vmem>>, vector<8x256xf32>
    %304 = arith.addf %302, %303 : vector<8x256xf32>
    %305 = math.tanh %304 : vector<8x256xf32>
    %cst_55 = arith.constant 1.000000e+00 : f32
    %306 = vector.broadcast %cst_55 : f32 to vector<8x256xf32>
    %307 = arith.addf %305, %306 : vector<8x256xf32>
    %cst_56 = arith.constant 5.000000e-01 : f32
    %308 = vector.broadcast %cst_56 : f32 to vector<8x256xf32>
    %309 = arith.mulf %308, %307 : vector<8x256xf32>
    %310 = arith.select %28, %305, %309 : vector<8x256xi1>, vector<8x256xf32>
    %311 = vector.extract_strided_slice %310 {offsets = [0, 0], sizes = [8, 32], strides = [1, 1]} : vector<8x256xf32> to vector<8x32xf32>
    %312 = vector.extract_strided_slice %310 {offsets = [0, 32], sizes = [8, 32], strides = [1, 1]} : vector<8x256xf32> to vector<8x32xf32>
    %313 = vector.extract_strided_slice %310 {offsets = [0, 64], sizes = [8, 32], strides = [1, 1]} : vector<8x256xf32> to vector<8x32xf32>
    %314 = arith.mulf %312, %286 : vector<8x32xf32>
    %315 = arith.mulf %311, %313 : vector<8x32xf32>
    %316 = arith.addf %314, %315 : vector<8x32xf32>
    %317 = vector.extract_strided_slice %310 {offsets = [0, 128], sizes = [8, 32], strides = [1, 1]} : vector<8x256xf32> to vector<8x32xf32>
    %318 = vector.extract_strided_slice %310 {offsets = [0, 160], sizes = [8, 32], strides = [1, 1]} : vector<8x256xf32> to vector<8x32xf32>
    %319 = vector.extract_strided_slice %310 {offsets = [0, 192], sizes = [8, 32], strides = [1, 1]} : vector<8x256xf32> to vector<8x32xf32>
    %320 = arith.mulf %318, %292 : vector<8x32xf32>
    %321 = arith.mulf %317, %319 : vector<8x32xf32>
    %322 = arith.addf %320, %321 : vector<8x32xf32>
    %323 = tpu.concatenate %316, %322 in 1 : vector<8x32xf32>, vector<8x32xf32> -> vector<8x64xf32>
    %324 = math.tanh %323 : vector<8x64xf32>
    %325 = vector.extract_strided_slice %310 {offsets = [0, 96], sizes = [8, 32], strides = [1, 1]} : vector<8x256xf32> to vector<8x32xf32>
    %326 = vector.extract_strided_slice %324 {offsets = [0, 0], sizes = [8, 32], strides = [1, 1]} : vector<8x64xf32> to vector<8x32xf32>
    %327 = arith.mulf %325, %326 : vector<8x32xf32>
    %328 = vector.extract_strided_slice %310 {offsets = [0, 224], sizes = [8, 32], strides = [1, 1]} : vector<8x256xf32> to vector<8x32xf32>
    %329 = vector.extract_strided_slice %324 {offsets = [0, 32], sizes = [8, 32], strides = [1, 1]} : vector<8x64xf32> to vector<8x32xf32>
    %330 = arith.mulf %328, %329 : vector<8x32xf32>
    %331 = tpu.concatenate %327, %330 in 1 : vector<8x32xf32>, vector<8x32xf32> -> vector<8x64xf32>
    %cst_57 = arith.constant dense<0.000000e+00> : vector<8x256xf32>
    %332 = tpu.matmul %331, %29, %cst_57 {dimension_numbers = #tpu.dot_dimension_numbers<[1], [0], [0], [1], [0, 0, 1, 1], [], []>} : vector<8x64xf32>, vector<64x256xf32>, vector<8x256xf32> -> vector<8x256xf32>
    %c80 = arith.constant 80 : index
    %c0_58 = arith.constant 0 : index
    %333 = vector.load %arg9[%c80, %c0_58] : memref<128x256xf32, #tpu.memory_space<vmem>>, vector<8x256xf32>
    %334 = arith.addf %332, %333 : vector<8x256xf32>
    %335 = math.tanh %334 : vector<8x256xf32>
    %cst_59 = arith.constant 1.000000e+00 : f32
    %336 = vector.broadcast %cst_59 : f32 to vector<8x256xf32>
    %337 = arith.addf %335, %336 : vector<8x256xf32>
    %cst_60 = arith.constant 5.000000e-01 : f32
    %338 = vector.broadcast %cst_60 : f32 to vector<8x256xf32>
    %339 = arith.mulf %338, %337 : vector<8x256xf32>
    %340 = arith.select %28, %335, %339 : vector<8x256xi1>, vector<8x256xf32>
    %341 = vector.extract_strided_slice %340 {offsets = [0, 0], sizes = [8, 32], strides = [1, 1]} : vector<8x256xf32> to vector<8x32xf32>
    %342 = vector.extract_strided_slice %340 {offsets = [0, 32], sizes = [8, 32], strides = [1, 1]} : vector<8x256xf32> to vector<8x32xf32>
    %343 = vector.extract_strided_slice %340 {offsets = [0, 64], sizes = [8, 32], strides = [1, 1]} : vector<8x256xf32> to vector<8x32xf32>
    %344 = arith.mulf %342, %316 : vector<8x32xf32>
    %345 = arith.mulf %341, %343 : vector<8x32xf32>
    %346 = arith.addf %344, %345 : vector<8x32xf32>
    %347 = vector.extract_strided_slice %340 {offsets = [0, 128], sizes = [8, 32], strides = [1, 1]} : vector<8x256xf32> to vector<8x32xf32>
    %348 = vector.extract_strided_slice %340 {offsets = [0, 160], sizes = [8, 32], strides = [1, 1]} : vector<8x256xf32> to vector<8x32xf32>
    %349 = vector.extract_strided_slice %340 {offsets = [0, 192], sizes = [8, 32], strides = [1, 1]} : vector<8x256xf32> to vector<8x32xf32>
    %350 = arith.mulf %348, %322 : vector<8x32xf32>
    %351 = arith.mulf %347, %349 : vector<8x32xf32>
    %352 = arith.addf %350, %351 : vector<8x32xf32>
    %353 = tpu.concatenate %346, %352 in 1 : vector<8x32xf32>, vector<8x32xf32> -> vector<8x64xf32>
    %354 = math.tanh %353 : vector<8x64xf32>
    %355 = vector.extract_strided_slice %340 {offsets = [0, 96], sizes = [8, 32], strides = [1, 1]} : vector<8x256xf32> to vector<8x32xf32>
    %356 = vector.extract_strided_slice %354 {offsets = [0, 0], sizes = [8, 32], strides = [1, 1]} : vector<8x64xf32> to vector<8x32xf32>
    %357 = arith.mulf %355, %356 : vector<8x32xf32>
    %358 = vector.extract_strided_slice %340 {offsets = [0, 224], sizes = [8, 32], strides = [1, 1]} : vector<8x256xf32> to vector<8x32xf32>
    %359 = vector.extract_strided_slice %354 {offsets = [0, 32], sizes = [8, 32], strides = [1, 1]} : vector<8x64xf32> to vector<8x32xf32>
    %360 = arith.mulf %358, %359 : vector<8x32xf32>
    %361 = tpu.concatenate %357, %360 in 1 : vector<8x32xf32>, vector<8x32xf32> -> vector<8x64xf32>
    %cst_61 = arith.constant dense<0.000000e+00> : vector<8x256xf32>
    %362 = tpu.matmul %361, %29, %cst_61 {dimension_numbers = #tpu.dot_dimension_numbers<[1], [0], [0], [1], [0, 0, 1, 1], [], []>} : vector<8x64xf32>, vector<64x256xf32>, vector<8x256xf32> -> vector<8x256xf32>
    %c88 = arith.constant 88 : index
    %c0_62 = arith.constant 0 : index
    %363 = vector.load %arg9[%c88, %c0_62] : memref<128x256xf32, #tpu.memory_space<vmem>>, vector<8x256xf32>
    %364 = arith.addf %362, %363 : vector<8x256xf32>
    %365 = math.tanh %364 : vector<8x256xf32>
    %cst_63 = arith.constant 1.000000e+00 : f32
    %366 = vector.broadcast %cst_63 : f32 to vector<8x256xf32>
    %367 = arith.addf %365, %366 : vector<8x256xf32>
    %cst_64 = arith.constant 5.000000e-01 : f32
    %368 = vector.broadcast %cst_64 : f32 to vector<8x256xf32>
    %369 = arith.mulf %368, %367 : vector<8x256xf32>
    %370 = arith.select %28, %365, %369 : vector<8x256xi1>, vector<8x256xf32>
    %371 = vector.extract_strided_slice %370 {offsets = [0, 0], sizes = [8, 32], strides = [1, 1]} : vector<8x256xf32> to vector<8x32xf32>
    %372 = vector.extract_strided_slice %370 {offsets = [0, 32], sizes = [8, 32], strides = [1, 1]} : vector<8x256xf32> to vector<8x32xf32>
    %373 = vector.extract_strided_slice %370 {offsets = [0, 64], sizes = [8, 32], strides = [1, 1]} : vector<8x256xf32> to vector<8x32xf32>
    %374 = arith.mulf %372, %346 : vector<8x32xf32>
    %375 = arith.mulf %371, %373 : vector<8x32xf32>
    %376 = arith.addf %374, %375 : vector<8x32xf32>
    %377 = vector.extract_strided_slice %370 {offsets = [0, 128], sizes = [8, 32], strides = [1, 1]} : vector<8x256xf32> to vector<8x32xf32>
    %378 = vector.extract_strided_slice %370 {offsets = [0, 160], sizes = [8, 32], strides = [1, 1]} : vector<8x256xf32> to vector<8x32xf32>
    %379 = vector.extract_strided_slice %370 {offsets = [0, 192], sizes = [8, 32], strides = [1, 1]} : vector<8x256xf32> to vector<8x32xf32>
    %380 = arith.mulf %378, %352 : vector<8x32xf32>
    %381 = arith.mulf %377, %379 : vector<8x32xf32>
    %382 = arith.addf %380, %381 : vector<8x32xf32>
    %383 = tpu.concatenate %376, %382 in 1 : vector<8x32xf32>, vector<8x32xf32> -> vector<8x64xf32>
    %384 = math.tanh %383 : vector<8x64xf32>
    %385 = vector.extract_strided_slice %370 {offsets = [0, 96], sizes = [8, 32], strides = [1, 1]} : vector<8x256xf32> to vector<8x32xf32>
    %386 = vector.extract_strided_slice %384 {offsets = [0, 0], sizes = [8, 32], strides = [1, 1]} : vector<8x64xf32> to vector<8x32xf32>
    %387 = arith.mulf %385, %386 : vector<8x32xf32>
    %388 = vector.extract_strided_slice %370 {offsets = [0, 224], sizes = [8, 32], strides = [1, 1]} : vector<8x256xf32> to vector<8x32xf32>
    %389 = vector.extract_strided_slice %384 {offsets = [0, 32], sizes = [8, 32], strides = [1, 1]} : vector<8x64xf32> to vector<8x32xf32>
    %390 = arith.mulf %388, %389 : vector<8x32xf32>
    %391 = tpu.concatenate %387, %390 in 1 : vector<8x32xf32>, vector<8x32xf32> -> vector<8x64xf32>
    %cst_65 = arith.constant dense<0.000000e+00> : vector<8x256xf32>
    %392 = tpu.matmul %391, %29, %cst_65 {dimension_numbers = #tpu.dot_dimension_numbers<[1], [0], [0], [1], [0, 0, 1, 1], [], []>} : vector<8x64xf32>, vector<64x256xf32>, vector<8x256xf32> -> vector<8x256xf32>
    %c96 = arith.constant 96 : index
    %c0_66 = arith.constant 0 : index
    %393 = vector.load %arg9[%c96, %c0_66] : memref<128x256xf32, #tpu.memory_space<vmem>>, vector<8x256xf32>
    %394 = arith.addf %392, %393 : vector<8x256xf32>
    %395 = math.tanh %394 : vector<8x256xf32>
    %cst_67 = arith.constant 1.000000e+00 : f32
    %396 = vector.broadcast %cst_67 : f32 to vector<8x256xf32>
    %397 = arith.addf %395, %396 : vector<8x256xf32>
    %cst_68 = arith.constant 5.000000e-01 : f32
    %398 = vector.broadcast %cst_68 : f32 to vector<8x256xf32>
    %399 = arith.mulf %398, %397 : vector<8x256xf32>
    %400 = arith.select %28, %395, %399 : vector<8x256xi1>, vector<8x256xf32>
    %401 = vector.extract_strided_slice %400 {offsets = [0, 0], sizes = [8, 32], strides = [1, 1]} : vector<8x256xf32> to vector<8x32xf32>
    %402 = vector.extract_strided_slice %400 {offsets = [0, 32], sizes = [8, 32], strides = [1, 1]} : vector<8x256xf32> to vector<8x32xf32>
    %403 = vector.extract_strided_slice %400 {offsets = [0, 64], sizes = [8, 32], strides = [1, 1]} : vector<8x256xf32> to vector<8x32xf32>
    %404 = arith.mulf %402, %376 : vector<8x32xf32>
    %405 = arith.mulf %401, %403 : vector<8x32xf32>
    %406 = arith.addf %404, %405 : vector<8x32xf32>
    %407 = vector.extract_strided_slice %400 {offsets = [0, 128], sizes = [8, 32], strides = [1, 1]} : vector<8x256xf32> to vector<8x32xf32>
    %408 = vector.extract_strided_slice %400 {offsets = [0, 160], sizes = [8, 32], strides = [1, 1]} : vector<8x256xf32> to vector<8x32xf32>
    %409 = vector.extract_strided_slice %400 {offsets = [0, 192], sizes = [8, 32], strides = [1, 1]} : vector<8x256xf32> to vector<8x32xf32>
    %410 = arith.mulf %408, %382 : vector<8x32xf32>
    %411 = arith.mulf %407, %409 : vector<8x32xf32>
    %412 = arith.addf %410, %411 : vector<8x32xf32>
    %413 = tpu.concatenate %406, %412 in 1 : vector<8x32xf32>, vector<8x32xf32> -> vector<8x64xf32>
    %414 = math.tanh %413 : vector<8x64xf32>
    %415 = vector.extract_strided_slice %400 {offsets = [0, 96], sizes = [8, 32], strides = [1, 1]} : vector<8x256xf32> to vector<8x32xf32>
    %416 = vector.extract_strided_slice %414 {offsets = [0, 0], sizes = [8, 32], strides = [1, 1]} : vector<8x64xf32> to vector<8x32xf32>
    %417 = arith.mulf %415, %416 : vector<8x32xf32>
    %418 = vector.extract_strided_slice %400 {offsets = [0, 224], sizes = [8, 32], strides = [1, 1]} : vector<8x256xf32> to vector<8x32xf32>
    %419 = vector.extract_strided_slice %414 {offsets = [0, 32], sizes = [8, 32], strides = [1, 1]} : vector<8x64xf32> to vector<8x32xf32>
    %420 = arith.mulf %418, %419 : vector<8x32xf32>
    %421 = tpu.concatenate %417, %420 in 1 : vector<8x32xf32>, vector<8x32xf32> -> vector<8x64xf32>
    %cst_69 = arith.constant dense<0.000000e+00> : vector<8x256xf32>
    %422 = tpu.matmul %421, %29, %cst_69 {dimension_numbers = #tpu.dot_dimension_numbers<[1], [0], [0], [1], [0, 0, 1, 1], [], []>} : vector<8x64xf32>, vector<64x256xf32>, vector<8x256xf32> -> vector<8x256xf32>
    %c104 = arith.constant 104 : index
    %c0_70 = arith.constant 0 : index
    %423 = vector.load %arg9[%c104, %c0_70] : memref<128x256xf32, #tpu.memory_space<vmem>>, vector<8x256xf32>
    %424 = arith.addf %422, %423 : vector<8x256xf32>
    %425 = math.tanh %424 : vector<8x256xf32>
    %cst_71 = arith.constant 1.000000e+00 : f32
    %426 = vector.broadcast %cst_71 : f32 to vector<8x256xf32>
    %427 = arith.addf %425, %426 : vector<8x256xf32>
    %cst_72 = arith.constant 5.000000e-01 : f32
    %428 = vector.broadcast %cst_72 : f32 to vector<8x256xf32>
    %429 = arith.mulf %428, %427 : vector<8x256xf32>
    %430 = arith.select %28, %425, %429 : vector<8x256xi1>, vector<8x256xf32>
    %431 = vector.extract_strided_slice %430 {offsets = [0, 0], sizes = [8, 32], strides = [1, 1]} : vector<8x256xf32> to vector<8x32xf32>
    %432 = vector.extract_strided_slice %430 {offsets = [0, 32], sizes = [8, 32], strides = [1, 1]} : vector<8x256xf32> to vector<8x32xf32>
    %433 = vector.extract_strided_slice %430 {offsets = [0, 64], sizes = [8, 32], strides = [1, 1]} : vector<8x256xf32> to vector<8x32xf32>
    %434 = arith.mulf %432, %406 : vector<8x32xf32>
    %435 = arith.mulf %431, %433 : vector<8x32xf32>
    %436 = arith.addf %434, %435 : vector<8x32xf32>
    %437 = vector.extract_strided_slice %430 {offsets = [0, 128], sizes = [8, 32], strides = [1, 1]} : vector<8x256xf32> to vector<8x32xf32>
    %438 = vector.extract_strided_slice %430 {offsets = [0, 160], sizes = [8, 32], strides = [1, 1]} : vector<8x256xf32> to vector<8x32xf32>
    %439 = vector.extract_strided_slice %430 {offsets = [0, 192], sizes = [8, 32], strides = [1, 1]} : vector<8x256xf32> to vector<8x32xf32>
    %440 = arith.mulf %438, %412 : vector<8x32xf32>
    %441 = arith.mulf %437, %439 : vector<8x32xf32>
    %442 = arith.addf %440, %441 : vector<8x32xf32>
    %443 = tpu.concatenate %436, %442 in 1 : vector<8x32xf32>, vector<8x32xf32> -> vector<8x64xf32>
    %444 = math.tanh %443 : vector<8x64xf32>
    %445 = vector.extract_strided_slice %430 {offsets = [0, 96], sizes = [8, 32], strides = [1, 1]} : vector<8x256xf32> to vector<8x32xf32>
    %446 = vector.extract_strided_slice %444 {offsets = [0, 0], sizes = [8, 32], strides = [1, 1]} : vector<8x64xf32> to vector<8x32xf32>
    %447 = arith.mulf %445, %446 : vector<8x32xf32>
    %448 = vector.extract_strided_slice %430 {offsets = [0, 224], sizes = [8, 32], strides = [1, 1]} : vector<8x256xf32> to vector<8x32xf32>
    %449 = vector.extract_strided_slice %444 {offsets = [0, 32], sizes = [8, 32], strides = [1, 1]} : vector<8x64xf32> to vector<8x32xf32>
    %450 = arith.mulf %448, %449 : vector<8x32xf32>
    %c0_73 = arith.constant 0 : index
    %c0_74 = arith.constant 0 : index
    %451 = vector.load %arg8[%c0_73, %c0_74] : memref<32x32xf32, #tpu.memory_space<vmem>>, vector<8x32xf32>
    tpu.vector_store %arg8[%c0_73, %c0_74], %450 {strides = array<i32>} : memref<32x32xf32, #tpu.memory_space<vmem>>, vector<8x32xf32>,
    %452 = tpu.concatenate %447, %450 in 1 : vector<8x32xf32>, vector<8x32xf32> -> vector<8x64xf32>
    %cst_75 = arith.constant dense<0.000000e+00> : vector<8x256xf32>
    %453 = tpu.matmul %452, %29, %cst_75 {dimension_numbers = #tpu.dot_dimension_numbers<[1], [0], [0], [1], [0, 0, 1, 1], [], []>} : vector<8x64xf32>, vector<64x256xf32>, vector<8x256xf32> -> vector<8x256xf32>
    %c112 = arith.constant 112 : index
    %c0_76 = arith.constant 0 : index
    %454 = vector.load %arg9[%c112, %c0_76] : memref<128x256xf32, #tpu.memory_space<vmem>>, vector<8x256xf32>
    %455 = arith.addf %453, %454 : vector<8x256xf32>
    %456 = math.tanh %455 : vector<8x256xf32>
    %cst_77 = arith.constant 1.000000e+00 : f32
    %457 = vector.broadcast %cst_77 : f32 to vector<8x256xf32>
    %458 = arith.addf %456, %457 : vector<8x256xf32>
    %cst_78 = arith.constant 5.000000e-01 : f32
    %459 = vector.broadcast %cst_78 : f32 to vector<8x256xf32>
    %460 = arith.mulf %459, %458 : vector<8x256xf32>
    %461 = arith.select %28, %456, %460 : vector<8x256xi1>, vector<8x256xf32>
    %462 = vector.extract_strided_slice %461 {offsets = [0, 0], sizes = [8, 32], strides = [1, 1]} : vector<8x256xf32> to vector<8x32xf32>
    %463 = vector.extract_strided_slice %461 {offsets = [0, 32], sizes = [8, 32], strides = [1, 1]} : vector<8x256xf32> to vector<8x32xf32>
    %464 = vector.extract_strided_slice %461 {offsets = [0, 64], sizes = [8, 32], strides = [1, 1]} : vector<8x256xf32> to vector<8x32xf32>
    %465 = arith.mulf %463, %436 : vector<8x32xf32>
    %466 = arith.mulf %462, %464 : vector<8x32xf32>
    %467 = arith.addf %465, %466 : vector<8x32xf32>
    %468 = vector.extract_strided_slice %461 {offsets = [0, 128], sizes = [8, 32], strides = [1, 1]} : vector<8x256xf32> to vector<8x32xf32>
    %469 = vector.extract_strided_slice %461 {offsets = [0, 160], sizes = [8, 32], strides = [1, 1]} : vector<8x256xf32> to vector<8x32xf32>
    %470 = vector.extract_strided_slice %461 {offsets = [0, 192], sizes = [8, 32], strides = [1, 1]} : vector<8x256xf32> to vector<8x32xf32>
    %471 = arith.mulf %469, %442 : vector<8x32xf32>
    %472 = arith.mulf %468, %470 : vector<8x32xf32>
    %473 = arith.addf %471, %472 : vector<8x32xf32>
    %474 = tpu.concatenate %467, %473 in 1 : vector<8x32xf32>, vector<8x32xf32> -> vector<8x64xf32>
    %475 = math.tanh %474 : vector<8x64xf32>
    %476 = vector.extract_strided_slice %461 {offsets = [0, 96], sizes = [8, 32], strides = [1, 1]} : vector<8x256xf32> to vector<8x32xf32>
    %477 = vector.extract_strided_slice %475 {offsets = [0, 0], sizes = [8, 32], strides = [1, 1]} : vector<8x64xf32> to vector<8x32xf32>
    %478 = arith.mulf %476, %477 : vector<8x32xf32>
    %479 = vector.extract_strided_slice %461 {offsets = [0, 224], sizes = [8, 32], strides = [1, 1]} : vector<8x256xf32> to vector<8x32xf32>
    %480 = vector.extract_strided_slice %475 {offsets = [0, 32], sizes = [8, 32], strides = [1, 1]} : vector<8x64xf32> to vector<8x32xf32>
    %481 = arith.mulf %479, %480 : vector<8x32xf32>
    %c8_79 = arith.constant 8 : index
    %c0_80 = arith.constant 0 : index
    %482 = vector.load %arg8[%c8_79, %c0_80] : memref<32x32xf32, #tpu.memory_space<vmem>>, vector<8x32xf32>
    tpu.vector_store %arg8[%c8_79, %c0_80], %481 {strides = array<i32>} : memref<32x32xf32, #tpu.memory_space<vmem>>, vector<8x32xf32>,
    %483 = tpu.concatenate %478, %481 in 1 : vector<8x32xf32>, vector<8x32xf32> -> vector<8x64xf32>
    %cst_81 = arith.constant dense<0.000000e+00> : vector<8x256xf32>
    %484 = tpu.matmul %483, %29, %cst_81 {dimension_numbers = #tpu.dot_dimension_numbers<[1], [0], [0], [1], [0, 0, 1, 1], [], []>} : vector<8x64xf32>, vector<64x256xf32>, vector<8x256xf32> -> vector<8x256xf32>
    %c120 = arith.constant 120 : index
    %c0_82 = arith.constant 0 : index
    %485 = vector.load %arg9[%c120, %c0_82] : memref<128x256xf32, #tpu.memory_space<vmem>>, vector<8x256xf32>
    %486 = arith.addf %484, %485 : vector<8x256xf32>
    %487 = math.tanh %486 : vector<8x256xf32>
    %cst_83 = arith.constant 1.000000e+00 : f32
    %488 = vector.broadcast %cst_83 : f32 to vector<8x256xf32>
    %489 = arith.addf %487, %488 : vector<8x256xf32>
    %cst_84 = arith.constant 5.000000e-01 : f32
    %490 = vector.broadcast %cst_84 : f32 to vector<8x256xf32>
    %491 = arith.mulf %490, %489 : vector<8x256xf32>
    %492 = arith.select %28, %487, %491 : vector<8x256xi1>, vector<8x256xf32>
    %493 = vector.extract_strided_slice %492 {offsets = [0, 0], sizes = [8, 32], strides = [1, 1]} : vector<8x256xf32> to vector<8x32xf32>
    %494 = vector.extract_strided_slice %492 {offsets = [0, 32], sizes = [8, 32], strides = [1, 1]} : vector<8x256xf32> to vector<8x32xf32>
    %495 = vector.extract_strided_slice %492 {offsets = [0, 64], sizes = [8, 32], strides = [1, 1]} : vector<8x256xf32> to vector<8x32xf32>
    %496 = arith.mulf %494, %467 : vector<8x32xf32>
    %497 = arith.mulf %493, %495 : vector<8x32xf32>
    %498 = arith.addf %496, %497 : vector<8x32xf32>
    %499 = vector.extract_strided_slice %492 {offsets = [0, 128], sizes = [8, 32], strides = [1, 1]} : vector<8x256xf32> to vector<8x32xf32>
    %500 = vector.extract_strided_slice %492 {offsets = [0, 160], sizes = [8, 32], strides = [1, 1]} : vector<8x256xf32> to vector<8x32xf32>
    %501 = vector.extract_strided_slice %492 {offsets = [0, 192], sizes = [8, 32], strides = [1, 1]} : vector<8x256xf32> to vector<8x32xf32>
    %502 = arith.mulf %500, %473 : vector<8x32xf32>
    %503 = arith.mulf %499, %501 : vector<8x32xf32>
    %504 = arith.addf %502, %503 : vector<8x32xf32>
    %505 = tpu.concatenate %498, %504 in 1 : vector<8x32xf32>, vector<8x32xf32> -> vector<8x64xf32>
    %506 = math.tanh %505 : vector<8x64xf32>
    %507 = vector.extract_strided_slice %492 {offsets = [0, 96], sizes = [8, 32], strides = [1, 1]} : vector<8x256xf32> to vector<8x32xf32>
    %508 = vector.extract_strided_slice %506 {offsets = [0, 0], sizes = [8, 32], strides = [1, 1]} : vector<8x64xf32> to vector<8x32xf32>
    %509 = arith.mulf %507, %508 : vector<8x32xf32>
    %510 = vector.extract_strided_slice %492 {offsets = [0, 224], sizes = [8, 32], strides = [1, 1]} : vector<8x256xf32> to vector<8x32xf32>
    %511 = vector.extract_strided_slice %506 {offsets = [0, 32], sizes = [8, 32], strides = [1, 1]} : vector<8x64xf32> to vector<8x32xf32>
    %512 = arith.mulf %510, %511 : vector<8x32xf32>
    %c16_85 = arith.constant 16 : index
    %c0_86 = arith.constant 0 : index
    %513 = vector.load %arg8[%c16_85, %c0_86] : memref<32x32xf32, #tpu.memory_space<vmem>>, vector<8x32xf32>
    tpu.vector_store %arg8[%c16_85, %c0_86], %512 {strides = array<i32>} : memref<32x32xf32, #tpu.memory_space<vmem>>, vector<8x32xf32>,
    %514 = tpu.concatenate %509, %512 in 1 : vector<8x32xf32>, vector<8x32xf32> -> vector<8x64xf32>
    %cst_87 = arith.constant dense<0.000000e+00> : vector<8x256xf32>
    %515 = tpu.matmul %514, %29, %cst_87 {dimension_numbers = #tpu.dot_dimension_numbers<[1], [0], [0], [1], [0, 0, 1, 1], [], []>} : vector<8x64xf32>, vector<64x256xf32>, vector<8x256xf32> -> vector<8x256xf32>
    %c120_88 = arith.constant 120 : index
    %c0_89 = arith.constant 0 : index
    %516 = vector.load %arg9[%c120_88, %c0_89] : memref<128x256xf32, #tpu.memory_space<vmem>>, vector<8x256xf32>
    %517 = arith.addf %515, %516 : vector<8x256xf32>
    %518 = math.tanh %517 : vector<8x256xf32>
    %cst_90 = arith.constant 1.000000e+00 : f32
    %519 = vector.broadcast %cst_90 : f32 to vector<8x256xf32>
    %520 = arith.addf %518, %519 : vector<8x256xf32>
    %cst_91 = arith.constant 5.000000e-01 : f32
    %521 = vector.broadcast %cst_91 : f32 to vector<8x256xf32>
    %522 = arith.mulf %521, %520 : vector<8x256xf32>
    %523 = arith.select %28, %518, %522 : vector<8x256xi1>, vector<8x256xf32>
    %524 = vector.extract_strided_slice %523 {offsets = [0, 0], sizes = [8, 32], strides = [1, 1]} : vector<8x256xf32> to vector<8x32xf32>
    %525 = vector.extract_strided_slice %523 {offsets = [0, 32], sizes = [8, 32], strides = [1, 1]} : vector<8x256xf32> to vector<8x32xf32>
    %526 = vector.extract_strided_slice %523 {offsets = [0, 64], sizes = [8, 32], strides = [1, 1]} : vector<8x256xf32> to vector<8x32xf32>
    %527 = arith.mulf %525, %498 : vector<8x32xf32>
    %528 = arith.mulf %524, %526 : vector<8x32xf32>
    %529 = arith.addf %527, %528 : vector<8x32xf32>
    %530 = vector.extract_strided_slice %523 {offsets = [0, 128], sizes = [8, 32], strides = [1, 1]} : vector<8x256xf32> to vector<8x32xf32>
    %531 = vector.extract_strided_slice %523 {offsets = [0, 160], sizes = [8, 32], strides = [1, 1]} : vector<8x256xf32> to vector<8x32xf32>
    %532 = vector.extract_strided_slice %523 {offsets = [0, 192], sizes = [8, 32], strides = [1, 1]} : vector<8x256xf32> to vector<8x32xf32>
    %533 = arith.mulf %531, %504 : vector<8x32xf32>
    %534 = arith.mulf %530, %532 : vector<8x32xf32>
    %535 = arith.addf %533, %534 : vector<8x32xf32>
    %536 = tpu.concatenate %529, %535 in 1 : vector<8x32xf32>, vector<8x32xf32> -> vector<8x64xf32>
    %537 = math.tanh %536 : vector<8x64xf32>
    %538 = vector.extract_strided_slice %523 {offsets = [0, 224], sizes = [8, 32], strides = [1, 1]} : vector<8x256xf32> to vector<8x32xf32>
    %539 = vector.extract_strided_slice %537 {offsets = [0, 32], sizes = [8, 32], strides = [1, 1]} : vector<8x64xf32> to vector<8x32xf32>
    %540 = arith.mulf %538, %539 : vector<8x32xf32>
    %c24_92 = arith.constant 24 : index
    %c0_93 = arith.constant 0 : index
    %541 = vector.load %arg8[%c24_92, %c0_93] : memref<32x32xf32, #tpu.memory_space<vmem>>, vector<8x32xf32>
    tpu.vector_store %arg8[%c24_92, %c0_93], %540 {strides = array<i32>} : memref<32x32xf32, #tpu.memory_space<vmem>>, vector<8x32xf32>,
    %c0_94 = arith.constant 0 : index
    %c0_95 = arith.constant 0 : index
    %542 = vector.load %arg8[%c0_94, %c0_95] : memref<32x32xf32, #tpu.memory_space<vmem>>, vector<32x32xf32>
    %cst_96 = arith.constant 0.000000e+00 : f32
    %543 = vector.broadcast %cst_96 : f32 to vector<32x32xf32>
    %544 = arith.maximumf %542, %543 : vector<32x32xf32>
    %c0_97 = arith.constant 0 : index
    %c0_98 = arith.constant 0 : index
    %545 = vector.load %arg5[%c0_97, %c0_98] : memref<32x128xf32, #tpu.memory_space<vmem>>, vector<32x128xf32>
    %cst_99 = arith.constant dense<0.000000e+00> : vector<32x128xf32>
    %546 = tpu.matmul %544, %545, %cst_99 {dimension_numbers = #tpu.dot_dimension_numbers<[1], [0], [0], [1], [0, 0, 1, 1], [], []>} : vector<32x32xf32>, vector<32x128xf32>, vector<32x128xf32> -> vector<32x128xf32>
    %c0_100 = arith.constant 0 : index
    %c0_101 = arith.constant 0 : index
    %547 = vector.load %arg6[%c0_100, %c0_101] : memref<1x128xf32, #tpu.memory_space<vmem>>, vector<1x128xf32>
    %548 = vector.broadcast %547 : vector<1x128xf32> to vector<32x128xf32>
    %549 = arith.addf %546, %548 : vector<32x128xf32>
    %c0_102 = arith.constant 0 : index
    %c0_103 = arith.constant 0 : index
    %550 = vector.load %arg7[%c0_102, %c0_103] : memref<32x128xf32, #tpu.memory_space<vmem>>, vector<32x128xf32>
    tpu.vector_store %arg7[%c0_102, %c0_103], %549 {strides = array<i32>} : memref<32x128xf32, #tpu.memory_space<vmem>>, vector<32x128xf32>,
    return
  }
  func.func @transform_0(%arg0: i32) -> (i32, i32) {
    %c0_i32 = arith.constant 0 : i32
    %c0_i32_0 = arith.constant 0 : i32
    %c0_i32_1 = arith.constant 0 : i32
    return %c0_i32, %c0_i32_0 : i32, i32
  }
  func.func @transform_1(%arg0: i32) -> (i32, i32) {
    %c0_i32 = arith.constant 0 : i32
    %c0_i32_0 = arith.constant 0 : i32
    %c0_i32_1 = arith.constant 0 : i32
    return %c0_i32, %c0_i32_0 : i32, i32
  }
  func.func @transform_2(%arg0: i32) -> (i32, i32) {
    %c0_i32 = arith.constant 0 : i32
    %c0_i32_0 = arith.constant 0 : i32
    %c0_i32_1 = arith.constant 0 : i32
    return %c0_i32, %c0_i32_0 : i32, i32
  }
  func.func @transform_3(%arg0: i32) -> (i32, i32) {
    %c0_i32 = arith.constant 0 : i32
    %c0_i32_0 = arith.constant 0 : i32
    %c0_i32_1 = arith.constant 0 : i32
    return %c0_i32, %c0_i32_0 : i32, i32
  }
  func.func @transform_4(%arg0: i32) -> (i32, i32) {
    %c0_i32 = arith.constant 0 : i32
    %c0_i32_0 = arith.constant 0 : i32
    %c0_i32_1 = arith.constant 0 : i32
    return %c0_i32, %c0_i32_0 : i32, i32
  }
  func.func @transform_5(%arg0: i32) -> (i32, i32) {
    %c0_i32 = arith.constant 0 : i32
    %c0_i32_0 = arith.constant 0 : i32
    %c0_i32_1 = arith.constant 0 : i32
    return %c0_i32, %c0_i32_0 : i32, i32
  }
  func.func @transform_6(%arg0: i32) -> (i32, i32) {
    %c0_i32 = arith.constant 0 : i32
    %c0_i32_0 = arith.constant 0 : i32
    %c0_i32_1 = arith.constant 0 : i32
    return %c0_i32, %c0_i32_0 : i32, i32
  }
}

</mosaic_0001>

<llo_original>
// kernel: lstm_model_forward.1
$region0: #{lstm_model_forward.1}
  #allocation0 [shape = 'u32[]', space=smem, size = 0x4, offset = 0x4, fixed_abs, tag = 'smem constant byte address 0x4 - core index']
  #allocation1 [shape = 'u32[144,128]{1,0:T(1,128)}', space=vmem, size = 0x12000, scoped, tag = 'internal scratch']
  #allocation2 [shape = 'f32[32,32]{1,0:T(8,128)}', space=vmem, size = 0x4000, scoped, tag = 'scratch operand']
  #allocation3 [shape = 'f32[128,256]{1,0:T(8,128)}', space=vmem, size = 0x20000, scoped, tag = 'scratch operand']
  %s0 = inlined_call_operand.vmem [shape: f32[128,8], index: 0, kind: input, shape index: {}]
  %s1 = inlined_call_operand.hbm [shape: f32[8,256], index: 1, kind: input, shape index: {}]
  %s2 = inlined_call_operand.vmem [shape: f32[1,256], index: 2, kind: input, shape index: {}]
  %s3 = inlined_call_operand.vmem [shape: f32[64,256], index: 3, kind: input, shape index: {}]
  %s4 = inlined_call_operand.vmem [shape: f32[32,128], index: 4, kind: input, shape index: {}]
  %s5 = inlined_call_operand.vmem [shape: f32[1,128], index: 5, kind: input, shape index: {}]
  %s6 = inlined_call_operand.vmem [shape: f32[32,128], index: 6, kind: output, shape index: {}]
  %s7 = sld [smem:[#allocation0]]
  $region38: #{lstm_model_forward.1} parent=0
    _
  %s9 = ssub.s32 1, %s7
  %s10 = scalar_select 0, %s9, %s7
  $region1: #{lstm_model_forward.1} parent=0
    #allocation4 [shape = 'u8[8192]{0}', space=vmem, size = 0x2000, scoped, tag = 'input window, operand 1, single buffered']
    #allocation5 [shape = 's32[1]{0}', space=sflag, size = 0x4, scoped, tag = 'scoped memory for lstm_model_forward.1']
    %11 = vsyncpa [#allocation5], 0
    // Predicated region
    $region2: #{lstm_model_forward.1} parent=1 // pred_check
      _
    $region3: #{lstm_model_forward.1} parent=1 // pred_check_branch
      %13 = sbr.rel (0) target = $region5
    $region4: #{lstm_model_forward.1} parent=1 // pred_region
      _
    $region5: #{lstm_model_forward.1} parent=1 // pred_fallthru
      _
    // Predicated region
    $region6: #{lstm_model_forward.1} parent=1 // pred_check
      _
    $region7: #{lstm_model_forward.1} parent=1 // pred_check_branch
      %15 = sbr.rel (0) target = $region9
    $region8: #{lstm_model_forward.1} parent=1 // pred_region
      %s17 = ssub.s32 256, 256
      %18 = vsyncadd [#allocation5], %s17
      %s20 = sshll.u32 [#allocation4], 4
      %s21 = int_to_ptr.vmem [resolvable:$true] %s20
      %23 = dma.hbm_to_vmem [thread:$0]  %s1, 256, %s21, [#allocation5]
    $region9: #{lstm_model_forward.1} parent=1 // pred_fallthru
      _
    // Predicated region
    $region10: #{lstm_model_forward.1} parent=1 // pred_check
      _
    $region11: #{lstm_model_forward.1} parent=1 // pred_check_branch
      %25 = sbr.rel (0) target = $region13
    $region12: #{lstm_model_forward.1} parent=1 // pred_region
      _
    $region13: #{lstm_model_forward.1} parent=1 // pred_fallthru
      _
    // Predicated region
    $region14: #{lstm_model_forward.1} parent=1 // pred_check
      _
    $region15: #{lstm_model_forward.1} parent=1 // pred_check_branch
      %27 = sbr.rel (0) target = $region17
    $region16: #{lstm_model_forward.1} parent=1 // pred_region
      _
    $region17: #{lstm_model_forward.1} parent=1 // pred_fallthru
      _
    // Predicated region
    $region18: #{lstm_model_forward.1} parent=1 // pred_check
      _
    $region19: #{lstm_model_forward.1} parent=1 // pred_check_branch
      %29 = sbr.rel (0) target = $region21
    $region20: #{lstm_model_forward.1} parent=1 // pred_region
      _
    $region21: #{lstm_model_forward.1} parent=1 // pred_fallthru
      _
    // Predicated region
    $region22: #{lstm_model_forward.1} parent=1 // pred_check
      _
    $region23: #{lstm_model_forward.1} parent=1 // pred_check_branch
      %31 = sbr.rel (0) target = $region25
    $region24: #{lstm_model_forward.1} parent=1 // pred_region
      _
    $region25: #{lstm_model_forward.1} parent=1 // pred_fallthru
      _
    // Predicated region
    $region26: #{lstm_model_forward.1} parent=1 // pred_check
      _
    $region27: #{lstm_model_forward.1} parent=1 // pred_check_branch
      %33 = sbr.rel (0) target = $region29
    $region28: #{lstm_model_forward.1} parent=1 // pred_region
      %34 = dma.done [#allocation5], 256
    $region29: #{lstm_model_forward.1} parent=1 // pred_fallthru
      _
    %v35 = vld [vmem:[%s0] sm:$0xff]
    %v36 = vld [vmem:[%s0 + $0x8] sm:$0xff]
    %v37 = vld [vmem:[%s0 + $0x10] sm:$0xff]
    %v38 = vld [vmem:[%s0 + $0x18] sm:$0xff]
    %v39 = vld [vmem:[%s0 + $0x20] sm:$0xff]
    %v40 = vld [vmem:[%s0 + $0x28] sm:$0xff]
    %v41 = vld [vmem:[%s0 + $0x30] sm:$0xff]
    %v42 = vld [vmem:[%s0 + $0x38] sm:$0xff]
    %v43 = vld [vmem:[%s0 + $0x40] sm:$0xff]
    %v44 = vld [vmem:[%s0 + $0x48] sm:$0xff]
    %v45 = vld [vmem:[%s0 + $0x50] sm:$0xff]
    %v46 = vld [vmem:[%s0 + $0x58] sm:$0xff]
    %v47 = vld [vmem:[%s0 + $0x60] sm:$0xff]
    %v48 = vld [vmem:[%s0 + $0x68] sm:$0xff]
    %v49 = vld [vmem:[%s0 + $0x70] sm:$0xff]
    %v50 = vld [vmem:[%s0 + $0x78] sm:$0xff]
    %v51 = vld [vmem:[#allocation4] sm:$0xff]
    %v52 = vld [vmem:[#allocation4 + $0x8] sm:$0xff]
    %v53 = vld [vmem:[%s2] sm:$0x3]
    %v55 = vlaneseq
    %v56 = vshrl.u32 %v55, 7
    %v57 = vsub.s32 0, %v56
    %v58 = vrot.slane %v53, %v57
    %v59 = vlaneseq
    %v60 = vshrl.u32 %v59, 7
    %v61 = vsub.s32 1, %v60
    %v62 = vrot.slane %v53, %v61
    %vm65 = vcmask 64512
    %v67 = vsel %vm65, %v35, 0
    %v70 = vsel %vm65, %v36, 0
    %v73 = vsel %vm65, %v37, 0
    %v76 = vsel %vm65, %v38, 0
    %v79 = vsel %vm65, %v39, 0
    %v82 = vsel %vm65, %v40, 0
    %v85 = vsel %vm65, %v41, 0
    %v88 = vsel %vm65, %v42, 0
    %v91 = vsel %vm65, %v43, 0
    %v94 = vsel %vm65, %v44, 0
    %v97 = vsel %vm65, %v45, 0
    %v100 = vsel %vm65, %v46, 0
    %v103 = vsel %vm65, %v47, 0
    %v106 = vsel %vm65, %v48, 0
    %v109 = vsel %vm65, %v49, 0
    %v112 = vsel %vm65, %v50, 0
    %114 = vmatprep.subr.mxu0 0.0
    %115 = vmatpush1.msra.mxu0 0.0
    %116 = vmatprep.subr.mxu0 0.0
    %117 = vmatpush1.msra.mxu0 0.0
    %118 = vmatprep.subr.mxu0 0.0
    %119 = vmatpush1.msra.mxu0 0.0
    %120 = vmatprep.subr.mxu0 0.0
    %121 = vmatpush1.msra.mxu0 0.0
    %122 = vmatprep.subr.mxu0 0.0
    %123 = vmatpush1.msra.mxu0 0.0
    %124 = vmatprep.subr.mxu0 0.0
    %125 = vmatpush1.msra.mxu0 0.0
    %126 = vmatprep.subr.mxu0 0.0
    %127 = vmatpush1.msra.mxu0 0.0
    %128 = vmatprep.subr.mxu0 0.0
    %129 = vmatpush1.msra.mxu0 0.0
    %130 = vmatprep.subr.mxu0 0.0
    %131 = vmatpush1.msra.mxu0 0.0
    %132 = vmatprep.subr.mxu0 0.0
    %133 = vmatpush1.msra.mxu0 0.0
    %134 = vmatprep.subr.mxu0 0.0
    %135 = vmatpush1.msra.mxu0 0.0
    %136 = vmatprep.subr.mxu0 0.0
    %137 = vmatpush1.msra.mxu0 0.0
    %138 = vmatprep.subr.mxu0 0.0
    %139 = vmatpush1.msra.mxu0 0.0
    %140 = vmatprep.subr.mxu0 0.0
    %141 = vmatpush1.msra.mxu0 0.0
    %142 = vmatprep.subr.mxu0 0.0
    %143 = vmatpush1.msra.mxu0 0.0
    %144 = vmatprep.subr.mxu0 %v52
    %145 = vmatpush1.msra.mxu0 %v51
    %146 = vmatprep.subr.mxu0 0.0
    %147 = vmatpush2.msra.mxu0 0.0
    %148 = vmatprep.subr.mxu0 0.0
    %149 = vmatpush2.msra.mxu0 0.0
    %150 = vmatprep.subr.mxu0 0.0
    %151 = vmatpush2.msra.mxu0 0.0
    %152 = vmatprep.subr.mxu0 0.0
    %153 = vmatpush2.msra.mxu0 0.0
    %154 = vmatprep.subr.mxu0 0.0
    %155 = vmatpush2.msra.mxu0 0.0
    %156 = vmatprep.subr.mxu0 0.0
    %157 = vmatpush2.msra.mxu0 0.0
    %158 = vmatprep.subr.mxu0 0.0
    %159 = vmatpush2.msra.mxu0 0.0
    %160 = vmatprep.subr.mxu0 0.0
    %161 = vmatpush2.msra.mxu0 0.0
    %162 = vmatprep.subr.mxu0 0.0
    %163 = vmatpush2.msra.mxu0 0.0
    %164 = vmatprep.subr.mxu0 0.0
    %165 = vmatpush2.msra.mxu0 0.0
    %166 = vmatprep.subr.mxu0 0.0
    %167 = vmatpush2.msra.mxu0 0.0
    %168 = vmatprep.subr.mxu0 0.0
    %169 = vmatpush2.msra.mxu0 0.0
    %170 = vmatprep.subr.mxu0 0.0
    %171 = vmatpush2.msra.mxu0 0.0
    %172 = vmatprep.subr.mxu0 0.0
    %173 = vmatpush2.msra.mxu0 0.0
    %174 = vmatprep.subr.mxu0 0.0
    %175 = vmatpush2.msra.mxu0 0.0
    %176 = vmatprep.subr.mxu0 0.0
    %177 = vmatpush2.msra.mxu0 0.0
    %178 = vmatprep.mubr.f32.mxu0 0.0
    %179 = vmatmul.mubr.f32.gmra.mxu0 %v67
    %v180 = vpop.f32.mrf.mxu0
    %v181 = vadd.f32 %v58, %v180
    %v182 = vpop.f32.mrf.mxu0
    %v183 = vadd.f32 %v62, %v182
    %184 = vmatprep.mubr.f32.mxu0 0.0
    %185 = vmatmul.mubr.f32.gmra.mxu0 %v70
    %v186 = vpop.f32.mrf.mxu0
    %v187 = vadd.f32 %v58, %v186
    %v188 = vpop.f32.mrf.mxu0
    %v189 = vadd.f32 %v62, %v188
    %190 = vmatprep.mubr.f32.mxu0 0.0
    %191 = vmatmul.mubr.f32.gmra.mxu0 %v73
    %v192 = vpop.f32.mrf.mxu0
    %v193 = vadd.f32 %v58, %v192
    %v194 = vpop.f32.mrf.mxu0
    %v195 = vadd.f32 %v62, %v194
    %196 = vmatprep.mubr.f32.mxu0 0.0
    %197 = vmatmul.mubr.f32.gmra.mxu0 %v76
    %v198 = vpop.f32.mrf.mxu0
    %v199 = vadd.f32 %v58, %v198
    %v200 = vpop.f32.mrf.mxu0
    %v201 = vadd.f32 %v62, %v200
    %202 = vmatprep.mubr.f32.mxu0 0.0
    %203 = vmatmul.mubr.f32.gmra.mxu0 %v79
    %v204 = vpop.f32.mrf.mxu0
    %v205 = vadd.f32 %v58, %v204
    %v206 = vpop.f32.mrf.mxu0
    %v207 = vadd.f32 %v62, %v206
    %208 = vmatprep.mubr.f32.mxu0 0.0
    %209 = vmatmul.mubr.f32.gmra.mxu0 %v82
    %v210 = vpop.f32.mrf.mxu0
    %v211 = vadd.f32 %v58, %v210
    %v212 = vpop.f32.mrf.mxu0
    %v213 = vadd.f32 %v62, %v212
    %214 = vmatprep.mubr.f32.mxu0 0.0
    %215 = vmatmul.mubr.f32.gmra.mxu0 %v85
    %v216 = vpop.f32.mrf.mxu0
    %v217 = vadd.f32 %v58, %v216
    %v218 = vpop.f32.mrf.mxu0
    %v219 = vadd.f32 %v62, %v218
    %220 = vmatprep.mubr.f32.mxu0 0.0
    %221 = vmatmul.mubr.f32.gmra.mxu0 %v88
    %v222 = vpop.f32.mrf.mxu0
    %v223 = vadd.f32 %v58, %v222
    %v224 = vpop.f32.mrf.mxu0
    %v225 = vadd.f32 %v62, %v224
    %226 = vmatprep.mubr.f32.mxu0 0.0
    %227 = vmatmul.mubr.f32.gmra.mxu0 %v91
    %v228 = vpop.f32.mrf.mxu0
    %v229 = vadd.f32 %v58, %v228
    %v230 = vpop.f32.mrf.mxu0
    %v231 = vadd.f32 %v62, %v230
    %232 = vmatprep.mubr.f32.mxu0 0.0
    %233 = vmatmul.mubr.f32.gmra.mxu0 %v94
    %v234 = vpop.f32.mrf.mxu0
    %v235 = vadd.f32 %v58, %v234
    %v236 = vpop.f32.mrf.mxu0
    %v237 = vadd.f32 %v62, %v236
    %238 = vmatprep.mubr.f32.mxu0 0.0
    %239 = vmatmul.mubr.f32.gmra.mxu0 %v97
    %v240 = vpop.f32.mrf.mxu0
    %v241 = vadd.f32 %v58, %v240
    %v242 = vpop.f32.mrf.mxu0
    %v243 = vadd.f32 %v62, %v242
    %244 = vmatprep.mubr.f32.mxu0 0.0
    %245 = vmatmul.mubr.f32.gmra.mxu0 %v100
    %v246 = vpop.f32.mrf.mxu0
    %v247 = vadd.f32 %v58, %v246
    %v248 = vpop.f32.mrf.mxu0
    %v249 = vadd.f32 %v62, %v248
    %250 = vmatprep.mubr.f32.mxu0 0.0
    %251 = vmatmul.mubr.f32.gmra.mxu0 %v103
    %v252 = vpop.f32.mrf.mxu0
    %v253 = vadd.f32 %v58, %v252
    %v254 = vpop.f32.mrf.mxu0
    %v255 = vadd.f32 %v62, %v254
    %256 = vmatprep.mubr.f32.mxu0 0.0
    %257 = vmatmul.mubr.f32.gmra.mxu0 %v106
    %v258 = vpop.f32.mrf.mxu0
    %v259 = vadd.f32 %v58, %v258
    %v260 = vpop.f32.mrf.mxu0
    %v261 = vadd.f32 %v62, %v260
    %262 = vmatprep.mubr.f32.mxu0 0.0
    %263 = vmatmul.mubr.f32.gmra.mxu0 %v109
    %v264 = vpop.f32.mrf.mxu0
    %v265 = vadd.f32 %v58, %v264
    %v266 = vpop.f32.mrf.mxu0
    %v267 = vadd.f32 %v62, %v266
    %268 = vmatprep.mubr.f32.mxu0 0.0
    %269 = vmatmul.mubr.f32.gmra.mxu0 %v112
    %v270 = vpop.f32.mrf.mxu0
    %v271 = vadd.f32 %v58, %v270
    %v272 = vpop.f32.mrf.mxu0
    %v273 = vadd.f32 %v62, %v272
    %274 = vdwg.mxu0
    %275 = vst [vmem:[#allocation3] sm:$0xff] %v181
    %276 = vst [vmem:[#allocation3 + $0x8] sm:$0xff] %v183
    %277 = vst [vmem:[#allocation3 + $0x10] sm:$0xff] %v187
    %278 = vst [vmem:[#allocation3 + $0x18] sm:$0xff] %v189
    %279 = vst [vmem:[#allocation3 + $0x20] sm:$0xff] %v193
    %280 = vst [vmem:[#allocation3 + $0x28] sm:$0xff] %v195
    %281 = vst [vmem:[#allocation3 + $0x30] sm:$0xff] %v199
    %282 = vst [vmem:[#allocation3 + $0x38] sm:$0xff] %v201
    %283 = vst [vmem:[#allocation3 + $0x40] sm:$0xff] %v205
    %284 = vst [vmem:[#allocation3 + $0x48] sm:$0xff] %v207
    %285 = vst [vmem:[#allocation3 + $0x50] sm:$0xff] %v211
    %286 = vst [vmem:[#allocation3 + $0x58] sm:$0xff] %v213
    %287 = vst [vmem:[#allocation3 + $0x60] sm:$0xff] %v217
    %288 = vst [vmem:[#allocation3 + $0x68] sm:$0xff] %v219
    %289 = vst [vmem:[#allocation3 + $0x70] sm:$0xff] %v223
    %290 = vst [vmem:[#allocation3 + $0x78] sm:$0xff] %v225
    %291 = vst [vmem:[#allocation3 + $0x80] sm:$0xff] %v229
    %292 = vst [vmem:[#allocation3 + $0x88] sm:$0xff] %v231
    %293 = vst [vmem:[#allocation3 + $0x90] sm:$0xff] %v235
    %294 = vst [vmem:[#allocation3 + $0x98] sm:$0xff] %v237
    %295 = vst [vmem:[#allocation3 + $0xa0] sm:$0xff] %v241
    %296 = vst [vmem:[#allocation3 + $0xa8] sm:$0xff] %v243
    %297 = vst [vmem:[#allocation3 + $0xb0] sm:$0xff] %v247
    %298 = vst [vmem:[#allocation3 + $0xb8] sm:$0xff] %v249
    %299 = vst [vmem:[#allocation3 + $0xc0] sm:$0xff] %v253
    %300 = vst [vmem:[#allocation3 + $0xc8] sm:$0xff] %v255
    %301 = vst [vmem:[#allocation3 + $0xd0] sm:$0xff] %v259
    %302 = vst [vmem:[#allocation3 + $0xd8] sm:$0xff] %v261
    %303 = vst [vmem:[#allocation3 + $0xe0] sm:$0xff] %v265
    %304 = vst [vmem:[#allocation3 + $0xe8] sm:$0xff] %v267
    %305 = vst [vmem:[#allocation3 + $0xf0] sm:$0xff] %v271
    %306 = vst [vmem:[#allocation3 + $0xf8] sm:$0xff] %v273
    %v307 = vlaneseq
    %v308 = vand.u32 %v307, 127
    %v309 = vadd.s32 %v308, 128
    %vm310 = vcmp.lt.s32.totalorder %v308, 0
    %v311 = vsub.s32 0, %v308
    %v312 = vsel %vm310, %v311, %v308
    %v313 = vshrl.u32 %v312, 7
    %v314 = vand.u32 %v312, 127
    %v315 = vsub.s32 0, %v314
    %v316 = vsel %vm310, %v315, %v314
    %vm317 = vcmp.lt.s32.totalorder %v309, 0
    %v318 = vsub.s32 0, %v309
    %v319 = vsel %vm317, %v318, %v309
    %v320 = vshrl.u32 %v319, 7
    %v321 = vand.u32 %v319, 127
    %v322 = vsub.s32 0, %v321
    %v323 = vsel %vm317, %v322, %v321
    %vm324 = vcmp.ne.s32.totalorder %v316, 0
    %vm325 = vcmp.ne.s32.totalorder %v323, 0
    %vm326 = vcmp.lt.s32.totalorder %v316, 0
    %vm327 = vcmp.lt.s32.totalorder %v323, 0
    %vm328 = vmand %vm326, %vm324
    %vm329 = vmand %vm327, %vm325
    %v330 = vadd.s32 %v316, 128
    %v331 = vadd.s32 %v323, 128
    %v332 = vsel %vm328, %v330, %v316
    %v333 = vsel %vm329, %v331, %v323
    %vm334 = vcmp.ge.s32.totalorder %v332, 64
    %vm335 = vcmp.ge.s32.totalorder %v333, 64
    %vm336 = vcmp.lt.s32.totalorder %v332, 96
    %vm337 = vcmp.lt.s32.totalorder %v333, 96
    %vm338 = vmand %vm334, %vm336
    %vm339 = vmand %vm335, %vm337
    %v340 = vld [vmem:[%s3] sm:$0xff]
    %v341 = vld [vmem:[%s3 + $0x8] sm:$0xff]
    %v342 = vld [vmem:[%s3 + $0x10] sm:$0xff]
    %v343 = vld [vmem:[%s3 + $0x18] sm:$0xff]
    %v344 = vld [vmem:[%s3 + $0x20] sm:$0xff]
    %v345 = vld [vmem:[%s3 + $0x28] sm:$0xff]
    %v346 = vld [vmem:[%s3 + $0x30] sm:$0xff]
    %v347 = vld [vmem:[%s3 + $0x38] sm:$0xff]
    %v348 = vld [vmem:[%s3 + $0x40] sm:$0xff]
    %v349 = vld [vmem:[%s3 + $0x48] sm:$0xff]
    %v350 = vld [vmem:[%s3 + $0x50] sm:$0xff]
    %v351 = vld [vmem:[%s3 + $0x58] sm:$0xff]
    %v352 = vld [vmem:[%s3 + $0x60] sm:$0xff]
    %v353 = vld [vmem:[%s3 + $0x68] sm:$0xff]
    %v354 = vld [vmem:[%s3 + $0x70] sm:$0xff]
    %v355 = vld [vmem:[%s3 + $0x78] sm:$0xff]
    %v356 = vld [vmem:[#allocation3] sm:$0xff]
    %v357 = vld [vmem:[#allocation3 + $0x8] sm:$0xff]
    %vm358 = vcmask 523264
    %v360 = vsel %vm358, 0.0, 0
    %362 = vmatprep.subr.mxu0 0.0
    %363 = vmatpush1.msra.mxu0 0.0
    %364 = vmatprep.subr.mxu0 0.0
    %365 = vmatpush1.msra.mxu0 0.0
    %366 = vmatprep.subr.mxu0 0.0
    %367 = vmatpush1.msra.mxu0 0.0
    %368 = vmatprep.subr.mxu0 0.0
    %369 = vmatpush1.msra.mxu0 0.0
    %370 = vmatprep.subr.mxu0 0.0
    %371 = vmatpush1.msra.mxu0 0.0
    %372 = vmatprep.subr.mxu0 0.0
    %373 = vmatpush1.msra.mxu0 0.0
    %374 = vmatprep.subr.mxu0 0.0
    %375 = vmatpush1.msra.mxu0 0.0
    %376 = vmatprep.subr.mxu0 0.0
    %377 = vmatpush1.msra.mxu0 0.0
    %378 = vmatprep.subr.mxu0 %v355
    %379 = vmatpush1.msra.mxu0 %v354
    %380 = vmatprep.subr.mxu0 %v353
    %381 = vmatpush1.msra.mxu0 %v352
    %382 = vmatprep.subr.mxu0 %v351
    %383 = vmatpush1.msra.mxu0 %v350
    %384 = vmatprep.subr.mxu0 %v349
    %385 = vmatpush1.msra.mxu0 %v348
    %386 = vmatprep.subr.mxu0 %v347
    %387 = vmatpush1.msra.mxu0 %v346
    %388 = vmatprep.subr.mxu0 %v345
    %389 = vmatpush1.msra.mxu0 %v344
    %390 = vmatprep.subr.mxu0 %v343
    %391 = vmatpush1.msra.mxu0 %v342
    %392 = vmatprep.subr.mxu0 %v341
    %393 = vmatpush1.msra.mxu0 %v340
    %394 = vmatprep.subr.mxu0 0.0
    %395 = vmatpush2.msra.mxu0 0.0
    %396 = vmatprep.subr.mxu0 0.0
    %397 = vmatpush2.msra.mxu0 0.0
    %398 = vmatprep.subr.mxu0 0.0
    %399 = vmatpush2.msra.mxu0 0.0
    %400 = vmatprep.subr.mxu0 0.0
    %401 = vmatpush2.msra.mxu0 0.0
    %402 = vmatprep.subr.mxu0 0.0
    %403 = vmatpush2.msra.mxu0 0.0
    %404 = vmatprep.subr.mxu0 0.0
    %405 = vmatpush2.msra.mxu0 0.0
    %406 = vmatprep.subr.mxu0 0.0
    %407 = vmatpush2.msra.mxu0 0.0
    %408 = vmatprep.subr.mxu0 0.0
    %409 = vmatpush2.msra.mxu0 0.0
    %410 = vmatprep.subr.mxu0 0.0
    %411 = vmatpush2.msra.mxu0 0.0
    %412 = vmatprep.subr.mxu0 0.0
    %413 = vmatpush2.msra.mxu0 0.0
    %414 = vmatprep.subr.mxu0 0.0
    %415 = vmatpush2.msra.mxu0 0.0
    %416 = vmatprep.subr.mxu0 0.0
    %417 = vmatpush2.msra.mxu0 0.0
    %418 = vmatprep.subr.mxu0 0.0
    %419 = vmatpush2.msra.mxu0 0.0
    %420 = vmatprep.subr.mxu0 0.0
    %421 = vmatpush2.msra.mxu0 0.0
    %422 = vmatprep.subr.mxu0 0.0
    %423 = vmatpush2.msra.mxu0 0.0
    %424 = vmatprep.subr.mxu0 0.0
    %425 = vmatpush2.msra.mxu0 0.0
    %426 = vmatprep.mubr.f32.mxu0 0.0
    %427 = vmatmul.mubr.f32.gmra.mxu0 %v360
    %v428 = vpop.f32.mrf.mxu0
    %v429 = vadd.f32 %v356, %v428
    %v430 = vpop.f32.mrf.mxu0
    %v431 = vadd.f32 %v357, %v430
    %432 = vdwg.mxu0
    %v433 = vtanh.pop %v429
    %v434 = vtanh.pop %v431
    %v435 = vadd.f32 %v433, 1.0
    %v436 = vadd.f32 %v434, 1.0
    %v437 = vmul.f32 %v435, 0.5
    %v438 = vmul.f32 %v436, 0.5
    %v439 = vsel %vm338, %v433, %v437
    %v440 = vsel %vm339, %v434, %v438
    %v441 = vmul.f32 %v439, 0.0
    %443 = vrot.lane.b32.xlu0 %v439, 64
    %v444 = vpop.permute.xlu0 %443
    %v446 = vmul.f32 %v439, %v444
    %448 = vrot.lane.b32.xlu0 %v446, 32
    %v449 = vpop.permute.xlu0 %448
    %v451 = vadd.f32 %v441, %v449
    %v452 = vmul.f32 %v440, 0.0
    %454 = vrot.lane.b32.xlu0 %v440, 64
    %v455 = vpop.permute.xlu0 %454
    %v457 = vmul.f32 %v440, %v455
    %459 = vrot.lane.b32.xlu0 %v457, 32
    %v460 = vpop.permute.xlu0 %459
    %v462 = vadd.f32 %v452, %v460
    %464 = vrot.lane.b32.xlu0 %v451, 96
    %v465 = vpop.permute.xlu0 %464
    %vm467 = vcmask 261120
    %v468 = vsel %vm467, %v465, %v462
    %v469 = vtanh.pop %v468
    %471 = vrot.lane.b32.xlu0 %v469, 96
    %v472 = vpop.permute.xlu0 %471
    %v474 = vmul.f32 %v439, %v472
    %476 = vrot.lane.b32.xlu0 %v474, 32
    %v477 = vpop.permute.xlu0 %476
    %v479 = vsel %vm467, %v477, 0.0
    %v480 = vld [vmem:[#allocation3 + $0x10] sm:$0xff]
    %v481 = vld [vmem:[#allocation3 + $0x18] sm:$0xff]
    %v483 = vsel %vm358, %v479, 0
    %485 = vmatprep.subr.mxu0 0.0
    %486 = vmatpush1.msra.mxu0 0.0
    %487 = vmatprep.subr.mxu0 0.0
    %488 = vmatpush1.msra.mxu0 0.0
    %489 = vmatprep.subr.mxu0 0.0
    %490 = vmatpush1.msra.mxu0 0.0
    %491 = vmatprep.subr.mxu0 0.0
    %492 = vmatpush1.msra.mxu0 0.0
    %493 = vmatprep.subr.mxu0 0.0
    %494 = vmatpush1.msra.mxu0 0.0
    %495 = vmatprep.subr.mxu0 0.0
    %496 = vmatpush1.msra.mxu0 0.0
    %497 = vmatprep.subr.mxu0 0.0
    %498 = vmatpush1.msra.mxu0 0.0
    %499 = vmatprep.subr.mxu0 0.0
    %500 = vmatpush1.msra.mxu0 0.0
    %501 = vmatprep.subr.mxu0 %v355
    %502 = vmatpush1.msra.mxu0 %v354
    %503 = vmatprep.subr.mxu0 %v353
    %504 = vmatpush1.msra.mxu0 %v352
    %505 = vmatprep.subr.mxu0 %v351
    %506 = vmatpush1.msra.mxu0 %v350
    %507 = vmatprep.subr.mxu0 %v349
    %508 = vmatpush1.msra.mxu0 %v348
    %509 = vmatprep.subr.mxu0 %v347
    %510 = vmatpush1.msra.mxu0 %v346
    %511 = vmatprep.subr.mxu0 %v345
    %512 = vmatpush1.msra.mxu0 %v344
    %513 = vmatprep.subr.mxu0 %v343
    %514 = vmatpush1.msra.mxu0 %v342
    %515 = vmatprep.subr.mxu0 %v341
    %516 = vmatpush1.msra.mxu0 %v340
    %517 = vmatprep.subr.mxu0 0.0
    %518 = vmatpush2.msra.mxu0 0.0
    %519 = vmatprep.subr.mxu0 0.0
    %520 = vmatpush2.msra.mxu0 0.0
    %521 = vmatprep.subr.mxu0 0.0
    %522 = vmatpush2.msra.mxu0 0.0
    %523 = vmatprep.subr.mxu0 0.0
    %524 = vmatpush2.msra.mxu0 0.0
    %525 = vmatprep.subr.mxu0 0.0
    %526 = vmatpush2.msra.mxu0 0.0
    %527 = vmatprep.subr.mxu0 0.0
    %528 = vmatpush2.msra.mxu0 0.0
    %529 = vmatprep.subr.mxu0 0.0
    %530 = vmatpush2.msra.mxu0 0.0
    %531 = vmatprep.subr.mxu0 0.0
    %532 = vmatpush2.msra.mxu0 0.0
    %533 = vmatprep.subr.mxu0 0.0
    %534 = vmatpush2.msra.mxu0 0.0
    %535 = vmatprep.subr.mxu0 0.0
    %536 = vmatpush2.msra.mxu0 0.0
    %537 = vmatprep.subr.mxu0 0.0
    %538 = vmatpush2.msra.mxu0 0.0
    %539 = vmatprep.subr.mxu0 0.0
    %540 = vmatpush2.msra.mxu0 0.0
    %541 = vmatprep.subr.mxu0 0.0
    %542 = vmatpush2.msra.mxu0 0.0
    %543 = vmatprep.subr.mxu0 0.0
    %544 = vmatpush2.msra.mxu0 0.0
    %545 = vmatprep.subr.mxu0 0.0
    %546 = vmatpush2.msra.mxu0 0.0
    %547 = vmatprep.subr.mxu0 0.0
    %548 = vmatpush2.msra.mxu0 0.0
    %549 = vmatprep.mubr.f32.mxu0 0.0
    %550 = vmatmul.mubr.f32.gmra.mxu0 %v483
    %v551 = vpop.f32.mrf.mxu0
    %v552 = vadd.f32 %v480, %v551
    %v553 = vpop.f32.mrf.mxu0
    %v554 = vadd.f32 %v481, %v553
    %555 = vdwg.mxu0
    %v556 = vtanh.pop %v552
    %v557 = vtanh.pop %v554
    %v558 = vadd.f32 %v556, 1.0
    %v559 = vadd.f32 %v557, 1.0
    %v560 = vmul.f32 %v558, 0.5
    %v561 = vmul.f32 %v559, 0.5
    %v562 = vsel %vm338, %v556, %v560
    %v563 = vsel %vm339, %v557, %v561
    %v564 = vmul.f32 %v562, %v451
    %566 = vrot.lane.b32.xlu0 %v562, 64
    %v567 = vpop.permute.xlu0 %566
    %v569 = vmul.f32 %v562, %v567
    %571 = vrot.lane.b32.xlu0 %v569, 32
    %v572 = vpop.permute.xlu0 %571
    %v574 = vadd.f32 %v564, %v572
    %v575 = vmul.f32 %v563, 0.0
    %577 = vrot.lane.b32.xlu0 %v563, 64
    %v578 = vpop.permute.xlu0 %577
    %v580 = vmul.f32 %v563, %v578
    %582 = vrot.lane.b32.xlu0 %v580, 32
    %v583 = vpop.permute.xlu0 %582
    %v585 = vadd.f32 %v575, %v583
    %587 = vrot.lane.b32.xlu0 %v574, 96
    %v588 = vpop.permute.xlu0 %587
    %v590 = vsel %vm467, %v588, %v585
    %v591 = vtanh.pop %v590
    %593 = vrot.lane.b32.xlu0 %v591, 96
    %v594 = vpop.permute.xlu0 %593
    %v596 = vmul.f32 %v562, %v594
    %597 = vrot.lane.b32.xlu0 %v591, 64
    %v598 = vpop.permute.xlu0 %597
    %v600 = vmul.f32 %v563, %v598
    %602 = vrot.lane.b32.xlu0 %v596, 32
    %v603 = vpop.permute.xlu0 %602
    %606 = vrot.lane.b32.xlu0 %v600, 64
    %v607 = vpop.permute.xlu0 %606
    %v609 = vsel %vm467, %v603, %v607
    %v610 = vld [vmem:[#allocation3 + $0x20] sm:$0xff]
    %v611 = vld [vmem:[#allocation3 + $0x28] sm:$0xff]
    %v613 = vsel %vm358, %v609, 0
    %615 = vmatprep.subr.mxu0 0.0
    %616 = vmatpush1.msra.mxu0 0.0
    %617 = vmatprep.subr.mxu0 0.0
    %618 = vmatpush1.msra.mxu0 0.0
    %619 = vmatprep.subr.mxu0 0.0
    %620 = vmatpush1.msra.mxu0 0.0
    %621 = vmatprep.subr.mxu0 0.0
    %622 = vmatpush1.msra.mxu0 0.0
    %623 = vmatprep.subr.mxu0 0.0
    %624 = vmatpush1.msra.mxu0 0.0
    %625 = vmatprep.subr.mxu0 0.0
    %626 = vmatpush1.msra.mxu0 0.0
    %627 = vmatprep.subr.mxu0 0.0
    %628 = vmatpush1.msra.mxu0 0.0
    %629 = vmatprep.subr.mxu0 0.0
    %630 = vmatpush1.msra.mxu0 0.0
    %631 = vmatprep.subr.mxu0 %v355
    %632 = vmatpush1.msra.mxu0 %v354
    %633 = vmatprep.subr.mxu0 %v353
    %634 = vmatpush1.msra.mxu0 %v352
    %635 = vmatprep.subr.mxu0 %v351
    %636 = vmatpush1.msra.mxu0 %v350
    %637 = vmatprep.subr.mxu0 %v349
    %638 = vmatpush1.msra.mxu0 %v348
    %639 = vmatprep.subr.mxu0 %v347
    %640 = vmatpush1.msra.mxu0 %v346
    %641 = vmatprep.subr.mxu0 %v345
    %642 = vmatpush1.msra.mxu0 %v344
    %643 = vmatprep.subr.mxu0 %v343
    %644 = vmatpush1.msra.mxu0 %v342
    %645 = vmatprep.subr.mxu0 %v341
    %646 = vmatpush1.msra.mxu0 %v340
    %647 = vmatprep.subr.mxu0 0.0
    %648 = vmatpush2.msra.mxu0 0.0
    %649 = vmatprep.subr.mxu0 0.0
    %650 = vmatpush2.msra.mxu0 0.0
    %651 = vmatprep.subr.mxu0 0.0
    %652 = vmatpush2.msra.mxu0 0.0
    %653 = vmatprep.subr.mxu0 0.0
    %654 = vmatpush2.msra.mxu0 0.0
    %655 = vmatprep.subr.mxu0 0.0
    %656 = vmatpush2.msra.mxu0 0.0
    %657 = vmatprep.subr.mxu0 0.0
    %658 = vmatpush2.msra.mxu0 0.0
    %659 = vmatprep.subr.mxu0 0.0
    %660 = vmatpush2.msra.mxu0 0.0
    %661 = vmatprep.subr.mxu0 0.0
    %662 = vmatpush2.msra.mxu0 0.0
    %663 = vmatprep.subr.mxu0 0.0
    %664 = vmatpush2.msra.mxu0 0.0
    %665 = vmatprep.subr.mxu0 0.0
    %666 = vmatpush2.msra.mxu0 0.0
    %667 = vmatprep.subr.mxu0 0.0
    %668 = vmatpush2.msra.mxu0 0.0
    %669 = vmatprep.subr.mxu0 0.0
    %670 = vmatpush2.msra.mxu0 0.0
    %671 = vmatprep.subr.mxu0 0.0
    %672 = vmatpush2.msra.mxu0 0.0
    %673 = vmatprep.subr.mxu0 0.0
    %674 = vmatpush2.msra.mxu0 0.0
    %675 = vmatprep.subr.mxu0 0.0
    %676 = vmatpush2.msra.mxu0 0.0
    %677 = vmatprep.subr.mxu0 0.0
    %678 = vmatpush2.msra.mxu0 0.0
    %679 = vmatprep.mubr.f32.mxu0 0.0
    %680 = vmatmul.mubr.f32.gmra.mxu0 %v613
    %v681 = vpop.f32.mrf.mxu0
    %v682 = vadd.f32 %v610, %v681
    %v683 = vpop.f32.mrf.mxu0
    %v684 = vadd.f32 %v611, %v683
    %685 = vdwg.mxu0
    %v686 = vtanh.pop %v682
    %v687 = vtanh.pop %v684
    %v688 = vadd.f32 %v686, 1.0
    %v689 = vadd.f32 %v687, 1.0
    %v690 = vmul.f32 %v688, 0.5
    %v691 = vmul.f32 %v689, 0.5
    %v692 = vsel %vm338, %v686, %v690
    %v693 = vsel %vm339, %v687, %v691
    %v694 = vmul.f32 %v692, %v574
    %696 = vrot.lane.b32.xlu0 %v692, 64
    %v697 = vpop.permute.xlu0 %696
    %v699 = vmul.f32 %v692, %v697
    %701 = vrot.lane.b32.xlu0 %v699, 32
    %v702 = vpop.permute.xlu0 %701
    %v704 = vadd.f32 %v694, %v702
    %v705 = vmul.f32 %v693, %v585
    %707 = vrot.lane.b32.xlu0 %v693, 64
    %v708 = vpop.permute.xlu0 %707
    %v710 = vmul.f32 %v693, %v708
    %712 = vrot.lane.b32.xlu0 %v710, 32
    %v713 = vpop.permute.xlu0 %712
    %v715 = vadd.f32 %v705, %v713
    %717 = vrot.lane.b32.xlu0 %v704, 96
    %v718 = vpop.permute.xlu0 %717
    %v720 = vsel %vm467, %v718, %v715
    %v721 = vtanh.pop %v720
    %723 = vrot.lane.b32.xlu0 %v721, 96
    %v724 = vpop.permute.xlu0 %723
    %v726 = vmul.f32 %v692, %v724
    %727 = vrot.lane.b32.xlu0 %v721, 64
    %v728 = vpop.permute.xlu0 %727
    %v730 = vmul.f32 %v693, %v728
    %732 = vrot.lane.b32.xlu0 %v726, 32
    %v733 = vpop.permute.xlu0 %732
    %736 = vrot.lane.b32.xlu0 %v730, 64
    %v737 = vpop.permute.xlu0 %736
    %v739 = vsel %vm467, %v733, %v737
    %v740 = vld [vmem:[#allocation3 + $0x30] sm:$0xff]
    %v741 = vld [vmem:[#allocation3 + $0x38] sm:$0xff]
    %v743 = vsel %vm358, %v739, 0
    %745 = vmatprep.subr.mxu0 0.0
    %746 = vmatpush1.msra.mxu0 0.0
    %747 = vmatprep.subr.mxu0 0.0
    %748 = vmatpush1.msra.mxu0 0.0
    %749 = vmatprep.subr.mxu0 0.0
    %750 = vmatpush1.msra.mxu0 0.0
    %751 = vmatprep.subr.mxu0 0.0
    %752 = vmatpush1.msra.mxu0 0.0
    %753 = vmatprep.subr.mxu0 0.0
    %754 = vmatpush1.msra.mxu0 0.0
    %755 = vmatprep.subr.mxu0 0.0
    %756 = vmatpush1.msra.mxu0 0.0
    %757 = vmatprep.subr.mxu0 0.0
    %758 = vmatpush1.msra.mxu0 0.0
    %759 = vmatprep.subr.mxu0 0.0
    %760 = vmatpush1.msra.mxu0 0.0
    %761 = vmatprep.subr.mxu0 %v355
    %762 = vmatpush1.msra.mxu0 %v354
    %763 = vmatprep.subr.mxu0 %v353
    %764 = vmatpush1.msra.mxu0 %v352
    %765 = vmatprep.subr.mxu0 %v351
    %766 = vmatpush1.msra.mxu0 %v350
    %767 = vmatprep.subr.mxu0 %v349
    %768 = vmatpush1.msra.mxu0 %v348
    %769 = vmatprep.subr.mxu0 %v347
    %770 = vmatpush1.msra.mxu0 %v346
    %771 = vmatprep.subr.mxu0 %v345
    %772 = vmatpush1.msra.mxu0 %v344
    %773 = vmatprep.subr.mxu0 %v343
    %774 = vmatpush1.msra.mxu0 %v342
    %775 = vmatprep.subr.mxu0 %v341
    %776 = vmatpush1.msra.mxu0 %v340
    %777 = vmatprep.subr.mxu0 0.0
    %778 = vmatpush2.msra.mxu0 0.0
    %779 = vmatprep.subr.mxu0 0.0
    %780 = vmatpush2.msra.mxu0 0.0
    %781 = vmatprep.subr.mxu0 0.0
    %782 = vmatpush2.msra.mxu0 0.0
    %783 = vmatprep.subr.mxu0 0.0
    %784 = vmatpush2.msra.mxu0 0.0
    %785 = vmatprep.subr.mxu0 0.0
    %786 = vmatpush2.msra.mxu0 0.0
    %787 = vmatprep.subr.mxu0 0.0
    %788 = vmatpush2.msra.mxu0 0.0
    %789 = vmatprep.subr.mxu0 0.0
    %790 = vmatpush2.msra.mxu0 0.0
    %791 = vmatprep.subr.mxu0 0.0
    %792 = vmatpush2.msra.mxu0 0.0
    %793 = vmatprep.subr.mxu0 0.0
    %794 = vmatpush2.msra.mxu0 0.0
    %795 = vmatprep.subr.mxu0 0.0
    %796 = vmatpush2.msra.mxu0 0.0
    %797 = vmatprep.subr.mxu0 0.0
    %798 = vmatpush2.msra.mxu0 0.0
    %799 = vmatprep.subr.mxu0 0.0
    %800 = vmatpush2.msra.mxu0 0.0
    %801 = vmatprep.subr.mxu0 0.0
    %802 = vmatpush2.msra.mxu0 0.0
    %803 = vmatprep.subr.mxu0 0.0
    %804 = vmatpush2.msra.mxu0 0.0
    %805 = vmatprep.subr.mxu0 0.0
    %806 = vmatpush2.msra.mxu0 0.0
    %807 = vmatprep.subr.mxu0 0.0
    %808 = vmatpush2.msra.mxu0 0.0
    %809 = vmatprep.mubr.f32.mxu0 0.0
    %810 = vmatmul.mubr.f32.gmra.mxu0 %v743
    %v811 = vpop.f32.mrf.mxu0
    %v812 = vadd.f32 %v740, %v811
    %v813 = vpop.f32.mrf.mxu0
    %v814 = vadd.f32 %v741, %v813
    %815 = vdwg.mxu0
    %v816 = vtanh.pop %v812
    %v817 = vtanh.pop %v814
    %v818 = vadd.f32 %v816, 1.0
    %v819 = vadd.f32 %v817, 1.0
    %v820 = vmul.f32 %v818, 0.5
    %v821 = vmul.f32 %v819, 0.5
    %v822 = vsel %vm338, %v816, %v820
    %v823 = vsel %vm339, %v817, %v821
    %v824 = vmul.f32 %v822, %v704
    %826 = vrot.lane.b32.xlu0 %v822, 64
    %v827 = vpop.permute.xlu0 %826
    %v829 = vmul.f32 %v822, %v827
    %831 = vrot.lane.b32.xlu0 %v829, 32
    %v832 = vpop.permute.xlu0 %831
    %v834 = vadd.f32 %v824, %v832
    %v835 = vmul.f32 %v823, %v715
    %837 = vrot.lane.b32.xlu0 %v823, 64
    %v838 = vpop.permute.xlu0 %837
    %v840 = vmul.f32 %v823, %v838
    %842 = vrot.lane.b32.xlu0 %v840, 32
    %v843 = vpop.permute.xlu0 %842
    %v845 = vadd.f32 %v835, %v843
    %847 = vrot.lane.b32.xlu0 %v834, 96
    %v848 = vpop.permute.xlu0 %847
    %v850 = vsel %vm467, %v848, %v845
    %v851 = vtanh.pop %v850
    %853 = vrot.lane.b32.xlu0 %v851, 96
    %v854 = vpop.permute.xlu0 %853
    %v856 = vmul.f32 %v822, %v854
    %857 = vrot.lane.b32.xlu0 %v851, 64
    %v858 = vpop.permute.xlu0 %857
    %v860 = vmul.f32 %v823, %v858
    %862 = vrot.lane.b32.xlu0 %v856, 32
    %v863 = vpop.permute.xlu0 %862
    %866 = vrot.lane.b32.xlu0 %v860, 64
    %v867 = vpop.permute.xlu0 %866
    %v869 = vsel %vm467, %v863, %v867
    %v870 = vld [vmem:[#allocation3 + $0x40] sm:$0xff]
    %v871 = vld [vmem:[#allocation3 + $0x48] sm:$0xff]
    %v873 = vsel %vm358, %v869, 0
    %875 = vmatprep.subr.mxu0 0.0
    %876 = vmatpush1.msra.mxu0 0.0
    %877 = vmatprep.subr.mxu0 0.0
    %878 = vmatpush1.msra.mxu0 0.0
    %879 = vmatprep.subr.mxu0 0.0
    %880 = vmatpush1.msra.mxu0 0.0
    %881 = vmatprep.subr.mxu0 0.0
    %882 = vmatpush1.msra.mxu0 0.0
    %883 = vmatprep.subr.mxu0 0.0
    %884 = vmatpush1.msra.mxu0 0.0
    %885 = vmatprep.subr.mxu0 0.0
    %886 = vmatpush1.msra.mxu0 0.0
    %887 = vmatprep.subr.mxu0 0.0
    %888 = vmatpush1.msra.mxu0 0.0
    %889 = vmatprep.subr.mxu0 0.0
    %890 = vmatpush1.msra.mxu0 0.0
    %891 = vmatprep.subr.mxu0 %v355
    %892 = vmatpush1.msra.mxu0 %v354
    %893 = vmatprep.subr.mxu0 %v353
    %894 = vmatpush1.msra.mxu0 %v352
    %895 = vmatprep.subr.mxu0 %v351
    %896 = vmatpush1.msra.mxu0 %v350
    %897 = vmatprep.subr.mxu0 %v349
    %898 = vmatpush1.msra.mxu0 %v348
    %899 = vmatprep.subr.mxu0 %v347
    %900 = vmatpush1.msra.mxu0 %v346
    %901 = vmatprep.subr.mxu0 %v345
    %902 = vmatpush1.msra.mxu0 %v344
    %903 = vmatprep.subr.mxu0 %v343
    %904 = vmatpush1.msra.mxu0 %v342
    %905 = vmatprep.subr.mxu0 %v341
    %906 = vmatpush1.msra.mxu0 %v340
    %907 = vmatprep.subr.mxu0 0.0
    %908 = vmatpush2.msra.mxu0 0.0
    %909 = vmatprep.subr.mxu0 0.0
    %910 = vmatpush2.msra.mxu0 0.0
    %911 = vmatprep.subr.mxu0 0.0
    %912 = vmatpush2.msra.mxu0 0.0
    %913 = vmatprep.subr.mxu0 0.0
    %914 = vmatpush2.msra.mxu0 0.0
    %915 = vmatprep.subr.mxu0 0.0
    %916 = vmatpush2.msra.mxu0 0.0
    %917 = vmatprep.subr.mxu0 0.0
    %918 = vmatpush2.msra.mxu0 0.0
    %919 = vmatprep.subr.mxu0 0.0
    %920 = vmatpush2.msra.mxu0 0.0
    %921 = vmatprep.subr.mxu0 0.0
    %922 = vmatpush2.msra.mxu0 0.0
    %923 = vmatprep.subr.mxu0 0.0
    %924 = vmatpush2.msra.mxu0 0.0
    %925 = vmatprep.subr.mxu0 0.0
    %926 = vmatpush2.msra.mxu0 0.0
    %927 = vmatprep.subr.mxu0 0.0
    %928 = vmatpush2.msra.mxu0 0.0
    %929 = vmatprep.subr.mxu0 0.0
    %930 = vmatpush2.msra.mxu0 0.0
    %931 = vmatprep.subr.mxu0 0.0
    %932 = vmatpush2.msra.mxu0 0.0
    %933 = vmatprep.subr.mxu0 0.0
    %934 = vmatpush2.msra.mxu0 0.0
    %935 = vmatprep.subr.mxu0 0.0
    %936 = vmatpush2.msra.mxu0 0.0
    %937 = vmatprep.subr.mxu0 0.0
    %938 = vmatpush2.msra.mxu0 0.0
    %939 = vmatprep.mubr.f32.mxu0 0.0
    %940 = vmatmul.mubr.f32.gmra.mxu0 %v873
    %v941 = vpop.f32.mrf.mxu0
    %v942 = vadd.f32 %v870, %v941
    %v943 = vpop.f32.mrf.mxu0
    %v944 = vadd.f32 %v871, %v943
    %945 = vdwg.mxu0
    %v946 = vtanh.pop %v942
    %v947 = vtanh.pop %v944
    %v948 = vadd.f32 %v946, 1.0
    %v949 = vadd.f32 %v947, 1.0
    %v950 = vmul.f32 %v948, 0.5
    %v951 = vmul.f32 %v949, 0.5
    %v952 = vsel %vm338, %v946, %v950
    %v953 = vsel %vm339, %v947, %v951
    %v954 = vmul.f32 %v952, %v834
    %956 = vrot.lane.b32.xlu0 %v952, 64
    %v957 = vpop.permute.xlu0 %956
    %v959 = vmul.f32 %v952, %v957
    %961 = vrot.lane.b32.xlu0 %v959, 32
    %v962 = vpop.permute.xlu0 %961
    %v964 = vadd.f32 %v954, %v962
    %v965 = vmul.f32 %v953, %v845
    %967 = vrot.lane.b32.xlu0 %v953, 64
    %v968 = vpop.permute.xlu0 %967
    %v970 = vmul.f32 %v953, %v968
    %972 = vrot.lane.b32.xlu0 %v970, 32
    %v973 = vpop.permute.xlu0 %972
    %v975 = vadd.f32 %v965, %v973
    %977 = vrot.lane.b32.xlu0 %v964, 96
    %v978 = vpop.permute.xlu0 %977
    %v980 = vsel %vm467, %v978, %v975
    %v981 = vtanh.pop %v980
    %983 = vrot.lane.b32.xlu0 %v981, 96
    %v984 = vpop.permute.xlu0 %983
    %v986 = vmul.f32 %v952, %v984
    %987 = vrot.lane.b32.xlu0 %v981, 64
    %v988 = vpop.permute.xlu0 %987
    %v990 = vmul.f32 %v953, %v988
    %992 = vrot.lane.b32.xlu0 %v986, 32
    %v993 = vpop.permute.xlu0 %992
    %996 = vrot.lane.b32.xlu0 %v990, 64
    %v997 = vpop.permute.xlu0 %996
    %v999 = vsel %vm467, %v993, %v997
    %v1000 = vld [vmem:[#allocation3 + $0x50] sm:$0xff]
    %v1001 = vld [vmem:[#allocation3 + $0x58] sm:$0xff]
    %v1003 = vsel %vm358, %v999, 0
    %1005 = vmatprep.subr.mxu0 0.0
    %1006 = vmatpush1.msra.mxu0 0.0
    %1007 = vmatprep.subr.mxu0 0.0
    %1008 = vmatpush1.msra.mxu0 0.0
    %1009 = vmatprep.subr.mxu0 0.0
    %1010 = vmatpush1.msra.mxu0 0.0
    %1011 = vmatprep.subr.mxu0 0.0
    %1012 = vmatpush1.msra.mxu0 0.0
    %1013 = vmatprep.subr.mxu0 0.0
    %1014 = vmatpush1.msra.mxu0 0.0
    %1015 = vmatprep.subr.mxu0 0.0
    %1016 = vmatpush1.msra.mxu0 0.0
    %1017 = vmatprep.subr.mxu0 0.0
    %1018 = vmatpush1.msra.mxu0 0.0
    %1019 = vmatprep.subr.mxu0 0.0
    %1020 = vmatpush1.msra.mxu0 0.0
    %1021 = vmatprep.subr.mxu0 %v355
    %1022 = vmatpush1.msra.mxu0 %v354
    %1023 = vmatprep.subr.mxu0 %v353
    %1024 = vmatpush1.msra.mxu0 %v352
    %1025 = vmatprep.subr.mxu0 %v351
    %1026 = vmatpush1.msra.mxu0 %v350
    %1027 = vmatprep.subr.mxu0 %v349
    %1028 = vmatpush1.msra.mxu0 %v348
    %1029 = vmatprep.subr.mxu0 %v347
    %1030 = vmatpush1.msra.mxu0 %v346
    %1031 = vmatprep.subr.mxu0 %v345
    %1032 = vmatpush1.msra.mxu0 %v344
    %1033 = vmatprep.subr.mxu0 %v343
    %1034 = vmatpush1.msra.mxu0 %v342
    %1035 = vmatprep.subr.mxu0 %v341
    %1036 = vmatpush1.msra.mxu0 %v340
    %1037 = vmatprep.subr.mxu0 0.0
    %1038 = vmatpush2.msra.mxu0 0.0
    %1039 = vmatprep.subr.mxu0 0.0
    %1040 = vmatpush2.msra.mxu0 0.0
    %1041 = vmatprep.subr.mxu0 0.0
    %1042 = vmatpush2.msra.mxu0 0.0
    %1043 = vmatprep.subr.mxu0 0.0
    %1044 = vmatpush2.msra.mxu0 0.0
    %1045 = vmatprep.subr.mxu0 0.0
    %1046 = vmatpush2.msra.mxu0 0.0
    %1047 = vmatprep.subr.mxu0 0.0
    %1048 = vmatpush2.msra.mxu0 0.0
    %1049 = vmatprep.subr.mxu0 0.0
    %1050 = vmatpush2.msra.mxu0 0.0
    %1051 = vmatprep.subr.mxu0 0.0
    %1052 = vmatpush2.msra.mxu0 0.0
    %1053 = vmatprep.subr.mxu0 0.0
    %1054 = vmatpush2.msra.mxu0 0.0
    %1055 = vmatprep.subr.mxu0 0.0
    %1056 = vmatpush2.msra.mxu0 0.0
    %1057 = vmatprep.subr.mxu0 0.0
    %1058 = vmatpush2.msra.mxu0 0.0
    %1059 = vmatprep.subr.mxu0 0.0
    %1060 = vmatpush2.msra.mxu0 0.0
    %1061 = vmatprep.subr.mxu0 0.0
    %1062 = vmatpush2.msra.mxu0 0.0
    %1063 = vmatprep.subr.mxu0 0.0
    %1064 = vmatpush2.msra.mxu0 0.0
    %1065 = vmatprep.subr.mxu0 0.0
    %1066 = vmatpush2.msra.mxu0 0.0
    %1067 = vmatprep.subr.mxu0 0.0
    %1068 = vmatpush2.msra.mxu0 0.0
    %1069 = vmatprep.mubr.f32.mxu0 0.0
    %1070 = vmatmul.mubr.f32.gmra.mxu0 %v1003
    %v1071 = vpop.f32.mrf.mxu0
    %v1072 = vadd.f32 %v1000, %v1071
    %v1073 = vpop.f32.mrf.mxu0
    %v1074 = vadd.f32 %v1001, %v1073
    %1075 = vdwg.mxu0
    %v1076 = vtanh.pop %v1072
    %v1077 = vtanh.pop %v1074
    %v1078 = vadd.f32 %v1076, 1.0
    %v1079 = vadd.f32 %v1077, 1.0
    %v1080 = vmul.f32 %v1078, 0.5
    %v1081 = vmul.f32 %v1079, 0.5
    %v1082 = vsel %vm338, %v1076, %v1080
    %v1083 = vsel %vm339, %v1077, %v1081
    %v1084 = vmul.f32 %v1082, %v964
    %1086 = vrot.lane.b32.xlu0 %v1082, 64
    %v1087 = vpop.permute.xlu0 %1086
    %v1089 = vmul.f32 %v1082, %v1087
    %1091 = vrot.lane.b32.xlu0 %v1089, 32
    %v1092 = vpop.permute.xlu0 %1091
    %v1094 = vadd.f32 %v1084, %v1092
    %v1095 = vmul.f32 %v1083, %v975
    %1097 = vrot.lane.b32.xlu0 %v1083, 64
    %v1098 = vpop.permute.xlu0 %1097
    %v1100 = vmul.f32 %v1083, %v1098
    %1102 = vrot.lane.b32.xlu0 %v1100, 32
    %v1103 = vpop.permute.xlu0 %1102
    %v1105 = vadd.f32 %v1095, %v1103
    %1107 = vrot.lane.b32.xlu0 %v1094, 96
    %v1108 = vpop.permute.xlu0 %1107
    %v1110 = vsel %vm467, %v1108, %v1105
    %v1111 = vtanh.pop %v1110
    %1113 = vrot.lane.b32.xlu0 %v1111, 96
    %v1114 = vpop.permute.xlu0 %1113
    %v1116 = vmul.f32 %v1082, %v1114
    %1117 = vrot.lane.b32.xlu0 %v1111, 64
    %v1118 = vpop.permute.xlu0 %1117
    %v1120 = vmul.f32 %v1083, %v1118
    %1122 = vrot.lane.b32.xlu0 %v1116, 32
    %v1123 = vpop.permute.xlu0 %1122
    %1126 = vrot.lane.b32.xlu0 %v1120, 64
    %v1127 = vpop.permute.xlu0 %1126
    %v1129 = vsel %vm467, %v1123, %v1127
    %v1130 = vld [vmem:[#allocation3 + $0x60] sm:$0xff]
    %v1131 = vld [vmem:[#allocation3 + $0x68] sm:$0xff]
    %v1133 = vsel %vm358, %v1129, 0
    %1135 = vmatprep.subr.mxu0 0.0
    %1136 = vmatpush1.msra.mxu0 0.0
    %1137 = vmatprep.subr.mxu0 0.0
    %1138 = vmatpush1.msra.mxu0 0.0
    %1139 = vmatprep.subr.mxu0 0.0
    %1140 = vmatpush1.msra.mxu0 0.0
    %1141 = vmatprep.subr.mxu0 0.0
    %1142 = vmatpush1.msra.mxu0 0.0
    %1143 = vmatprep.subr.mxu0 0.0
    %1144 = vmatpush1.msra.mxu0 0.0
    %1145 = vmatprep.subr.mxu0 0.0
    %1146 = vmatpush1.msra.mxu0 0.0
    %1147 = vmatprep.subr.mxu0 0.0
    %1148 = vmatpush1.msra.mxu0 0.0
    %1149 = vmatprep.subr.mxu0 0.0
    %1150 = vmatpush1.msra.mxu0 0.0
    %1151 = vmatprep.subr.mxu0 %v355
    %1152 = vmatpush1.msra.mxu0 %v354
    %1153 = vmatprep.subr.mxu0 %v353
    %1154 = vmatpush1.msra.mxu0 %v352
    %1155 = vmatprep.subr.mxu0 %v351
    %1156 = vmatpush1.msra.mxu0 %v350
    %1157 = vmatprep.subr.mxu0 %v349
    %1158 = vmatpush1.msra.mxu0 %v348
    %1159 = vmatprep.subr.mxu0 %v347
    %1160 = vmatpush1.msra.mxu0 %v346
    %1161 = vmatprep.subr.mxu0 %v345
    %1162 = vmatpush1.msra.mxu0 %v344
    %1163 = vmatprep.subr.mxu0 %v343
    %1164 = vmatpush1.msra.mxu0 %v342
    %1165 = vmatprep.subr.mxu0 %v341
    %1166 = vmatpush1.msra.mxu0 %v340
    %1167 = vmatprep.subr.mxu0 0.0
    %1168 = vmatpush2.msra.mxu0 0.0
    %1169 = vmatprep.subr.mxu0 0.0
    %1170 = vmatpush2.msra.mxu0 0.0
    %1171 = vmatprep.subr.mxu0 0.0
    %1172 = vmatpush2.msra.mxu0 0.0
    %1173 = vmatprep.subr.mxu0 0.0
    %1174 = vmatpush2.msra.mxu0 0.0
    %1175 = vmatprep.subr.mxu0 0.0
    %1176 = vmatpush2.msra.mxu0 0.0
    %1177 = vmatprep.subr.mxu0 0.0
    %1178 = vmatpush2.msra.mxu0 0.0
    %1179 = vmatprep.subr.mxu0 0.0
    %1180 = vmatpush2.msra.mxu0 0.0
    %1181 = vmatprep.subr.mxu0 0.0
    %1182 = vmatpush2.msra.mxu0 0.0
    %1183 = vmatprep.subr.mxu0 0.0
    %1184 = vmatpush2.msra.mxu0 0.0
    %1185 = vmatprep.subr.mxu0 0.0
    %1186 = vmatpush2.msra.mxu0 0.0
    %1187 = vmatprep.subr.mxu0 0.0
    %1188 = vmatpush2.msra.mxu0 0.0
    %1189 = vmatprep.subr.mxu0 0.0
    %1190 = vmatpush2.msra.mxu0 0.0
    %1191 = vmatprep.subr.mxu0 0.0
    %1192 = vmatpush2.msra.mxu0 0.0
    %1193 = vmatprep.subr.mxu0 0.0
    %1194 = vmatpush2.msra.mxu0 0.0
    %1195 = vmatprep.subr.mxu0 0.0
    %1196 = vmatpush2.msra.mxu0 0.0
    %1197 = vmatprep.subr.mxu0 0.0
    %1198 = vmatpush2.msra.mxu0 0.0
    %1199 = vmatprep.mubr.f32.mxu0 0.0
    %1200 = vmatmul.mubr.f32.gmra.mxu0 %v1133
    %v1201 = vpop.f32.mrf.mxu0
    %v1202 = vadd.f32 %v1130, %v1201
    %v1203 = vpop.f32.mrf.mxu0
    %v1204 = vadd.f32 %v1131, %v1203
    %1205 = vdwg.mxu0
    %v1206 = vtanh.pop %v1202
    %v1207 = vtanh.pop %v1204
    %v1208 = vadd.f32 %v1206, 1.0
    %v1209 = vadd.f32 %v1207, 1.0
    %v1210 = vmul.f32 %v1208, 0.5
    %v1211 = vmul.f32 %v1209, 0.5
    %v1212 = vsel %vm338, %v1206, %v1210
    %v1213 = vsel %vm339, %v1207, %v1211
    %v1214 = vmul.f32 %v1212, %v1094
    %1216 = vrot.lane.b32.xlu0 %v1212, 64
    %v1217 = vpop.permute.xlu0 %1216
    %v1219 = vmul.f32 %v1212, %v1217
    %1221 = vrot.lane.b32.xlu0 %v1219, 32
    %v1222 = vpop.permute.xlu0 %1221
    %v1224 = vadd.f32 %v1214, %v1222
    %v1225 = vmul.f32 %v1213, %v1105
    %1227 = vrot.lane.b32.xlu0 %v1213, 64
    %v1228 = vpop.permute.xlu0 %1227
    %v1230 = vmul.f32 %v1213, %v1228
    %1232 = vrot.lane.b32.xlu0 %v1230, 32
    %v1233 = vpop.permute.xlu0 %1232
    %v1235 = vadd.f32 %v1225, %v1233
    %1237 = vrot.lane.b32.xlu0 %v1224, 96
    %v1238 = vpop.permute.xlu0 %1237
    %v1240 = vsel %vm467, %v1238, %v1235
    %v1241 = vtanh.pop %v1240
    %1243 = vrot.lane.b32.xlu0 %v1241, 96
    %v1244 = vpop.permute.xlu0 %1243
    %v1246 = vmul.f32 %v1212, %v1244
    %1247 = vrot.lane.b32.xlu0 %v1241, 64
    %v1248 = vpop.permute.xlu0 %1247
    %v1250 = vmul.f32 %v1213, %v1248
    %1252 = vrot.lane.b32.xlu0 %v1246, 32
    %v1253 = vpop.permute.xlu0 %1252
    %1256 = vrot.lane.b32.xlu0 %v1250, 64
    %v1257 = vpop.permute.xlu0 %1256
    %v1259 = vsel %vm467, %v1253, %v1257
    %v1260 = vld [vmem:[#allocation3 + $0x70] sm:$0xff]
    %v1261 = vld [vmem:[#allocation3 + $0x78] sm:$0xff]
    %v1263 = vsel %vm358, %v1259, 0
    %1265 = vmatprep.subr.mxu0 0.0
    %1266 = vmatpush1.msra.mxu0 0.0
    %1267 = vmatprep.subr.mxu0 0.0
    %1268 = vmatpush1.msra.mxu0 0.0
    %1269 = vmatprep.subr.mxu0 0.0
    %1270 = vmatpush1.msra.mxu0 0.0
    %1271 = vmatprep.subr.mxu0 0.0
    %1272 = vmatpush1.msra.mxu0 0.0
    %1273 = vmatprep.subr.mxu0 0.0
    %1274 = vmatpush1.msra.mxu0 0.0
    %1275 = vmatprep.subr.mxu0 0.0
    %1276 = vmatpush1.msra.mxu0 0.0
    %1277 = vmatprep.subr.mxu0 0.0
    %1278 = vmatpush1.msra.mxu0 0.0
    %1279 = vmatprep.subr.mxu0 0.0
    %1280 = vmatpush1.msra.mxu0 0.0
    %1281 = vmatprep.subr.mxu0 %v355
    %1282 = vmatpush1.msra.mxu0 %v354
    %1283 = vmatprep.subr.mxu0 %v353
    %1284 = vmatpush1.msra.mxu0 %v352
    %1285 = vmatprep.subr.mxu0 %v351
    %1286 = vmatpush1.msra.mxu0 %v350
    %1287 = vmatprep.subr.mxu0 %v349
    %1288 = vmatpush1.msra.mxu0 %v348
    %1289 = vmatprep.subr.mxu0 %v347
    %1290 = vmatpush1.msra.mxu0 %v346
    %1291 = vmatprep.subr.mxu0 %v345
    %1292 = vmatpush1.msra.mxu0 %v344
    %1293 = vmatprep.subr.mxu0 %v343
    %1294 = vmatpush1.msra.mxu0 %v342
    %1295 = vmatprep.subr.mxu0 %v341
    %1296 = vmatpush1.msra.mxu0 %v340
    %1297 = vmatprep.subr.mxu0 0.0
    %1298 = vmatpush2.msra.mxu0 0.0
    %1299 = vmatprep.subr.mxu0 0.0
    %1300 = vmatpush2.msra.mxu0 0.0
    %1301 = vmatprep.subr.mxu0 0.0
    %1302 = vmatpush2.msra.mxu0 0.0
    %1303 = vmatprep.subr.mxu0 0.0
    %1304 = vmatpush2.msra.mxu0 0.0
    %1305 = vmatprep.subr.mxu0 0.0
    %1306 = vmatpush2.msra.mxu0 0.0
    %1307 = vmatprep.subr.mxu0 0.0
    %1308 = vmatpush2.msra.mxu0 0.0
    %1309 = vmatprep.subr.mxu0 0.0
    %1310 = vmatpush2.msra.mxu0 0.0
    %1311 = vmatprep.subr.mxu0 0.0
    %1312 = vmatpush2.msra.mxu0 0.0
    %1313 = vmatprep.subr.mxu0 0.0
    %1314 = vmatpush2.msra.mxu0 0.0
    %1315 = vmatprep.subr.mxu0 0.0
    %1316 = vmatpush2.msra.mxu0 0.0
    %1317 = vmatprep.subr.mxu0 0.0
    %1318 = vmatpush2.msra.mxu0 0.0
    %1319 = vmatprep.subr.mxu0 0.0
    %1320 = vmatpush2.msra.mxu0 0.0
    %1321 = vmatprep.subr.mxu0 0.0
    %1322 = vmatpush2.msra.mxu0 0.0
    %1323 = vmatprep.subr.mxu0 0.0
    %1324 = vmatpush2.msra.mxu0 0.0
    %1325 = vmatprep.subr.mxu0 0.0
    %1326 = vmatpush2.msra.mxu0 0.0
    %1327 = vmatprep.subr.mxu0 0.0
    %1328 = vmatpush2.msra.mxu0 0.0
    %1329 = vmatprep.mubr.f32.mxu0 0.0
    %1330 = vmatmul.mubr.f32.gmra.mxu0 %v1263
    %v1331 = vpop.f32.mrf.mxu0
    %v1332 = vadd.f32 %v1260, %v1331
    %v1333 = vpop.f32.mrf.mxu0
    %v1334 = vadd.f32 %v1261, %v1333
    %1335 = vdwg.mxu0
    %v1336 = vtanh.pop %v1332
    %v1337 = vtanh.pop %v1334
    %v1338 = vadd.f32 %v1336, 1.0
    %v1339 = vadd.f32 %v1337, 1.0
    %v1340 = vmul.f32 %v1338, 0.5
    %v1341 = vmul.f32 %v1339, 0.5
    %v1342 = vsel %vm338, %v1336, %v1340
    %v1343 = vsel %vm339, %v1337, %v1341
    %v1344 = vmul.f32 %v1342, %v1224
    %1346 = vrot.lane.b32.xlu0 %v1342, 64
    %v1347 = vpop.permute.xlu0 %1346
    %v1349 = vmul.f32 %v1342, %v1347
    %1351 = vrot.lane.b32.xlu0 %v1349, 32
    %v1352 = vpop.permute.xlu0 %1351
    %v1354 = vadd.f32 %v1344, %v1352
    %v1355 = vmul.f32 %v1343, %v1235
    %1357 = vrot.lane.b32.xlu0 %v1343, 64
    %v1358 = vpop.permute.xlu0 %1357
    %v1360 = vmul.f32 %v1343, %v1358
    %1362 = vrot.lane.b32.xlu0 %v1360, 32
    %v1363 = vpop.permute.xlu0 %1362
    %v1365 = vadd.f32 %v1355, %v1363
    %1367 = vrot.lane.b32.xlu0 %v1354, 96
    %v1368 = vpop.permute.xlu0 %1367
    %v1370 = vsel %vm467, %v1368, %v1365
    %v1371 = vtanh.pop %v1370
    %1373 = vrot.lane.b32.xlu0 %v1371, 96
    %v1374 = vpop.permute.xlu0 %1373
    %v1376 = vmul.f32 %v1342, %v1374
    %1377 = vrot.lane.b32.xlu0 %v1371, 64
    %v1378 = vpop.permute.xlu0 %1377
    %v1380 = vmul.f32 %v1343, %v1378
    %1382 = vrot.lane.b32.xlu0 %v1376, 32
    %v1383 = vpop.permute.xlu0 %1382
    %1386 = vrot.lane.b32.xlu0 %v1380, 64
    %v1387 = vpop.permute.xlu0 %1386
    %v1389 = vsel %vm467, %v1383, %v1387
    %v1390 = vld [vmem:[#allocation3 + $0x80] sm:$0xff]
    %v1391 = vld [vmem:[#allocation3 + $0x88] sm:$0xff]
    %v1393 = vsel %vm358, %v1389, 0
    %1395 = vmatprep.subr.mxu0 0.0
    %1396 = vmatpush1.msra.mxu0 0.0
    %1397 = vmatprep.subr.mxu0 0.0
    %1398 = vmatpush1.msra.mxu0 0.0
    %1399 = vmatprep.subr.mxu0 0.0
    %1400 = vmatpush1.msra.mxu0 0.0
    %1401 = vmatprep.subr.mxu0 0.0
    %1402 = vmatpush1.msra.mxu0 0.0
    %1403 = vmatprep.subr.mxu0 0.0
    %1404 = vmatpush1.msra.mxu0 0.0
    %1405 = vmatprep.subr.mxu0 0.0
    %1406 = vmatpush1.msra.mxu0 0.0
    %1407 = vmatprep.subr.mxu0 0.0
    %1408 = vmatpush1.msra.mxu0 0.0
    %1409 = vmatprep.subr.mxu0 0.0
    %1410 = vmatpush1.msra.mxu0 0.0
    %1411 = vmatprep.subr.mxu0 %v355
    %1412 = vmatpush1.msra.mxu0 %v354
    %1413 = vmatprep.subr.mxu0 %v353
    %1414 = vmatpush1.msra.mxu0 %v352
    %1415 = vmatprep.subr.mxu0 %v351
    %1416 = vmatpush1.msra.mxu0 %v350
    %1417 = vmatprep.subr.mxu0 %v349
    %1418 = vmatpush1.msra.mxu0 %v348
    %1419 = vmatprep.subr.mxu0 %v347
    %1420 = vmatpush1.msra.mxu0 %v346
    %1421 = vmatprep.subr.mxu0 %v345
    %1422 = vmatpush1.msra.mxu0 %v344
    %1423 = vmatprep.subr.mxu0 %v343
    %1424 = vmatpush1.msra.mxu0 %v342
    %1425 = vmatprep.subr.mxu0 %v341
    %1426 = vmatpush1.msra.mxu0 %v340
    %1427 = vmatprep.subr.mxu0 0.0
    %1428 = vmatpush2.msra.mxu0 0.0
    %1429 = vmatprep.subr.mxu0 0.0
    %1430 = vmatpush2.msra.mxu0 0.0
    %1431 = vmatprep.subr.mxu0 0.0
    %1432 = vmatpush2.msra.mxu0 0.0
    %1433 = vmatprep.subr.mxu0 0.0
    %1434 = vmatpush2.msra.mxu0 0.0
    %1435 = vmatprep.subr.mxu0 0.0
    %1436 = vmatpush2.msra.mxu0 0.0
    %1437 = vmatprep.subr.mxu0 0.0
    %1438 = vmatpush2.msra.mxu0 0.0
    %1439 = vmatprep.subr.mxu0 0.0
    %1440 = vmatpush2.msra.mxu0 0.0
    %1441 = vmatprep.subr.mxu0 0.0
    %1442 = vmatpush2.msra.mxu0 0.0
    %1443 = vmatprep.subr.mxu0 0.0
    %1444 = vmatpush2.msra.mxu0 0.0
    %1445 = vmatprep.subr.mxu0 0.0
    %1446 = vmatpush2.msra.mxu0 0.0
    %1447 = vmatprep.subr.mxu0 0.0
    %1448 = vmatpush2.msra.mxu0 0.0
    %1449 = vmatprep.subr.mxu0 0.0
    %1450 = vmatpush2.msra.mxu0 0.0
    %1451 = vmatprep.subr.mxu0 0.0
    %1452 = vmatpush2.msra.mxu0 0.0
    %1453 = vmatprep.subr.mxu0 0.0
    %1454 = vmatpush2.msra.mxu0 0.0
    %1455 = vmatprep.subr.mxu0 0.0
    %1456 = vmatpush2.msra.mxu0 0.0
    %1457 = vmatprep.subr.mxu0 0.0
    %1458 = vmatpush2.msra.mxu0 0.0
    %1459 = vmatprep.mubr.f32.mxu0 0.0
    %1460 = vmatmul.mubr.f32.gmra.mxu0 %v1393
    %v1461 = vpop.f32.mrf.mxu0
    %v1462 = vadd.f32 %v1390, %v1461
    %v1463 = vpop.f32.mrf.mxu0
    %v1464 = vadd.f32 %v1391, %v1463
    %1465 = vdwg.mxu0
    %v1466 = vtanh.pop %v1462
    %v1467 = vtanh.pop %v1464
    %v1468 = vadd.f32 %v1466, 1.0
    %v1469 = vadd.f32 %v1467, 1.0
    %v1470 = vmul.f32 %v1468, 0.5
    %v1471 = vmul.f32 %v1469, 0.5
    %v1472 = vsel %vm338, %v1466, %v1470
    %v1473 = vsel %vm339, %v1467, %v1471
    %v1474 = vmul.f32 %v1472, %v1354
    %1476 = vrot.lane.b32.xlu0 %v1472, 64
    %v1477 = vpop.permute.xlu0 %1476
    %v1479 = vmul.f32 %v1472, %v1477
    %1481 = vrot.lane.b32.xlu0 %v1479, 32
    %v1482 = vpop.permute.xlu0 %1481
    %v1484 = vadd.f32 %v1474, %v1482
    %v1485 = vmul.f32 %v1473, %v1365
    %1487 = vrot.lane.b32.xlu0 %v1473, 64
    %v1488 = vpop.permute.xlu0 %1487
    %v1490 = vmul.f32 %v1473, %v1488
    %1492 = vrot.lane.b32.xlu0 %v1490, 32
    %v1493 = vpop.permute.xlu0 %1492
    %v1495 = vadd.f32 %v1485, %v1493
    %1497 = vrot.lane.b32.xlu0 %v1484, 96
    %v1498 = vpop.permute.xlu0 %1497
    %v1500 = vsel %vm467, %v1498, %v1495
    %v1501 = vtanh.pop %v1500
    %1503 = vrot.lane.b32.xlu0 %v1501, 96
    %v1504 = vpop.permute.xlu0 %1503
    %v1506 = vmul.f32 %v1472, %v1504
    %1507 = vrot.lane.b32.xlu0 %v1501, 64
    %v1508 = vpop.permute.xlu0 %1507
    %v1510 = vmul.f32 %v1473, %v1508
    %1512 = vrot.lane.b32.xlu0 %v1506, 32
    %v1513 = vpop.permute.xlu0 %1512
    %1516 = vrot.lane.b32.xlu0 %v1510, 64
    %v1517 = vpop.permute.xlu0 %1516
    %v1519 = vsel %vm467, %v1513, %v1517
    %v1520 = vld [vmem:[#allocation3 + $0x90] sm:$0xff]
    %v1521 = vld [vmem:[#allocation3 + $0x98] sm:$0xff]
    %v1523 = vsel %vm358, %v1519, 0
    %1525 = vmatprep.subr.mxu0 0.0
    %1526 = vmatpush1.msra.mxu0 0.0
    %1527 = vmatprep.subr.mxu0 0.0
    %1528 = vmatpush1.msra.mxu0 0.0
    %1529 = vmatprep.subr.mxu0 0.0
    %1530 = vmatpush1.msra.mxu0 0.0
    %1531 = vmatprep.subr.mxu0 0.0
    %1532 = vmatpush1.msra.mxu0 0.0
    %1533 = vmatprep.subr.mxu0 0.0
    %1534 = vmatpush1.msra.mxu0 0.0
    %1535 = vmatprep.subr.mxu0 0.0
    %1536 = vmatpush1.msra.mxu0 0.0
    %1537 = vmatprep.subr.mxu0 0.0
    %1538 = vmatpush1.msra.mxu0 0.0
    %1539 = vmatprep.subr.mxu0 0.0
    %1540 = vmatpush1.msra.mxu0 0.0
    %1541 = vmatprep.subr.mxu0 %v355
    %1542 = vmatpush1.msra.mxu0 %v354
    %1543 = vmatprep.subr.mxu0 %v353
    %1544 = vmatpush1.msra.mxu0 %v352
    %1545 = vmatprep.subr.mxu0 %v351
    %1546 = vmatpush1.msra.mxu0 %v350
    %1547 = vmatprep.subr.mxu0 %v349
    %1548 = vmatpush1.msra.mxu0 %v348
    %1549 = vmatprep.subr.mxu0 %v347
    %1550 = vmatpush1.msra.mxu0 %v346
    %1551 = vmatprep.subr.mxu0 %v345
    %1552 = vmatpush1.msra.mxu0 %v344
    %1553 = vmatprep.subr.mxu0 %v343
    %1554 = vmatpush1.msra.mxu0 %v342
    %1555 = vmatprep.subr.mxu0 %v341
    %1556 = vmatpush1.msra.mxu0 %v340
    %1557 = vmatprep.subr.mxu0 0.0
    %1558 = vmatpush2.msra.mxu0 0.0
    %1559 = vmatprep.subr.mxu0 0.0
    %1560 = vmatpush2.msra.mxu0 0.0
    %1561 = vmatprep.subr.mxu0 0.0
    %1562 = vmatpush2.msra.mxu0 0.0
    %1563 = vmatprep.subr.mxu0 0.0
    %1564 = vmatpush2.msra.mxu0 0.0
    %1565 = vmatprep.subr.mxu0 0.0
    %1566 = vmatpush2.msra.mxu0 0.0
    %1567 = vmatprep.subr.mxu0 0.0
    %1568 = vmatpush2.msra.mxu0 0.0
    %1569 = vmatprep.subr.mxu0 0.0
    %1570 = vmatpush2.msra.mxu0 0.0
    %1571 = vmatprep.subr.mxu0 0.0
    %1572 = vmatpush2.msra.mxu0 0.0
    %1573 = vmatprep.subr.mxu0 0.0
    %1574 = vmatpush2.msra.mxu0 0.0
    %1575 = vmatprep.subr.mxu0 0.0
    %1576 = vmatpush2.msra.mxu0 0.0
    %1577 = vmatprep.subr.mxu0 0.0
    %1578 = vmatpush2.msra.mxu0 0.0
    %1579 = vmatprep.subr.mxu0 0.0
    %1580 = vmatpush2.msra.mxu0 0.0
    %1581 = vmatprep.subr.mxu0 0.0
    %1582 = vmatpush2.msra.mxu0 0.0
    %1583 = vmatprep.subr.mxu0 0.0
    %1584 = vmatpush2.msra.mxu0 0.0
    %1585 = vmatprep.subr.mxu0 0.0
    %1586 = vmatpush2.msra.mxu0 0.0
    %1587 = vmatprep.subr.mxu0 0.0
    %1588 = vmatpush2.msra.mxu0 0.0
    %1589 = vmatprep.mubr.f32.mxu0 0.0
    %1590 = vmatmul.mubr.f32.gmra.mxu0 %v1523
    %v1591 = vpop.f32.mrf.mxu0
    %v1592 = vadd.f32 %v1520, %v1591
    %v1593 = vpop.f32.mrf.mxu0
    %v1594 = vadd.f32 %v1521, %v1593
    %1595 = vdwg.mxu0
    %v1596 = vtanh.pop %v1592
    %v1597 = vtanh.pop %v1594
    %v1598 = vadd.f32 %v1596, 1.0
    %v1599 = vadd.f32 %v1597, 1.0
    %v1600 = vmul.f32 %v1598, 0.5
    %v1601 = vmul.f32 %v1599, 0.5
    %v1602 = vsel %vm338, %v1596, %v1600
    %v1603 = vsel %vm339, %v1597, %v1601
    %v1604 = vmul.f32 %v1602, %v1484
    %1606 = vrot.lane.b32.xlu0 %v1602, 64
    %v1607 = vpop.permute.xlu0 %1606
    %v1609 = vmul.f32 %v1602, %v1607
    %1611 = vrot.lane.b32.xlu0 %v1609, 32
    %v1612 = vpop.permute.xlu0 %1611
    %v1614 = vadd.f32 %v1604, %v1612
    %v1615 = vmul.f32 %v1603, %v1495
    %1617 = vrot.lane.b32.xlu0 %v1603, 64
    %v1618 = vpop.permute.xlu0 %1617
    %v1620 = vmul.f32 %v1603, %v1618
    %1622 = vrot.lane.b32.xlu0 %v1620, 32
    %v1623 = vpop.permute.xlu0 %1622
    %v1625 = vadd.f32 %v1615, %v1623
    %1627 = vrot.lane.b32.xlu0 %v1614, 96
    %v1628 = vpop.permute.xlu0 %1627
    %v1630 = vsel %vm467, %v1628, %v1625
    %v1631 = vtanh.pop %v1630
    %1633 = vrot.lane.b32.xlu0 %v1631, 96
    %v1634 = vpop.permute.xlu0 %1633
    %v1636 = vmul.f32 %v1602, %v1634
    %1637 = vrot.lane.b32.xlu0 %v1631, 64
    %v1638 = vpop.permute.xlu0 %1637
    %v1640 = vmul.f32 %v1603, %v1638
    %1642 = vrot.lane.b32.xlu0 %v1636, 32
    %v1643 = vpop.permute.xlu0 %1642
    %1646 = vrot.lane.b32.xlu0 %v1640, 64
    %v1647 = vpop.permute.xlu0 %1646
    %v1649 = vsel %vm467, %v1643, %v1647
    %v1650 = vld [vmem:[#allocation3 + $0xa0] sm:$0xff]
    %v1651 = vld [vmem:[#allocation3 + $0xa8] sm:$0xff]
    %v1653 = vsel %vm358, %v1649, 0
    %1655 = vmatprep.subr.mxu0 0.0
    %1656 = vmatpush1.msra.mxu0 0.0
    %1657 = vmatprep.subr.mxu0 0.0
    %1658 = vmatpush1.msra.mxu0 0.0
    %1659 = vmatprep.subr.mxu0 0.0
    %1660 = vmatpush1.msra.mxu0 0.0
    %1661 = vmatprep.subr.mxu0 0.0
    %1662 = vmatpush1.msra.mxu0 0.0
    %1663 = vmatprep.subr.mxu0 0.0
    %1664 = vmatpush1.msra.mxu0 0.0
    %1665 = vmatprep.subr.mxu0 0.0
    %1666 = vmatpush1.msra.mxu0 0.0
    %1667 = vmatprep.subr.mxu0 0.0
    %1668 = vmatpush1.msra.mxu0 0.0
    %1669 = vmatprep.subr.mxu0 0.0
    %1670 = vmatpush1.msra.mxu0 0.0
    %1671 = vmatprep.subr.mxu0 %v355
    %1672 = vmatpush1.msra.mxu0 %v354
    %1673 = vmatprep.subr.mxu0 %v353
    %1674 = vmatpush1.msra.mxu0 %v352
    %1675 = vmatprep.subr.mxu0 %v351
    %1676 = vmatpush1.msra.mxu0 %v350
    %1677 = vmatprep.subr.mxu0 %v349
    %1678 = vmatpush1.msra.mxu0 %v348
    %1679 = vmatprep.subr.mxu0 %v347
    %1680 = vmatpush1.msra.mxu0 %v346
    %1681 = vmatprep.subr.mxu0 %v345
    %1682 = vmatpush1.msra.mxu0 %v344
    %1683 = vmatprep.subr.mxu0 %v343
    %1684 = vmatpush1.msra.mxu0 %v342
    %1685 = vmatprep.subr.mxu0 %v341
    %1686 = vmatpush1.msra.mxu0 %v340
    %1687 = vmatprep.subr.mxu0 0.0
    %1688 = vmatpush2.msra.mxu0 0.0
    %1689 = vmatprep.subr.mxu0 0.0
    %1690 = vmatpush2.msra.mxu0 0.0
    %1691 = vmatprep.subr.mxu0 0.0
    %1692 = vmatpush2.msra.mxu0 0.0
    %1693 = vmatprep.subr.mxu0 0.0
    %1694 = vmatpush2.msra.mxu0 0.0
    %1695 = vmatprep.subr.mxu0 0.0
    %1696 = vmatpush2.msra.mxu0 0.0
    %1697 = vmatprep.subr.mxu0 0.0
    %1698 = vmatpush2.msra.mxu0 0.0
    %1699 = vmatprep.subr.mxu0 0.0
    %1700 = vmatpush2.msra.mxu0 0.0
    %1701 = vmatprep.subr.mxu0 0.0
    %1702 = vmatpush2.msra.mxu0 0.0
    %1703 = vmatprep.subr.mxu0 0.0
    %1704 = vmatpush2.msra.mxu0 0.0
    %1705 = vmatprep.subr.mxu0 0.0
    %1706 = vmatpush2.msra.mxu0 0.0
    %1707 = vmatprep.subr.mxu0 0.0
    %1708 = vmatpush2.msra.mxu0 0.0
    %1709 = vmatprep.subr.mxu0 0.0
    %1710 = vmatpush2.msra.mxu0 0.0
    %1711 = vmatprep.subr.mxu0 0.0
    %1712 = vmatpush2.msra.mxu0 0.0
    %1713 = vmatprep.subr.mxu0 0.0
    %1714 = vmatpush2.msra.mxu0 0.0
    %1715 = vmatprep.subr.mxu0 0.0
    %1716 = vmatpush2.msra.mxu0 0.0
    %1717 = vmatprep.subr.mxu0 0.0
    %1718 = vmatpush2.msra.mxu0 0.0
    %1719 = vmatprep.mubr.f32.mxu0 0.0
    %1720 = vmatmul.mubr.f32.gmra.mxu0 %v1653
    %v1721 = vpop.f32.mrf.mxu0
    %v1722 = vadd.f32 %v1650, %v1721
    %v1723 = vpop.f32.mrf.mxu0
    %v1724 = vadd.f32 %v1651, %v1723
    %1725 = vdwg.mxu0
    %v1726 = vtanh.pop %v1722
    %v1727 = vtanh.pop %v1724
    %v1728 = vadd.f32 %v1726, 1.0
    %v1729 = vadd.f32 %v1727, 1.0
    %v1730 = vmul.f32 %v1728, 0.5
    %v1731 = vmul.f32 %v1729, 0.5
    %v1732 = vsel %vm338, %v1726, %v1730
    %v1733 = vsel %vm339, %v1727, %v1731
    %v1734 = vmul.f32 %v1732, %v1614
    %1736 = vrot.lane.b32.xlu0 %v1732, 64
    %v1737 = vpop.permute.xlu0 %1736
    %v1739 = vmul.f32 %v1732, %v1737
    %1741 = vrot.lane.b32.xlu0 %v1739, 32
    %v1742 = vpop.permute.xlu0 %1741
    %v1744 = vadd.f32 %v1734, %v1742
    %v1745 = vmul.f32 %v1733, %v1625
    %1747 = vrot.lane.b32.xlu0 %v1733, 64
    %v1748 = vpop.permute.xlu0 %1747
    %v1750 = vmul.f32 %v1733, %v1748
    %1752 = vrot.lane.b32.xlu0 %v1750, 32
    %v1753 = vpop.permute.xlu0 %1752
    %v1755 = vadd.f32 %v1745, %v1753
    %1757 = vrot.lane.b32.xlu0 %v1744, 96
    %v1758 = vpop.permute.xlu0 %1757
    %v1760 = vsel %vm467, %v1758, %v1755
    %v1761 = vtanh.pop %v1760
    %1763 = vrot.lane.b32.xlu0 %v1761, 96
    %v1764 = vpop.permute.xlu0 %1763
    %v1766 = vmul.f32 %v1732, %v1764
    %1767 = vrot.lane.b32.xlu0 %v1761, 64
    %v1768 = vpop.permute.xlu0 %1767
    %v1770 = vmul.f32 %v1733, %v1768
    %1772 = vrot.lane.b32.xlu0 %v1766, 32
    %v1773 = vpop.permute.xlu0 %1772
    %1776 = vrot.lane.b32.xlu0 %v1770, 64
    %v1777 = vpop.permute.xlu0 %1776
    %v1779 = vsel %vm467, %v1773, %v1777
    %v1780 = vld [vmem:[#allocation3 + $0xb0] sm:$0xff]
    %v1781 = vld [vmem:[#allocation3 + $0xb8] sm:$0xff]
    %v1783 = vsel %vm358, %v1779, 0
    %1785 = vmatprep.subr.mxu0 0.0
    %1786 = vmatpush1.msra.mxu0 0.0
    %1787 = vmatprep.subr.mxu0 0.0
    %1788 = vmatpush1.msra.mxu0 0.0
    %1789 = vmatprep.subr.mxu0 0.0
    %1790 = vmatpush1.msra.mxu0 0.0
    %1791 = vmatprep.subr.mxu0 0.0
    %1792 = vmatpush1.msra.mxu0 0.0
    %1793 = vmatprep.subr.mxu0 0.0
    %1794 = vmatpush1.msra.mxu0 0.0
    %1795 = vmatprep.subr.mxu0 0.0
    %1796 = vmatpush1.msra.mxu0 0.0
    %1797 = vmatprep.subr.mxu0 0.0
    %1798 = vmatpush1.msra.mxu0 0.0
    %1799 = vmatprep.subr.mxu0 0.0
    %1800 = vmatpush1.msra.mxu0 0.0
    %1801 = vmatprep.subr.mxu0 %v355
    %1802 = vmatpush1.msra.mxu0 %v354
    %1803 = vmatprep.subr.mxu0 %v353
    %1804 = vmatpush1.msra.mxu0 %v352
    %1805 = vmatprep.subr.mxu0 %v351
    %1806 = vmatpush1.msra.mxu0 %v350
    %1807 = vmatprep.subr.mxu0 %v349
    %1808 = vmatpush1.msra.mxu0 %v348
    %1809 = vmatprep.subr.mxu0 %v347
    %1810 = vmatpush1.msra.mxu0 %v346
    %1811 = vmatprep.subr.mxu0 %v345
    %1812 = vmatpush1.msra.mxu0 %v344
    %1813 = vmatprep.subr.mxu0 %v343
    %1814 = vmatpush1.msra.mxu0 %v342
    %1815 = vmatprep.subr.mxu0 %v341
    %1816 = vmatpush1.msra.mxu0 %v340
    %1817 = vmatprep.subr.mxu0 0.0
    %1818 = vmatpush2.msra.mxu0 0.0
    %1819 = vmatprep.subr.mxu0 0.0
    %1820 = vmatpush2.msra.mxu0 0.0
    %1821 = vmatprep.subr.mxu0 0.0
    %1822 = vmatpush2.msra.mxu0 0.0
    %1823 = vmatprep.subr.mxu0 0.0
    %1824 = vmatpush2.msra.mxu0 0.0
    %1825 = vmatprep.subr.mxu0 0.0
    %1826 = vmatpush2.msra.mxu0 0.0
    %1827 = vmatprep.subr.mxu0 0.0
    %1828 = vmatpush2.msra.mxu0 0.0
    %1829 = vmatprep.subr.mxu0 0.0
    %1830 = vmatpush2.msra.mxu0 0.0
    %1831 = vmatprep.subr.mxu0 0.0
    %1832 = vmatpush2.msra.mxu0 0.0
    %1833 = vmatprep.subr.mxu0 0.0
    %1834 = vmatpush2.msra.mxu0 0.0
    %1835 = vmatprep.subr.mxu0 0.0
    %1836 = vmatpush2.msra.mxu0 0.0
    %1837 = vmatprep.subr.mxu0 0.0
    %1838 = vmatpush2.msra.mxu0 0.0
    %1839 = vmatprep.subr.mxu0 0.0
    %1840 = vmatpush2.msra.mxu0 0.0
    %1841 = vmatprep.subr.mxu0 0.0
    %1842 = vmatpush2.msra.mxu0 0.0
    %1843 = vmatprep.subr.mxu0 0.0
    %1844 = vmatpush2.msra.mxu0 0.0
    %1845 = vmatprep.subr.mxu0 0.0
    %1846 = vmatpush2.msra.mxu0 0.0
    %1847 = vmatprep.subr.mxu0 0.0
    %1848 = vmatpush2.msra.mxu0 0.0
    %1849 = vmatprep.mubr.f32.mxu0 0.0
    %1850 = vmatmul.mubr.f32.gmra.mxu0 %v1783
    %v1851 = vpop.f32.mrf.mxu0
    %v1852 = vadd.f32 %v1780, %v1851
    %v1853 = vpop.f32.mrf.mxu0
    %v1854 = vadd.f32 %v1781, %v1853
    %1855 = vdwg.mxu0
    %v1856 = vtanh.pop %v1852
    %v1857 = vtanh.pop %v1854
    %v1858 = vadd.f32 %v1856, 1.0
    %v1859 = vadd.f32 %v1857, 1.0
    %v1860 = vmul.f32 %v1858, 0.5
    %v1861 = vmul.f32 %v1859, 0.5
    %v1862 = vsel %vm338, %v1856, %v1860
    %v1863 = vsel %vm339, %v1857, %v1861
    %v1864 = vmul.f32 %v1862, %v1744
    %1866 = vrot.lane.b32.xlu0 %v1862, 64
    %v1867 = vpop.permute.xlu0 %1866
    %v1869 = vmul.f32 %v1862, %v1867
    %1871 = vrot.lane.b32.xlu0 %v1869, 32
    %v1872 = vpop.permute.xlu0 %1871
    %v1874 = vadd.f32 %v1864, %v1872
    %v1875 = vmul.f32 %v1863, %v1755
    %1877 = vrot.lane.b32.xlu0 %v1863, 64
    %v1878 = vpop.permute.xlu0 %1877
    %v1880 = vmul.f32 %v1863, %v1878
    %1882 = vrot.lane.b32.xlu0 %v1880, 32
    %v1883 = vpop.permute.xlu0 %1882
    %v1885 = vadd.f32 %v1875, %v1883
    %1887 = vrot.lane.b32.xlu0 %v1874, 96
    %v1888 = vpop.permute.xlu0 %1887
    %v1890 = vsel %vm467, %v1888, %v1885
    %v1891 = vtanh.pop %v1890
    %1893 = vrot.lane.b32.xlu0 %v1891, 96
    %v1894 = vpop.permute.xlu0 %1893
    %v1896 = vmul.f32 %v1862, %v1894
    %1897 = vrot.lane.b32.xlu0 %v1891, 64
    %v1898 = vpop.permute.xlu0 %1897
    %v1900 = vmul.f32 %v1863, %v1898
    %1902 = vrot.lane.b32.xlu0 %v1896, 32
    %v1903 = vpop.permute.xlu0 %1902
    %1906 = vrot.lane.b32.xlu0 %v1900, 64
    %v1907 = vpop.permute.xlu0 %1906
    %v1909 = vsel %vm467, %v1903, %v1907
    %v1910 = vld [vmem:[#allocation3 + $0xc0] sm:$0xff]
    %v1911 = vld [vmem:[#allocation3 + $0xc8] sm:$0xff]
    %v1913 = vsel %vm358, %v1909, 0
    %1915 = vmatprep.subr.mxu0 0.0
    %1916 = vmatpush1.msra.mxu0 0.0
    %1917 = vmatprep.subr.mxu0 0.0
    %1918 = vmatpush1.msra.mxu0 0.0
    %1919 = vmatprep.subr.mxu0 0.0
    %1920 = vmatpush1.msra.mxu0 0.0
    %1921 = vmatprep.subr.mxu0 0.0
    %1922 = vmatpush1.msra.mxu0 0.0
    %1923 = vmatprep.subr.mxu0 0.0
    %1924 = vmatpush1.msra.mxu0 0.0
    %1925 = vmatprep.subr.mxu0 0.0
    %1926 = vmatpush1.msra.mxu0 0.0
    %1927 = vmatprep.subr.mxu0 0.0
    %1928 = vmatpush1.msra.mxu0 0.0
    %1929 = vmatprep.subr.mxu0 0.0
    %1930 = vmatpush1.msra.mxu0 0.0
    %1931 = vmatprep.subr.mxu0 %v355
    %1932 = vmatpush1.msra.mxu0 %v354
    %1933 = vmatprep.subr.mxu0 %v353
    %1934 = vmatpush1.msra.mxu0 %v352
    %1935 = vmatprep.subr.mxu0 %v351
    %1936 = vmatpush1.msra.mxu0 %v350
    %1937 = vmatprep.subr.mxu0 %v349
    %1938 = vmatpush1.msra.mxu0 %v348
    %1939 = vmatprep.subr.mxu0 %v347
    %1940 = vmatpush1.msra.mxu0 %v346
    %1941 = vmatprep.subr.mxu0 %v345
    %1942 = vmatpush1.msra.mxu0 %v344
    %1943 = vmatprep.subr.mxu0 %v343
    %1944 = vmatpush1.msra.mxu0 %v342
    %1945 = vmatprep.subr.mxu0 %v341
    %1946 = vmatpush1.msra.mxu0 %v340
    %1947 = vmatprep.subr.mxu0 0.0
    %1948 = vmatpush2.msra.mxu0 0.0
    %1949 = vmatprep.subr.mxu0 0.0
    %1950 = vmatpush2.msra.mxu0 0.0
    %1951 = vmatprep.subr.mxu0 0.0
    %1952 = vmatpush2.msra.mxu0 0.0
    %1953 = vmatprep.subr.mxu0 0.0
    %1954 = vmatpush2.msra.mxu0 0.0
    %1955 = vmatprep.subr.mxu0 0.0
    %1956 = vmatpush2.msra.mxu0 0.0
    %1957 = vmatprep.subr.mxu0 0.0
    %1958 = vmatpush2.msra.mxu0 0.0
    %1959 = vmatprep.subr.mxu0 0.0
    %1960 = vmatpush2.msra.mxu0 0.0
    %1961 = vmatprep.subr.mxu0 0.0
    %1962 = vmatpush2.msra.mxu0 0.0
    %1963 = vmatprep.subr.mxu0 0.0
    %1964 = vmatpush2.msra.mxu0 0.0
    %1965 = vmatprep.subr.mxu0 0.0
    %1966 = vmatpush2.msra.mxu0 0.0
    %1967 = vmatprep.subr.mxu0 0.0
    %1968 = vmatpush2.msra.mxu0 0.0
    %1969 = vmatprep.subr.mxu0 0.0
    %1970 = vmatpush2.msra.mxu0 0.0
    %1971 = vmatprep.subr.mxu0 0.0
    %1972 = vmatpush2.msra.mxu0 0.0
    %1973 = vmatprep.subr.mxu0 0.0
    %1974 = vmatpush2.msra.mxu0 0.0
    %1975 = vmatprep.subr.mxu0 0.0
    %1976 = vmatpush2.msra.mxu0 0.0
    %1977 = vmatprep.subr.mxu0 0.0
    %1978 = vmatpush2.msra.mxu0 0.0
    %1979 = vmatprep.mubr.f32.mxu0 0.0
    %1980 = vmatmul.mubr.f32.gmra.mxu0 %v1913
    %v1981 = vpop.f32.mrf.mxu0
    %v1982 = vadd.f32 %v1910, %v1981
    %v1983 = vpop.f32.mrf.mxu0
    %v1984 = vadd.f32 %v1911, %v1983
    %1985 = vdwg.mxu0
    %v1986 = vtanh.pop %v1982
    %v1987 = vtanh.pop %v1984
    %v1988 = vadd.f32 %v1986, 1.0
    %v1989 = vadd.f32 %v1987, 1.0
    %v1990 = vmul.f32 %v1988, 0.5
    %v1991 = vmul.f32 %v1989, 0.5
    %v1992 = vsel %vm338, %v1986, %v1990
    %v1993 = vsel %vm339, %v1987, %v1991
    %v1994 = vmul.f32 %v1992, %v1874
    %1996 = vrot.lane.b32.xlu0 %v1992, 64
    %v1997 = vpop.permute.xlu0 %1996
    %v1999 = vmul.f32 %v1992, %v1997
    %2001 = vrot.lane.b32.xlu0 %v1999, 32
    %v2002 = vpop.permute.xlu0 %2001
    %v2004 = vadd.f32 %v1994, %v2002
    %v2005 = vmul.f32 %v1993, %v1885
    %2007 = vrot.lane.b32.xlu0 %v1993, 64
    %v2008 = vpop.permute.xlu0 %2007
    %v2010 = vmul.f32 %v1993, %v2008
    %2012 = vrot.lane.b32.xlu0 %v2010, 32
    %v2013 = vpop.permute.xlu0 %2012
    %v2015 = vadd.f32 %v2005, %v2013
    %2017 = vrot.lane.b32.xlu0 %v2004, 96
    %v2018 = vpop.permute.xlu0 %2017
    %v2020 = vsel %vm467, %v2018, %v2015
    %v2021 = vtanh.pop %v2020
    %2023 = vrot.lane.b32.xlu0 %v2021, 96
    %v2024 = vpop.permute.xlu0 %2023
    %v2026 = vmul.f32 %v1992, %v2024
    %2027 = vrot.lane.b32.xlu0 %v2021, 64
    %v2028 = vpop.permute.xlu0 %2027
    %v2030 = vmul.f32 %v1993, %v2028
    %2032 = vrot.lane.b32.xlu0 %v2026, 32
    %v2033 = vpop.permute.xlu0 %2032
    %2036 = vrot.lane.b32.xlu0 %v2030, 64
    %v2037 = vpop.permute.xlu0 %2036
    %v2039 = vsel %vm467, %v2033, %v2037
    %v2040 = vld [vmem:[#allocation3 + $0xd0] sm:$0xff]
    %v2041 = vld [vmem:[#allocation3 + $0xd8] sm:$0xff]
    %v2043 = vsel %vm358, %v2039, 0
    %2045 = vmatprep.subr.mxu0 0.0
    %2046 = vmatpush1.msra.mxu0 0.0
    %2047 = vmatprep.subr.mxu0 0.0
    %2048 = vmatpush1.msra.mxu0 0.0
    %2049 = vmatprep.subr.mxu0 0.0
    %2050 = vmatpush1.msra.mxu0 0.0
    %2051 = vmatprep.subr.mxu0 0.0
    %2052 = vmatpush1.msra.mxu0 0.0
    %2053 = vmatprep.subr.mxu0 0.0
    %2054 = vmatpush1.msra.mxu0 0.0
    %2055 = vmatprep.subr.mxu0 0.0
    %2056 = vmatpush1.msra.mxu0 0.0
    %2057 = vmatprep.subr.mxu0 0.0
    %2058 = vmatpush1.msra.mxu0 0.0
    %2059 = vmatprep.subr.mxu0 0.0
    %2060 = vmatpush1.msra.mxu0 0.0
    %2061 = vmatprep.subr.mxu0 %v355
    %2062 = vmatpush1.msra.mxu0 %v354
    %2063 = vmatprep.subr.mxu0 %v353
    %2064 = vmatpush1.msra.mxu0 %v352
    %2065 = vmatprep.subr.mxu0 %v351
    %2066 = vmatpush1.msra.mxu0 %v350
    %2067 = vmatprep.subr.mxu0 %v349
    %2068 = vmatpush1.msra.mxu0 %v348
    %2069 = vmatprep.subr.mxu0 %v347
    %2070 = vmatpush1.msra.mxu0 %v346
    %2071 = vmatprep.subr.mxu0 %v345
    %2072 = vmatpush1.msra.mxu0 %v344
    %2073 = vmatprep.subr.mxu0 %v343
    %2074 = vmatpush1.msra.mxu0 %v342
    %2075 = vmatprep.subr.mxu0 %v341
    %2076 = vmatpush1.msra.mxu0 %v340
    %2077 = vmatprep.subr.mxu0 0.0
    %2078 = vmatpush2.msra.mxu0 0.0
    %2079 = vmatprep.subr.mxu0 0.0
    %2080 = vmatpush2.msra.mxu0 0.0
    %2081 = vmatprep.subr.mxu0 0.0
    %2082 = vmatpush2.msra.mxu0 0.0
    %2083 = vmatprep.subr.mxu0 0.0
    %2084 = vmatpush2.msra.mxu0 0.0
    %2085 = vmatprep.subr.mxu0 0.0
    %2086 = vmatpush2.msra.mxu0 0.0
    %2087 = vmatprep.subr.mxu0 0.0
    %2088 = vmatpush2.msra.mxu0 0.0
    %2089 = vmatprep.subr.mxu0 0.0
    %2090 = vmatpush2.msra.mxu0 0.0
    %2091 = vmatprep.subr.mxu0 0.0
    %2092 = vmatpush2.msra.mxu0 0.0
    %2093 = vmatprep.subr.mxu0 0.0
    %2094 = vmatpush2.msra.mxu0 0.0
    %2095 = vmatprep.subr.mxu0 0.0
    %2096 = vmatpush2.msra.mxu0 0.0
    %2097 = vmatprep.subr.mxu0 0.0
    %2098 = vmatpush2.msra.mxu0 0.0
    %2099 = vmatprep.subr.mxu0 0.0
    %2100 = vmatpush2.msra.mxu0 0.0
    %2101 = vmatprep.subr.mxu0 0.0
    %2102 = vmatpush2.msra.mxu0 0.0
    %2103 = vmatprep.subr.mxu0 0.0
    %2104 = vmatpush2.msra.mxu0 0.0
    %2105 = vmatprep.subr.mxu0 0.0
    %2106 = vmatpush2.msra.mxu0 0.0
    %2107 = vmatprep.subr.mxu0 0.0
    %2108 = vmatpush2.msra.mxu0 0.0
    %2109 = vmatprep.mubr.f32.mxu0 0.0
    %2110 = vmatmul.mubr.f32.gmra.mxu0 %v2043
    %v2111 = vpop.f32.mrf.mxu0
    %v2112 = vadd.f32 %v2040, %v2111
    %v2113 = vpop.f32.mrf.mxu0
    %v2114 = vadd.f32 %v2041, %v2113
    %2115 = vdwg.mxu0
    %v2116 = vtanh.pop %v2112
    %v2117 = vtanh.pop %v2114
    %v2118 = vadd.f32 %v2116, 1.0
    %v2119 = vadd.f32 %v2117, 1.0
    %v2120 = vmul.f32 %v2118, 0.5
    %v2121 = vmul.f32 %v2119, 0.5
    %v2122 = vsel %vm338, %v2116, %v2120
    %v2123 = vsel %vm339, %v2117, %v2121
    %v2124 = vmul.f32 %v2122, %v2004
    %2126 = vrot.lane.b32.xlu0 %v2122, 64
    %v2127 = vpop.permute.xlu0 %2126
    %v2129 = vmul.f32 %v2122, %v2127
    %2131 = vrot.lane.b32.xlu0 %v2129, 32
    %v2132 = vpop.permute.xlu0 %2131
    %v2134 = vadd.f32 %v2124, %v2132
    %v2135 = vmul.f32 %v2123, %v2015
    %2137 = vrot.lane.b32.xlu0 %v2123, 64
    %v2138 = vpop.permute.xlu0 %2137
    %v2140 = vmul.f32 %v2123, %v2138
    %2142 = vrot.lane.b32.xlu0 %v2140, 32
    %v2143 = vpop.permute.xlu0 %2142
    %v2145 = vadd.f32 %v2135, %v2143
    %2147 = vrot.lane.b32.xlu0 %v2134, 96
    %v2148 = vpop.permute.xlu0 %2147
    %v2150 = vsel %vm467, %v2148, %v2145
    %v2151 = vtanh.pop %v2150
    %2153 = vrot.lane.b32.xlu0 %v2151, 96
    %v2154 = vpop.permute.xlu0 %2153
    %v2156 = vmul.f32 %v2122, %v2154
    %2157 = vrot.lane.b32.xlu0 %v2151, 64
    %v2158 = vpop.permute.xlu0 %2157
    %v2160 = vmul.f32 %v2123, %v2158
    %2162 = vrot.lane.b32.xlu0 %v2160, 32
    %v2163 = vpop.permute.xlu0 %2162
    %2165 = vst.msk [vmem:[#allocation2] sm:$0xff] %vm467, %v2163
    %2167 = vrot.lane.b32.xlu0 %v2156, 32
    %v2168 = vpop.permute.xlu0 %2167
    %2170 = vrot.lane.b32.xlu0 %v2160, 64
    %v2171 = vpop.permute.xlu0 %2170
    %v2173 = vsel %vm467, %v2168, %v2171
    %v2174 = vld [vmem:[#allocation3 + $0xe0] sm:$0xff]
    %v2175 = vld [vmem:[#allocation3 + $0xe8] sm:$0xff]
    %v2177 = vsel %vm358, %v2173, 0
    %2179 = vmatprep.subr.mxu0 0.0
    %2180 = vmatpush1.msra.mxu0 0.0
    %2181 = vmatprep.subr.mxu0 0.0
    %2182 = vmatpush1.msra.mxu0 0.0
    %2183 = vmatprep.subr.mxu0 0.0
    %2184 = vmatpush1.msra.mxu0 0.0
    %2185 = vmatprep.subr.mxu0 0.0
    %2186 = vmatpush1.msra.mxu0 0.0
    %2187 = vmatprep.subr.mxu0 0.0
    %2188 = vmatpush1.msra.mxu0 0.0
    %2189 = vmatprep.subr.mxu0 0.0
    %2190 = vmatpush1.msra.mxu0 0.0
    %2191 = vmatprep.subr.mxu0 0.0
    %2192 = vmatpush1.msra.mxu0 0.0
    %2193 = vmatprep.subr.mxu0 0.0
    %2194 = vmatpush1.msra.mxu0 0.0
    %2195 = vmatprep.subr.mxu0 %v355
    %2196 = vmatpush1.msra.mxu0 %v354
    %2197 = vmatprep.subr.mxu0 %v353
    %2198 = vmatpush1.msra.mxu0 %v352
    %2199 = vmatprep.subr.mxu0 %v351
    %2200 = vmatpush1.msra.mxu0 %v350
    %2201 = vmatprep.subr.mxu0 %v349
    %2202 = vmatpush1.msra.mxu0 %v348
    %2203 = vmatprep.subr.mxu0 %v347
    %2204 = vmatpush1.msra.mxu0 %v346
    %2205 = vmatprep.subr.mxu0 %v345
    %2206 = vmatpush1.msra.mxu0 %v344
    %2207 = vmatprep.subr.mxu0 %v343
    %2208 = vmatpush1.msra.mxu0 %v342
    %2209 = vmatprep.subr.mxu0 %v341
    %2210 = vmatpush1.msra.mxu0 %v340
    %2211 = vmatprep.subr.mxu0 0.0
    %2212 = vmatpush2.msra.mxu0 0.0
    %2213 = vmatprep.subr.mxu0 0.0
    %2214 = vmatpush2.msra.mxu0 0.0
    %2215 = vmatprep.subr.mxu0 0.0
    %2216 = vmatpush2.msra.mxu0 0.0
    %2217 = vmatprep.subr.mxu0 0.0
    %2218 = vmatpush2.msra.mxu0 0.0
    %2219 = vmatprep.subr.mxu0 0.0
    %2220 = vmatpush2.msra.mxu0 0.0
    %2221 = vmatprep.subr.mxu0 0.0
    %2222 = vmatpush2.msra.mxu0 0.0
    %2223 = vmatprep.subr.mxu0 0.0
    %2224 = vmatpush2.msra.mxu0 0.0
    %2225 = vmatprep.subr.mxu0 0.0
    %2226 = vmatpush2.msra.mxu0 0.0
    %2227 = vmatprep.subr.mxu0 0.0
    %2228 = vmatpush2.msra.mxu0 0.0
    %2229 = vmatprep.subr.mxu0 0.0
    %2230 = vmatpush2.msra.mxu0 0.0
    %2231 = vmatprep.subr.mxu0 0.0
    %2232 = vmatpush2.msra.mxu0 0.0
    %2233 = vmatprep.subr.mxu0 0.0
    %2234 = vmatpush2.msra.mxu0 0.0
    %2235 = vmatprep.subr.mxu0 0.0
    %2236 = vmatpush2.msra.mxu0 0.0
    %2237 = vmatprep.subr.mxu0 0.0
    %2238 = vmatpush2.msra.mxu0 0.0
    %2239 = vmatprep.subr.mxu0 0.0
    %2240 = vmatpush2.msra.mxu0 0.0
    %2241 = vmatprep.subr.mxu0 0.0
    %2242 = vmatpush2.msra.mxu0 0.0
    %2243 = vmatprep.mubr.f32.mxu0 0.0
    %2244 = vmatmul.mubr.f32.gmra.mxu0 %v2177
    %v2245 = vpop.f32.mrf.mxu0
    %v2246 = vadd.f32 %v2174, %v2245
    %v2247 = vpop.f32.mrf.mxu0
    %v2248 = vadd.f32 %v2175, %v2247
    %2249 = vdwg.mxu0
    %v2250 = vtanh.pop %v2246
    %v2251 = vtanh.pop %v2248
    %v2252 = vadd.f32 %v2250, 1.0
    %v2253 = vadd.f32 %v2251, 1.0
    %v2254 = vmul.f32 %v2252, 0.5
    %v2255 = vmul.f32 %v2253, 0.5
    %v2256 = vsel %vm338, %v2250, %v2254
    %v2257 = vsel %vm339, %v2251, %v2255
    %v2258 = vmul.f32 %v2256, %v2134
    %2260 = vrot.lane.b32.xlu0 %v2256, 64
    %v2261 = vpop.permute.xlu0 %2260
    %v2263 = vmul.f32 %v2256, %v2261
    %2265 = vrot.lane.b32.xlu0 %v2263, 32
    %v2266 = vpop.permute.xlu0 %2265
    %v2268 = vadd.f32 %v2258, %v2266
    %v2269 = vmul.f32 %v2257, %v2145
    %2271 = vrot.lane.b32.xlu0 %v2257, 64
    %v2272 = vpop.permute.xlu0 %2271
    %v2274 = vmul.f32 %v2257, %v2272
    %2276 = vrot.lane.b32.xlu0 %v2274, 32
    %v2277 = vpop.permute.xlu0 %2276
    %v2279 = vadd.f32 %v2269, %v2277
    %2281 = vrot.lane.b32.xlu0 %v2268, 96
    %v2282 = vpop.permute.xlu0 %2281
    %v2284 = vsel %vm467, %v2282, %v2279
    %v2285 = vtanh.pop %v2284
    %2287 = vrot.lane.b32.xlu0 %v2285, 96
    %v2288 = vpop.permute.xlu0 %2287
    %v2290 = vmul.f32 %v2256, %v2288
    %2291 = vrot.lane.b32.xlu0 %v2285, 64
    %v2292 = vpop.permute.xlu0 %2291
    %v2294 = vmul.f32 %v2257, %v2292
    %2296 = vrot.lane.b32.xlu0 %v2294, 32
    %v2297 = vpop.permute.xlu0 %2296
    %2299 = vst.msk [vmem:[#allocation2 + $0x8] sm:$0xff] %vm467, %v2297
    %2301 = vrot.lane.b32.xlu0 %v2290, 32
    %v2302 = vpop.permute.xlu0 %2301
    %2304 = vrot.lane.b32.xlu0 %v2294, 64
    %v2305 = vpop.permute.xlu0 %2304
    %v2307 = vsel %vm467, %v2302, %v2305
    %v2308 = vld [vmem:[#allocation3 + $0xf0] sm:$0xff]
    %v2309 = vld [vmem:[#allocation3 + $0xf8] sm:$0xff]
    %v2311 = vsel %vm358, %v2307, 0
    %2313 = vmatprep.subr.mxu0 0.0
    %2314 = vmatpush1.msra.mxu0 0.0
    %2315 = vmatprep.subr.mxu0 0.0
    %2316 = vmatpush1.msra.mxu0 0.0
    %2317 = vmatprep.subr.mxu0 0.0
    %2318 = vmatpush1.msra.mxu0 0.0
    %2319 = vmatprep.subr.mxu0 0.0
    %2320 = vmatpush1.msra.mxu0 0.0
    %2321 = vmatprep.subr.mxu0 0.0
    %2322 = vmatpush1.msra.mxu0 0.0
    %2323 = vmatprep.subr.mxu0 0.0
    %2324 = vmatpush1.msra.mxu0 0.0
    %2325 = vmatprep.subr.mxu0 0.0
    %2326 = vmatpush1.msra.mxu0 0.0
    %2327 = vmatprep.subr.mxu0 0.0
    %2328 = vmatpush1.msra.mxu0 0.0
    %2329 = vmatprep.subr.mxu0 %v355
    %2330 = vmatpush1.msra.mxu0 %v354
    %2331 = vmatprep.subr.mxu0 %v353
    %2332 = vmatpush1.msra.mxu0 %v352
    %2333 = vmatprep.subr.mxu0 %v351
    %2334 = vmatpush1.msra.mxu0 %v350
    %2335 = vmatprep.subr.mxu0 %v349
    %2336 = vmatpush1.msra.mxu0 %v348
    %2337 = vmatprep.subr.mxu0 %v347
    %2338 = vmatpush1.msra.mxu0 %v346
    %2339 = vmatprep.subr.mxu0 %v345
    %2340 = vmatpush1.msra.mxu0 %v344
    %2341 = vmatprep.subr.mxu0 %v343
    %2342 = vmatpush1.msra.mxu0 %v342
    %2343 = vmatprep.subr.mxu0 %v341
    %2344 = vmatpush1.msra.mxu0 %v340
    %2345 = vmatprep.subr.mxu0 0.0
    %2346 = vmatpush2.msra.mxu0 0.0
    %2347 = vmatprep.subr.mxu0 0.0
    %2348 = vmatpush2.msra.mxu0 0.0
    %2349 = vmatprep.subr.mxu0 0.0
    %2350 = vmatpush2.msra.mxu0 0.0
    %2351 = vmatprep.subr.mxu0 0.0
    %2352 = vmatpush2.msra.mxu0 0.0
    %2353 = vmatprep.subr.mxu0 0.0
    %2354 = vmatpush2.msra.mxu0 0.0
    %2355 = vmatprep.subr.mxu0 0.0
    %2356 = vmatpush2.msra.mxu0 0.0
    %2357 = vmatprep.subr.mxu0 0.0
    %2358 = vmatpush2.msra.mxu0 0.0
    %2359 = vmatprep.subr.mxu0 0.0
    %2360 = vmatpush2.msra.mxu0 0.0
    %2361 = vmatprep.subr.mxu0 0.0
    %2362 = vmatpush2.msra.mxu0 0.0
    %2363 = vmatprep.subr.mxu0 0.0
    %2364 = vmatpush2.msra.mxu0 0.0
    %2365 = vmatprep.subr.mxu0 0.0
    %2366 = vmatpush2.msra.mxu0 0.0
    %2367 = vmatprep.subr.mxu0 0.0
    %2368 = vmatpush2.msra.mxu0 0.0
    %2369 = vmatprep.subr.mxu0 0.0
    %2370 = vmatpush2.msra.mxu0 0.0
    %2371 = vmatprep.subr.mxu0 0.0
    %2372 = vmatpush2.msra.mxu0 0.0
    %2373 = vmatprep.subr.mxu0 0.0
    %2374 = vmatpush2.msra.mxu0 0.0
    %2375 = vmatprep.subr.mxu0 0.0
    %2376 = vmatpush2.msra.mxu0 0.0
    %2377 = vmatprep.mubr.f32.mxu0 0.0
    %2378 = vmatmul.mubr.f32.gmra.mxu0 %v2311
    %v2379 = vpop.f32.mrf.mxu0
    %v2380 = vadd.f32 %v2308, %v2379
    %v2381 = vpop.f32.mrf.mxu0
    %v2382 = vadd.f32 %v2309, %v2381
    %2383 = vdwg.mxu0
    %v2384 = vtanh.pop %v2380
    %v2385 = vtanh.pop %v2382
    %v2386 = vadd.f32 %v2384, 1.0
    %v2387 = vadd.f32 %v2385, 1.0
    %v2388 = vmul.f32 %v2386, 0.5
    %v2389 = vmul.f32 %v2387, 0.5
    %v2390 = vsel %vm338, %v2384, %v2388
    %v2391 = vsel %vm339, %v2385, %v2389
    %v2392 = vmul.f32 %v2390, %v2268
    %2394 = vrot.lane.b32.xlu0 %v2390, 64
    %v2395 = vpop.permute.xlu0 %2394
    %v2397 = vmul.f32 %v2390, %v2395
    %2399 = vrot.lane.b32.xlu0 %v2397, 32
    %v2400 = vpop.permute.xlu0 %2399
    %v2402 = vadd.f32 %v2392, %v2400
    %v2403 = vmul.f32 %v2391, %v2279
    %2405 = vrot.lane.b32.xlu0 %v2391, 64
    %v2406 = vpop.permute.xlu0 %2405
    %v2408 = vmul.f32 %v2391, %v2406
    %2410 = vrot.lane.b32.xlu0 %v2408, 32
    %v2411 = vpop.permute.xlu0 %2410
    %v2413 = vadd.f32 %v2403, %v2411
    %2415 = vrot.lane.b32.xlu0 %v2402, 96
    %v2416 = vpop.permute.xlu0 %2415
    %v2418 = vsel %vm467, %v2416, %v2413
    %v2419 = vtanh.pop %v2418
    %2421 = vrot.lane.b32.xlu0 %v2419, 96
    %v2422 = vpop.permute.xlu0 %2421
    %v2424 = vmul.f32 %v2390, %v2422
    %2425 = vrot.lane.b32.xlu0 %v2419, 64
    %v2426 = vpop.permute.xlu0 %2425
    %v2428 = vmul.f32 %v2391, %v2426
    %2430 = vrot.lane.b32.xlu0 %v2428, 32
    %v2431 = vpop.permute.xlu0 %2430
    %2433 = vst.msk [vmem:[#allocation2 + $0x10] sm:$0xff] %vm467, %v2431
    %2435 = vrot.lane.b32.xlu0 %v2424, 32
    %v2436 = vpop.permute.xlu0 %2435
    %2438 = vrot.lane.b32.xlu0 %v2428, 64
    %v2439 = vpop.permute.xlu0 %2438
    %v2441 = vsel %vm467, %v2436, %v2439
    %v2442 = vld [vmem:[#allocation3 + $0xf0] sm:$0xff]
    %v2443 = vld [vmem:[#allocation3 + $0xf8] sm:$0xff]
    %v2445 = vsel %vm358, %v2441, 0
    %2447 = vmatprep.subr.mxu0 0.0
    %2448 = vmatpush1.msra.mxu0 0.0
    %2449 = vmatprep.subr.mxu0 0.0
    %2450 = vmatpush1.msra.mxu0 0.0
    %2451 = vmatprep.subr.mxu0 0.0
    %2452 = vmatpush1.msra.mxu0 0.0
    %2453 = vmatprep.subr.mxu0 0.0
    %2454 = vmatpush1.msra.mxu0 0.0
    %2455 = vmatprep.subr.mxu0 0.0
    %2456 = vmatpush1.msra.mxu0 0.0
    %2457 = vmatprep.subr.mxu0 0.0
    %2458 = vmatpush1.msra.mxu0 0.0
    %2459 = vmatprep.subr.mxu0 0.0
    %2460 = vmatpush1.msra.mxu0 0.0
    %2461 = vmatprep.subr.mxu0 0.0
    %2462 = vmatpush1.msra.mxu0 0.0
    %2463 = vmatprep.subr.mxu0 %v355
    %2464 = vmatpush1.msra.mxu0 %v354
    %2465 = vmatprep.subr.mxu0 %v353
    %2466 = vmatpush1.msra.mxu0 %v352
    %2467 = vmatprep.subr.mxu0 %v351
    %2468 = vmatpush1.msra.mxu0 %v350
    %2469 = vmatprep.subr.mxu0 %v349
    %2470 = vmatpush1.msra.mxu0 %v348
    %2471 = vmatprep.subr.mxu0 %v347
    %2472 = vmatpush1.msra.mxu0 %v346
    %2473 = vmatprep.subr.mxu0 %v345
    %2474 = vmatpush1.msra.mxu0 %v344
    %2475 = vmatprep.subr.mxu0 %v343
    %2476 = vmatpush1.msra.mxu0 %v342
    %2477 = vmatprep.subr.mxu0 %v341
    %2478 = vmatpush1.msra.mxu0 %v340
    %2479 = vmatprep.subr.mxu0 0.0
    %2480 = vmatpush2.msra.mxu0 0.0
    %2481 = vmatprep.subr.mxu0 0.0
    %2482 = vmatpush2.msra.mxu0 0.0
    %2483 = vmatprep.subr.mxu0 0.0
    %2484 = vmatpush2.msra.mxu0 0.0
    %2485 = vmatprep.subr.mxu0 0.0
    %2486 = vmatpush2.msra.mxu0 0.0
    %2487 = vmatprep.subr.mxu0 0.0
    %2488 = vmatpush2.msra.mxu0 0.0
    %2489 = vmatprep.subr.mxu0 0.0
    %2490 = vmatpush2.msra.mxu0 0.0
    %2491 = vmatprep.subr.mxu0 0.0
    %2492 = vmatpush2.msra.mxu0 0.0
    %2493 = vmatprep.subr.mxu0 0.0
    %2494 = vmatpush2.msra.mxu0 0.0
    %2495 = vmatprep.subr.mxu0 0.0
    %2496 = vmatpush2.msra.mxu0 0.0
    %2497 = vmatprep.subr.mxu0 0.0
    %2498 = vmatpush2.msra.mxu0 0.0
    %2499 = vmatprep.subr.mxu0 0.0
    %2500 = vmatpush2.msra.mxu0 0.0
    %2501 = vmatprep.subr.mxu0 0.0
    %2502 = vmatpush2.msra.mxu0 0.0
    %2503 = vmatprep.subr.mxu0 0.0
    %2504 = vmatpush2.msra.mxu0 0.0
    %2505 = vmatprep.subr.mxu0 0.0
    %2506 = vmatpush2.msra.mxu0 0.0
    %2507 = vmatprep.subr.mxu0 0.0
    %2508 = vmatpush2.msra.mxu0 0.0
    %2509 = vmatprep.subr.mxu0 0.0
    %2510 = vmatpush2.msra.mxu0 0.0
    %2511 = vmatprep.mubr.f32.mxu0 0.0
    %2512 = vmatmul.mubr.f32.gmra.mxu0 %v2445
    %v2513 = vpop.f32.mrf.mxu0
    %v2514 = vadd.f32 %v2442, %v2513
    %v2515 = vpop.f32.mrf.mxu0
    %v2516 = vadd.f32 %v2443, %v2515
    %2517 = vdwg.mxu0
    %v2518 = vtanh.pop %v2514
    %v2519 = vtanh.pop %v2516
    %v2520 = vadd.f32 %v2518, 1.0
    %v2521 = vadd.f32 %v2519, 1.0
    %v2522 = vmul.f32 %v2520, 0.5
    %v2523 = vmul.f32 %v2521, 0.5
    %v2524 = vsel %vm338, %v2518, %v2522
    %v2525 = vsel %vm339, %v2519, %v2523
    %v2526 = vmul.f32 %v2524, %v2402
    %2528 = vrot.lane.b32.xlu0 %v2524, 64
    %v2529 = vpop.permute.xlu0 %2528
    %v2531 = vmul.f32 %v2524, %v2529
    %2533 = vrot.lane.b32.xlu0 %v2531, 32
    %v2534 = vpop.permute.xlu0 %2533
    %v2536 = vadd.f32 %v2526, %v2534
    %v2537 = vmul.f32 %v2525, %v2413
    %2539 = vrot.lane.b32.xlu0 %v2525, 64
    %v2540 = vpop.permute.xlu0 %2539
    %v2542 = vmul.f32 %v2525, %v2540
    %2544 = vrot.lane.b32.xlu0 %v2542, 32
    %v2545 = vpop.permute.xlu0 %2544
    %v2547 = vadd.f32 %v2537, %v2545
    %2549 = vrot.lane.b32.xlu0 %v2536, 96
    %v2550 = vpop.permute.xlu0 %2549
    %v2552 = vsel %vm467, %v2550, %v2547
    %v2553 = vtanh.pop %v2552
    %2555 = vrot.lane.b32.xlu0 %v2553, 64
    %v2556 = vpop.permute.xlu0 %2555
    %v2558 = vmul.f32 %v2525, %v2556
    %2560 = vrot.lane.b32.xlu0 %v2558, 32
    %v2561 = vpop.permute.xlu0 %2560
    %2563 = vst.msk [vmem:[#allocation2 + $0x18] sm:$0xff] %vm467, %v2561
    %v2564 = vld [vmem:[#allocation2] sm:$0xff]
    %v2565 = vld [vmem:[#allocation2 + $0x8] sm:$0xff]
    %v2566 = vld [vmem:[#allocation2 + $0x10] sm:$0xff]
    %v2567 = vld [vmem:[#allocation2 + $0x18] sm:$0xff]
    %v2568 = vmax.f32 %v2564, 0.0
    %v2569 = vmax.f32 %v2565, 0.0
    %v2570 = vmax.f32 %v2566, 0.0
    %v2571 = vmax.f32 %v2567, 0.0
    %v2572 = vld [vmem:[%s4] sm:$0xff]
    %v2573 = vld [vmem:[%s4 + $0x8] sm:$0xff]
    %v2574 = vld [vmem:[%s4 + $0x10] sm:$0xff]
    %v2575 = vld [vmem:[%s4 + $0x18] sm:$0xff]
    %v2576 = vld [vmem:[%s5] sm:$0x1]
    %v2578 = vlaneseq
    %v2579 = vshrl.u32 %v2578, 7
    %v2580 = vsub.s32 0, %v2579
    %v2581 = vrot.slane %v2576, %v2580
    %v2584 = vsel %vm467, %v2568, 0
    %v2587 = vsel %vm467, %v2569, 0
    %v2590 = vsel %vm467, %v2570, 0
    %v2593 = vsel %vm467, %v2571, 0
    %2595 = vmatprep.subr.mxu0 0.0
    %2596 = vmatpush1.msra.mxu0 0.0
    %2597 = vmatprep.subr.mxu0 0.0
    %2598 = vmatpush1.msra.mxu0 0.0
    %2599 = vmatprep.subr.mxu0 0.0
    %2600 = vmatpush1.msra.mxu0 0.0
    %2601 = vmatprep.subr.mxu0 0.0
    %2602 = vmatpush1.msra.mxu0 0.0
    %2603 = vmatprep.subr.mxu0 0.0
    %2604 = vmatpush1.msra.mxu0 0.0
    %2605 = vmatprep.subr.mxu0 0.0
    %2606 = vmatpush1.msra.mxu0 0.0
    %2607 = vmatprep.subr.mxu0 0.0
    %2608 = vmatpush1.msra.mxu0 0.0
    %2609 = vmatprep.subr.mxu0 0.0
    %2610 = vmatpush1.msra.mxu0 0.0
    %2611 = vmatprep.subr.mxu0 0.0
    %2612 = vmatpush1.msra.mxu0 0.0
    %2613 = vmatprep.subr.mxu0 0.0
    %2614 = vmatpush1.msra.mxu0 0.0
    %2615 = vmatprep.subr.mxu0 0.0
    %2616 = vmatpush1.msra.mxu0 0.0
    %2617 = vmatprep.subr.mxu0 0.0
    %2618 = vmatpush1.msra.mxu0 0.0
    %2619 = vmatprep.subr.mxu0 0.0
    %2620 = vmatpush1.msra.mxu0 %v2575
    %2621 = vmatprep.subr.mxu0 0.0
    %2622 = vmatpush1.msra.mxu0 %v2574
    %2623 = vmatprep.subr.mxu0 0.0
    %2624 = vmatpush1.msra.mxu0 %v2573
    %2625 = vmatprep.subr.mxu0 0.0
    %2626 = vmatpush1.msra.mxu0 %v2572
    %2627 = vmatprep.subr.mxu0 0.0
    %2628 = vmatpush2.msra.mxu0 0.0
    %2629 = vmatprep.subr.mxu0 0.0
    %2630 = vmatpush2.msra.mxu0 0.0
    %2631 = vmatprep.subr.mxu0 0.0
    %2632 = vmatpush2.msra.mxu0 0.0
    %2633 = vmatprep.subr.mxu0 0.0
    %2634 = vmatpush2.msra.mxu0 0.0
    %2635 = vmatprep.subr.mxu0 0.0
    %2636 = vmatpush2.msra.mxu0 0.0
    %2637 = vmatprep.subr.mxu0 0.0
    %2638 = vmatpush2.msra.mxu0 0.0
    %2639 = vmatprep.subr.mxu0 0.0
    %2640 = vmatpush2.msra.mxu0 0.0
    %2641 = vmatprep.subr.mxu0 0.0
    %2642 = vmatpush2.msra.mxu0 0.0
    %2643 = vmatprep.subr.mxu0 0.0
    %2644 = vmatpush2.msra.mxu0 0.0
    %2645 = vmatprep.subr.mxu0 0.0
    %2646 = vmatpush2.msra.mxu0 0.0
    %2647 = vmatprep.subr.mxu0 0.0
    %2648 = vmatpush2.msra.mxu0 0.0
    %2649 = vmatprep.subr.mxu0 0.0
    %2650 = vmatpush2.msra.mxu0 0.0
    %2651 = vmatprep.subr.mxu0 0.0
    %2652 = vmatpush2.msra.mxu0 0.0
    %2653 = vmatprep.subr.mxu0 0.0
    %2654 = vmatpush2.msra.mxu0 0.0
    %2655 = vmatprep.subr.mxu0 0.0
    %2656 = vmatpush2.msra.mxu0 0.0
    %2657 = vmatprep.subr.mxu0 0.0
    %2658 = vmatpush2.msra.mxu0 0.0
    %2659 = vmatprep.mubr.f32.mxu0 0.0
    %2660 = vmatmul.mubr.f32.gmra.mxu0 %v2584
    %v2661 = vpop.f32.mrf.mxu0
    %v2662 = vadd.f32 %v2581, %v2661
    %v2663 = vpop.f32.mrf.mxu0
    %2664 = vmatprep.mubr.f32.mxu0 0.0
    %2665 = vmatmul.mubr.f32.gmra.mxu0 %v2587
    %v2666 = vpop.f32.mrf.mxu0
    %v2667 = vadd.f32 %v2581, %v2666
    %v2668 = vpop.f32.mrf.mxu0
    %2669 = vmatprep.mubr.f32.mxu0 0.0
    %2670 = vmatmul.mubr.f32.gmra.mxu0 %v2590
    %v2671 = vpop.f32.mrf.mxu0
    %v2672 = vadd.f32 %v2581, %v2671
    %v2673 = vpop.f32.mrf.mxu0
    %2674 = vmatprep.mubr.f32.mxu0 0.0
    %2675 = vmatmul.mubr.f32.gmra.mxu0 %v2593
    %v2676 = vpop.f32.mrf.mxu0
    %v2677 = vadd.f32 %v2581, %v2676
    %v2678 = vpop.f32.mrf.mxu0
    %2679 = vdwg.mxu0
    %2680 = vst [vmem:[%s6] sm:$0xff] %v2662
    %2681 = vst [vmem:[%s6 + $0x8] sm:$0xff] %v2667
    %2682 = vst [vmem:[%s6 + $0x10] sm:$0xff] %v2672
    %2683 = vst [vmem:[%s6 + $0x18] sm:$0xff] %v2677
    // Predicated region
    $region30: #{lstm_model_forward.1} parent=1 // pred_check
      _
    $region31: #{lstm_model_forward.1} parent=1 // pred_check_branch
      %2685 = sbr.rel (0) target = $region33
    $region32: #{lstm_model_forward.1} parent=1 // pred_region
      _
    $region33: #{lstm_model_forward.1} parent=1 // pred_fallthru
      _
    // Predicated region
    $region34: #{lstm_model_forward.1} parent=1 // pred_check
      _
    $region35: #{lstm_model_forward.1} parent=1 // pred_check_branch
      %2687 = sbr.rel (0) target = $region37
    $region36: #{lstm_model_forward.1} parent=1 // pred_region
      _
    $region37: #{lstm_model_forward.1} parent=1 // pred_fallthru
      _
    %2688 = vsyncpa [#allocation5], 1

</llo_original>
